<compile_context>
chip_gen: v5e
topology: v5e:2x2
jax: 0.10.0
libtpu: 0.0.40
codegen_flags: <defaults>
</compile_context>

<pallas_src>
import functools

import jax
import jax.numpy as jnp
from jax.experimental import pallas as pl
from jax.experimental.pallas import tpu as pltpu


def _rup(x, m):
    return (x + m - 1) // m * m


# --------------------------------------------------------------------------
# Fused matmul kernel: bf16 operands on the MXU, f32 VMEM accumulator,
# optional input activation (prologue) and bias + tanh (epilogue).
# --------------------------------------------------------------------------
def _mm_kernel(a_ref, b_ref, bias_ref, o_ref, acc_ref, *, in_act, out_act):
    @pl.when(pl.program_id(2) == 0)
    def _():
        acc_ref[...] = jnp.zeros_like(acc_ref)

    a = a_ref[...]
    if in_act == "lrelu":          # fused nn.LeakyReLU(0.2) of the down path
        a = jnp.where(a >= 0, a, 0.2 * a)
    elif in_act == "relu":         # fused nn.ReLU of the up path
        a = jnp.maximum(a, 0.0)
    acc_ref[...] += jnp.dot(a, b_ref[...], preferred_element_type=jnp.float32)

    @pl.when(pl.program_id(2) == pl.num_programs(2) - 1)
    def _():
        y = acc_ref[...] + bias_ref[...]
        if out_act == "tanh":      # fused nn.Tanh of the outermost block
            y = jnp.tanh(y)
        o_ref[...] = y


def matmul_pallas(a, b, bias=None, in_act=None, out_act=None):
    """a: (M, K) bf16, b: (K, N) bf16, bias: (N,) f32 or None -> (M, N) f32."""
    M, K = a.shape
    _, N = b.shape
    # Adaptive tiles: large for the big mem-bound layers, small for the deep
    # low-resolution layers (avoids 128-row padding waste on M as small as 1).
    tm = min(512, _rup(M, 16))
    tk = min(512, _rup(K, 128))
    tn = min(256, _rup(N, 128))
    Mp, Kp, Np = _rup(M, tm), _rup(K, tk), _rup(N, tn)
    ap = jnp.pad(a, ((0, Mp - M), (0, Kp - K)))
    bp = jnp.pad(b, ((0, Kp - K), (0, Np - N)))
    if bias is None:
        bias_p = jnp.zeros((1, Np), jnp.float32)
    else:
        bias_p = jnp.pad(bias.astype(jnp.float32).reshape(1, N),
                         ((0, 0), (0, Np - N)))
    out = pl.pallas_call(
        functools.partial(_mm_kernel, in_act=in_act, out_act=out_act),
        out_shape=jax.ShapeDtypeStruct((Mp, Np), jnp.float32),
        grid_spec=pltpu.PrefetchScalarGridSpec(
            num_scalar_prefetch=0,
            grid=(Mp // tm, Np // tn, Kp // tk),
            in_specs=[pl.BlockSpec((tm, tk), lambda i, j, k: (i, k)),
                      pl.BlockSpec((tk, tn), lambda i, j, k: (k, j)),
                      pl.BlockSpec((1, tn), lambda i, j, k: (0, j))],
            out_specs=pl.BlockSpec((tm, tn), lambda i, j, k: (i, j)),
            scratch_shapes=[pltpu.VMEM((tm, tn), jnp.float32)]),
        compiler_params=pltpu.CompilerParams(
            dimension_semantics=("parallel", "parallel", "arbitrary"),
            vmem_limit_bytes=32 * 1024 * 1024),
    )(ap, bp, bias_p)
    return out[:M, :N]


# --------------------------------------------------- training-mode BatchNorm2d
def _bn_kernel(x_ref, g_ref, b_ref, o_ref):
    x = x_ref[...]
    mean = jnp.mean(x, axis=0, keepdims=True)
    var = jnp.mean(jnp.square(x - mean), axis=0, keepdims=True)
    inv = jax.lax.rsqrt(var + 1e-5)
    o_ref[...] = (x - mean) * inv * g_ref[...] + b_ref[...]


def batchnorm2d(x, gamma, beta):
    """nn.BatchNorm2d in train mode (biased batch stats over N,H,W). x: NHWC."""
    N, H, W, C = x.shape
    M = N * H * W
    y = pl.pallas_call(
        _bn_kernel,
        out_shape=jax.ShapeDtypeStruct((M, C), jnp.float32),
        compiler_params=pltpu.CompilerParams(
            vmem_limit_bytes=32 * 1024 * 1024),
    )(x.reshape(M, C), gamma.reshape(1, C), beta.reshape(1, C))
    return y.reshape(N, H, W, C)


# ----------------------------------------------------------- conv / conv-trans
def conv4x4_s2p1(x, w, in_act=None):
    """nn.Conv2d(Cin, Cout, 4, stride=2, padding=1, bias=False), NHWC input.

    The LeakyReLU preceding the conv in the PyTorch block is fused into the
    matmul prologue (in_act)."""
    N, H, W, C = x.shape
    Ho, Wo = H // 2, W // 2
    Cout = w.shape[0]
    xp = jnp.pad(x.astype(jnp.bfloat16), ((0, 0), (1, 1), (1, 1), (0, 0)))
    taps = [xp[:, kh:kh + 2 * Ho - 1:2, kw:kw + 2 * Wo - 1:2, :]
            for kh in range(4) for kw in range(4)]
    A = jnp.concatenate(taps, axis=-1).reshape(N * Ho * Wo, 16 * C)
    B = w.transpose(2, 3, 1, 0).reshape(16 * C, Cout).astype(jnp.bfloat16)
    out = matmul_pallas(A, B, None, in_act, None)
    return out.reshape(N, Ho, Wo, Cout)


def convT4x4_s2p1(x, w_t, in_act=None, bias=None, out_act=None):
    """nn.ConvTranspose2d(Cin, Cout, 4, stride=2, padding=1), NHWC input.

    Polyphase decomposition: output phase (a, b) in {0,1}^2 is a stride-1 conv
    over the original input using the 2x2 tap subset
    (kh, kw) = (3-a-2*dr, 3-b-2*dc), dr,dc in {0,1}.  The preceding ReLU and
    the trailing bias/tanh are fused into the matmul kernel."""
    N, H, W, C = x.shape
    Cout = w_t.shape[1]
    xp = jnp.pad(x.astype(jnp.bfloat16), ((0, 0), (1, 1), (1, 1), (0, 0)))
    phases = []
    for a in range(2):
        for b in range(2):
            taps, wrows = [], []
            for dr in range(2):
                for dc in range(2):
                    taps.append(xp[:, a + dr:a + dr + H, b + dc:b + dc + W, :])
                    wrows.append(w_t[:, :, 3 - a - 2 * dr, 3 - b - 2 * dc])
            A = jnp.concatenate(taps, axis=-1).reshape(N * H * W, 4 * C)
            B = jnp.concatenate(wrows, axis=0).astype(jnp.bfloat16)
            y = matmul_pallas(A, B, bias, in_act, out_act)
            phases.append(y.reshape(N, H, W, Cout))
    t = jnp.stack(phases, axis=3).reshape(N, H, W, 2, 2, Cout)
    return t.transpose(0, 1, 3, 2, 4, 5).reshape(N, 2 * H, 2 * W, Cout)


# -------------------------------------------------------------- generator defn
def init_generator_params(key, input_nc=3, output_nc=1, ngf=64, num_downs=8,
                          gain=0.02):
    # (outer_nc, inner_nc, input_nc, kind), outermost first -- mirrors the
    # recursive Unet_256 / UnetSkipConnectionBlock construction.
    blocks = [(output_nc, ngf, input_nc, "outermost"),
              (ngf, ngf * 2, ngf, "middle"),
              (ngf * 2, ngf * 4, ngf * 2, "middle"),
              (ngf * 4, ngf * 8, ngf * 4, "middle")]
    for _ in range(num_downs - 5):
        blocks.append((ngf * 8, ngf * 8, ngf * 8, "middle"))
    blocks.append((ngf * 8, ngf * 8, ngf * 8, "innermost"))

    params = []
    for outer, inner, inp, kind in blocks:
        p = {}
        key, k1 = jax.random.split(key)
        p["dw"] = gain * jax.random.normal(k1, (inner, inp, 4, 4), jnp.float32)
        if kind == "outermost":
            key, k2, k3 = jax.random.split(key, 3)
            p["uw"] = gain * jax.random.normal(k2, (inner * 2, outer, 4, 4),
                                               jnp.float32)
            p["ubias"] = gain * jax.random.normal(k3, (outer,), jnp.float32)
        elif kind == "innermost":
            key, k2 = jax.random.split(key)
            p["uw"] = gain * jax.random.normal(k2, (inner, outer, 4, 4),
                                               jnp.float32)
            p["ug"] = jnp.ones((outer,), jnp.float32)
            p["ub"] = jnp.zeros((outer,), jnp.float32)
        else:  # middle
            p["dg"] = jnp.ones((inner,), jnp.float32)
            p["db"] = jnp.zeros((inner,), jnp.float32)
            key, k2 = jax.random.split(key)
            p["uw"] = gain * jax.random.normal(k2, (inner * 2, outer, 4, 4),
                                               jnp.float32)
            p["ug"] = jnp.ones((outer,), jnp.float32)
            p["ub"] = jnp.zeros((outer,), jnp.float32)
        params.append(p)
    return params


def _unet_block(params, idx, x):
    p = params[idx]
    if "ubias" in p:                       # outermost block
        h = conv4x4_s2p1(x, p["dw"], in_act=None)
        h = _unet_block(params, idx + 1, h)
        return convT4x4_s2p1(h, p["uw"], in_act="relu",
                             bias=p["ubias"], out_act="tanh")
    elif "dg" in p:                        # middle block
        h = conv4x4_s2p1(x, p["dw"], in_act="lrelu")
        h = batchnorm2d(h, p["dg"], p["db"])
        h = _unet_block(params, idx + 1, h)
        h = convT4x4_s2p1(h, p["uw"], in_act="relu")
        h = batchnorm2d(h, p["ug"], p["ub"])
        return jnp.concatenate([x, h], axis=-1)
    else:                                  # innermost block
        h = conv4x4_s2p1(x, p["dw"], in_act="lrelu")
        h = convT4x4_s2p1(h, p["uw"], in_act="relu")
        h = batchnorm2d(h, p["ug"], p["ub"])
        return jnp.concatenate([x, h], axis=-1)


@jax.jit
def pix2pix_forward(params, real_A):
    """Pix2Pix.forward(): self.fake_B = self.netG(self.real_A). NCHW in/out."""
    x = real_A.transpose(0, 2, 3, 1)       # NCHW -> NHWC
    y = _unet_block(params, 0, x)
    return y.transpose(0, 3, 1, 2)         # NHWC -> NCHW


# TODO(synk): training-only members (GANLoss, L1, netD/PixelDiscriminator,
# Adam optimizers, backward_D/backward_G) are not part of forward() and are
# not implemented.

if __name__ == "__main__":
    key = jax.random.PRNGKey(0)
    kp, kx = jax.random.split(key)
    # Small, fast self-test: num_downs=5 is the smallest U-Net this
    # architecture can express (needs a 32x32 input), ngf=8 keeps channels
    # small.  The real Pix2Pix config (ngf=64, num_downs=8, 256x256 input)
    # uses the same code path with larger shapes.
    params = init_generator_params(kp, input_nc=3, output_nc=1, ngf=8,
                                   num_downs=5)
    real_A = jax.random.normal(kx, (1, 3, 32, 32), jnp.float32)
    fake_B = pix2pix_forward(params, real_A)
    jax.block_until_ready(fake_B)
    assert fake_B.shape == (1, 1, 32, 32)
    assert bool(jnp.all(jnp.isfinite(fake_B)))
    print("KERNEL_OK")
</pallas_src>

<mosaic_0001>
module attributes {stable_mosaic.version = 11 : i64} {
  func.func @_mm_kernel(%arg0: i32, %arg1: i32, %arg2: i32, %arg3: memref<256x128xbf16, #tpu.memory_space<vmem>>, %arg4: memref<128x128xbf16, #tpu.memory_space<vmem>>, %arg5: memref<1x128xf32, #tpu.memory_space<vmem>>, %arg6: memref<256x128xf32, #tpu.memory_space<vmem>>, %arg7: memref<256x128xf32, #tpu.memory_space<vmem>>) attributes {dimension_semantics = [#tpu.dimension_semantics<parallel>, #tpu.dimension_semantics<parallel>, #tpu.dimension_semantics<arbitrary>], iteration_bounds = array<i64: 1, 1, 1>, scalar_prefetch = 0 : i64, scratch_operands = 1 : i64, tpu.core_type = #tpu.core_type<tc>, window_params = [{transform_indices = @transform_0, window_bounds = array<i64: 256, 128>}, {transform_indices = @transform_1, window_bounds = array<i64: 128, 128>}, {transform_indices = @transform_2, window_bounds = array<i64: 1, 128>}, {transform_indices = @transform_3, window_bounds = array<i64: 256, 128>}]} {
    %c0_i32 = arith.constant 0 : i32
    %0 = arith.cmpi eq, %arg2, %c0_i32 : i32
    %1 = arith.extui %0 : i1 to i32
    %c0_i32_0 = arith.constant 0 : i32
    %2 = arith.cmpi ne, %1, %c0_i32_0 : i32
    scf.if %2 {
      %cst_10 = arith.constant 0.000000e+00 : f32
      %12 = vector.broadcast %cst_10 : f32 to vector<256x128xf32>
      %c0_11 = arith.constant 0 : index
      %c0_12 = arith.constant 0 : index
      %13 = vector.load %arg7[%c0_11, %c0_12] : memref<256x128xf32, #tpu.memory_space<vmem>>, vector<256x128xf32>
      tpu.vector_store %arg7[%c0_11, %c0_12], %12 {strides = array<i32>} : memref<256x128xf32, #tpu.memory_space<vmem>>, vector<256x128xf32>,
    } else {
    }
    %c0 = arith.constant 0 : index
    %c0_1 = arith.constant 0 : index
    %3 = vector.load %arg3[%c0, %c0_1] : memref<256x128xbf16, #tpu.memory_space<vmem>>, vector<256x128xbf16>
    %c0_2 = arith.constant 0 : index
    %c0_3 = arith.constant 0 : index
    %4 = vector.load %arg7[%c0_2, %c0_3] : memref<256x128xf32, #tpu.memory_space<vmem>>, vector<256x128xf32>
    %c0_4 = arith.constant 0 : index
    %c0_5 = arith.constant 0 : index
    %5 = vector.load %arg4[%c0_4, %c0_5] : memref<128x128xbf16, #tpu.memory_space<vmem>>, vector<128x128xbf16>
    %cst = arith.constant dense<0.000000e+00> : vector<256x128xf32>
    %6 = tpu.matmul %3, %5, %cst {dimension_numbers = #tpu.dot_dimension_numbers<[1], [0], [0], [1], [0, 0, 1, 1], [], []>} : vector<256x128xbf16>, vector<128x128xbf16>, vector<256x128xf32> -> vector<256x128xf32>
    %7 = arith.addf %4, %6 : vector<256x128xf32>
    %c0_6 = arith.constant 0 : index
    %c0_7 = arith.constant 0 : index
    %8 = vector.load %arg7[%c0_6, %c0_7] : memref<256x128xf32, #tpu.memory_space<vmem>>, vector<256x128xf32>
    tpu.vector_store %arg7[%c0_6, %c0_7], %7 {strides = array<i32>} : memref<256x128xf32, #tpu.memory_space<vmem>>, vector<256x128xf32>,
    %c0_i32_8 = arith.constant 0 : i32
    %9 = arith.cmpi eq, %arg2, %c0_i32_8 : i32
    %10 = arith.extui %9 : i1 to i32
    %c0_i32_9 = arith.constant 0 : i32
    %11 = arith.cmpi ne, %10, %c0_i32_9 : i32
    scf.if %11 {
      %c0_10 = arith.constant 0 : index
      %c0_11 = arith.constant 0 : index
      %12 = vector.load %arg7[%c0_10, %c0_11] : memref<256x128xf32, #tpu.memory_space<vmem>>, vector<256x128xf32>
      %c0_12 = arith.constant 0 : index
      %c0_13 = arith.constant 0 : index
      %13 = vector.load %arg5[%c0_12, %c0_13] : memref<1x128xf32, #tpu.memory_space<vmem>>, vector<1x128xf32>
      %14 = vector.broadcast %13 : vector<1x128xf32> to vector<256x128xf32>
      %15 = arith.addf %12, %14 : vector<256x128xf32>
      %c0_14 = arith.constant 0 : index
      %c0_15 = arith.constant 0 : index
      %16 = vector.load %arg6[%c0_14, %c0_15] : memref<256x128xf32, #tpu.memory_space<vmem>>, vector<256x128xf32>
      tpu.vector_store %arg6[%c0_14, %c0_15], %15 {strides = array<i32>} : memref<256x128xf32, #tpu.memory_space<vmem>>, vector<256x128xf32>,
    } else {
    }
    return
  }
  func.func @transform_0(%arg0: i32, %arg1: i32, %arg2: i32) -> (i32, i32) {
    %c0_i32 = arith.constant 0 : i32
    return %arg0, %arg2 : i32, i32
  }
  func.func @transform_1(%arg0: i32, %arg1: i32, %arg2: i32) -> (i32, i32) {
    %c0_i32 = arith.constant 0 : i32
    return %arg2, %arg1 : i32, i32
  }
  func.func @transform_2(%arg0: i32, %arg1: i32, %arg2: i32) -> (i32, i32) {
    %c0_i32 = arith.constant 0 : i32
    %c0_i32_0 = arith.constant 0 : i32
    return %c0_i32, %arg1 : i32, i32
  }
  func.func @transform_3(%arg0: i32, %arg1: i32, %arg2: i32) -> (i32, i32) {
    %c0_i32 = arith.constant 0 : i32
    return %arg0, %arg1 : i32, i32
  }
}

module attributes {stable_mosaic.version = 11 : i64} {
  func.func @_bn_kernel(%arg0: memref<64x16xf32, #tpu.memory_space<vmem>>, %arg1: memref<1x16xf32, #tpu.memory_space<vmem>>, %arg2: memref<1x16xf32, #tpu.memory_space<vmem>>, %arg3: memref<64x16xf32, #tpu.memory_space<vmem>>) attributes {dimension_semantics = [], scalar_prefetch = 0 : i64, scratch_operands = 0 : i64, tpu.core_type = #tpu.core_type<tc>} {
    %c0 = arith.constant 0 : index
    %c0_0 = arith.constant 0 : index
    %0 = vector.load %arg0[%c0, %c0_0] : memref<64x16xf32, #tpu.memory_space<vmem>>, vector<64x16xf32>
    %cst = arith.constant dense<0.000000e+00> : vector<16xf32>
    %1 = vector.multi_reduction <add>, %0, %cst [0] : vector<64x16xf32> to vector<16xf32>
    %2 = vector.shape_cast %1 : vector<16xf32> to vector<1x16xf32>
    %cst_1 = arith.constant 6.400000e+01 : f32
    %3 = vector.broadcast %cst_1 : f32 to vector<1x16xf32>
    %4 = arith.divf %2, %3 : vector<1x16xf32>
    %5 = vector.broadcast %4 : vector<1x16xf32> to vector<64x16xf32>
    %6 = arith.subf %0, %5 : vector<64x16xf32>
    %7 = arith.mulf %6, %6 : vector<64x16xf32>
    %cst_2 = arith.constant dense<0.000000e+00> : vector<16xf32>
    %8 = vector.multi_reduction <add>, %7, %cst_2 [0] : vector<64x16xf32> to vector<16xf32>
    %9 = vector.shape_cast %8 : vector<16xf32> to vector<1x16xf32>
    %cst_3 = arith.constant 6.400000e+01 : f32
    %10 = vector.broadcast %cst_3 : f32 to vector<1x16xf32>
    %11 = arith.divf %9, %10 : vector<1x16xf32>
    %cst_4 = arith.constant 9.99999974E-6 : f32
    %12 = vector.broadcast %cst_4 : f32 to vector<1x16xf32>
    %13 = arith.addf %11, %12 : vector<1x16xf32>
    %14 = math.rsqrt %13 : vector<1x16xf32>
    %15 = vector.broadcast %4 : vector<1x16xf32> to vector<64x16xf32>
    %16 = arith.subf %0, %15 : vector<64x16xf32>
    %17 = vector.broadcast %14 : vector<1x16xf32> to vector<64x16xf32>
    %18 = arith.mulf %16, %17 : vector<64x16xf32>
    %c0_5 = arith.constant 0 : index
    %c0_6 = arith.constant 0 : index
    %19 = vector.load %arg1[%c0_5, %c0_6] : memref<1x16xf32, #tpu.memory_space<vmem>>, vector<1x16xf32>
    %20 = vector.broadcast %19 : vector<1x16xf32> to vector<64x16xf32>
    %21 = arith.mulf %18, %20 : vector<64x16xf32>
    %c0_7 = arith.constant 0 : index
    %c0_8 = arith.constant 0 : index
    %22 = vector.load %arg2[%c0_7, %c0_8] : memref<1x16xf32, #tpu.memory_space<vmem>>, vector<1x16xf32>
    %23 = vector.broadcast %22 : vector<1x16xf32> to vector<64x16xf32>
    %24 = arith.addf %21, %23 : vector<64x16xf32>
    %c0_9 = arith.constant 0 : index
    %c0_10 = arith.constant 0 : index
    %25 = vector.load %arg3[%c0_9, %c0_10] : memref<64x16xf32, #tpu.memory_space<vmem>>, vector<64x16xf32>
    tpu.vector_store %arg3[%c0_9, %c0_10], %24 {strides = array<i32>} : memref<64x16xf32, #tpu.memory_space<vmem>>, vector<64x16xf32>,
    return
  }
}

module attributes {stable_mosaic.version = 11 : i64} {
  func.func @_mm_kernel(%arg0: i32, %arg1: i32, %arg2: i32, %arg3: memref<64x128xbf16, #tpu.memory_space<vmem>>, %arg4: memref<128x128xbf16, #tpu.memory_space<vmem>>, %arg5: memref<1x128xf32, #tpu.memory_space<vmem>>, %arg6: memref<64x128xf32, #tpu.memory_space<vmem>>, %arg7: memref<64x128xf32, #tpu.memory_space<vmem>>) attributes {dimension_semantics = [#tpu.dimension_semantics<parallel>, #tpu.dimension_semantics<parallel>, #tpu.dimension_semantics<arbitrary>], iteration_bounds = array<i64: 1, 1, 1>, scalar_prefetch = 0 : i64, scratch_operands = 1 : i64, tpu.core_type = #tpu.core_type<tc>, window_params = [{transform_indices = @transform_0, window_bounds = array<i64: 64, 128>}, {transform_indices = @transform_1, window_bounds = array<i64: 128, 128>}, {transform_indices = @transform_2, window_bounds = array<i64: 1, 128>}, {transform_indices = @transform_3, window_bounds = array<i64: 64, 128>}]} {
    %c0_i32 = arith.constant 0 : i32
    %0 = arith.cmpi eq, %arg2, %c0_i32 : i32
    %1 = arith.extui %0 : i1 to i32
    %c0_i32_0 = arith.constant 0 : i32
    %2 = arith.cmpi ne, %1, %c0_i32_0 : i32
    scf.if %2 {
      %cst_12 = arith.constant 0.000000e+00 : f32
      %17 = vector.broadcast %cst_12 : f32 to vector<64x128xf32>
      %c0_13 = arith.constant 0 : index
      %c0_14 = arith.constant 0 : index
      %18 = vector.load %arg7[%c0_13, %c0_14] : memref<64x128xf32, #tpu.memory_space<vmem>>, vector<64x128xf32>
      tpu.vector_store %arg7[%c0_13, %c0_14], %17 {strides = array<i32>} : memref<64x128xf32, #tpu.memory_space<vmem>>, vector<64x128xf32>,
    } else {
    }
    %c0 = arith.constant 0 : index
    %c0_1 = arith.constant 0 : index
    %3 = vector.load %arg3[%c0, %c0_1] : memref<64x128xbf16, #tpu.memory_space<vmem>>, vector<64x128xbf16>
    %cst = arith.constant 0.000000e+00 : bf16
    %4 = vector.broadcast %cst : bf16 to vector<64x128xbf16>
    %5 = arith.cmpf oge, %3, %4 : vector<64x128xbf16>
    %cst_2 = arith.constant 2.001950e-01 : bf16
    %6 = vector.broadcast %cst_2 : bf16 to vector<64x128xbf16>
    %7 = arith.mulf %6, %3 : vector<64x128xbf16>
    %8 = arith.select %5, %3, %7 : vector<64x128xi1>, vector<64x128xbf16>
    %c0_3 = arith.constant 0 : index
    %c0_4 = arith.constant 0 : index
    %9 = vector.load %arg7[%c0_3, %c0_4] : memref<64x128xf32, #tpu.memory_space<vmem>>, vector<64x128xf32>
    %c0_5 = arith.constant 0 : index
    %c0_6 = arith.constant 0 : index
    %10 = vector.load %arg4[%c0_5, %c0_6] : memref<128x128xbf16, #tpu.memory_space<vmem>>, vector<128x128xbf16>
    %cst_7 = arith.constant dense<0.000000e+00> : vector<64x128xf32>
    %11 = tpu.matmul %8, %10, %cst_7 {dimension_numbers = #tpu.dot_dimension_numbers<[1], [0], [0], [1], [0, 0, 1, 1], [], []>} : vector<64x128xbf16>, vector<128x128xbf16>, vector<64x128xf32> -> vector<64x128xf32>
    %12 = arith.addf %9, %11 : vector<64x128xf32>
    %c0_8 = arith.constant 0 : index
    %c0_9 = arith.constant 0 : index
    %13 = vector.load %arg7[%c0_8, %c0_9] : memref<64x128xf32, #tpu.memory_space<vmem>>, vector<64x128xf32>
    tpu.vector_store %arg7[%c0_8, %c0_9], %12 {strides = array<i32>} : memref<64x128xf32, #tpu.memory_space<vmem>>, vector<64x128xf32>,
    %c0_i32_10 = arith.constant 0 : i32
    %14 = arith.cmpi eq, %arg2, %c0_i32_10 : i32
    %15 = arith.extui %14 : i1 to i32
    %c0_i32_11 = arith.constant 0 : i32
    %16 = arith.cmpi ne, %15, %c0_i32_11 : i32
    scf.if %16 {
      %c0_12 = arith.constant 0 : index
      %c0_13 = arith.constant 0 : index
      %17 = vector.load %arg7[%c0_12, %c0_13] : memref<64x128xf32, #tpu.memory_space<vmem>>, vector<64x128xf32>
      %c0_14 = arith.constant 0 : index
      %c0_15 = arith.constant 0 : index
      %18 = vector.load %arg5[%c0_14, %c0_15] : memref<1x128xf32, #tpu.memory_space<vmem>>, vector<1x128xf32>
      %19 = vector.broadcast %18 : vector<1x128xf32> to vector<64x128xf32>
      %20 = arith.addf %17, %19 : vector<64x128xf32>
      %c0_16 = arith.constant 0 : index
      %c0_17 = arith.constant 0 : index
      %21 = vector.load %arg6[%c0_16, %c0_17] : memref<64x128xf32, #tpu.memory_space<vmem>>, vector<64x128xf32>
      tpu.vector_store %arg6[%c0_16, %c0_17], %20 {strides = array<i32>} : memref<64x128xf32, #tpu.memory_space<vmem>>, vector<64x128xf32>,
    } else {
    }
    return
  }
  func.func @transform_0(%arg0: i32, %arg1: i32, %arg2: i32) -> (i32, i32) {
    %c0_i32 = arith.constant 0 : i32
    return %arg0, %arg2 : i32, i32
  }
  func.func @transform_1(%arg0: i32, %arg1: i32, %arg2: i32) -> (i32, i32) {
    %c0_i32 = arith.constant 0 : i32
    return %arg2, %arg1 : i32, i32
  }
  func.func @transform_2(%arg0: i32, %arg1: i32, %arg2: i32) -> (i32, i32) {
    %c0_i32 = arith.constant 0 : i32
    %c0_i32_0 = arith.constant 0 : i32
    return %c0_i32, %arg1 : i32, i32
  }
  func.func @transform_3(%arg0: i32, %arg1: i32, %arg2: i32) -> (i32, i32) {
    %c0_i32 = arith.constant 0 : i32
    return %arg0, %arg1 : i32, i32
  }
}

module attributes {stable_mosaic.version = 11 : i64} {
  func.func @_mm_kernel(%arg0: i32, %arg1: i32, %arg2: i32, %arg3: memref<16x256xbf16, #tpu.memory_space<vmem>>, %arg4: memref<256x128xbf16, #tpu.memory_space<vmem>>, %arg5: memref<1x128xf32, #tpu.memory_space<vmem>>, %arg6: memref<16x128xf32, #tpu.memory_space<vmem>>, %arg7: memref<16x128xf32, #tpu.memory_space<vmem>>) attributes {dimension_semantics = [#tpu.dimension_semantics<parallel>, #tpu.dimension_semantics<parallel>, #tpu.dimension_semantics<arbitrary>], iteration_bounds = array<i64: 1, 1, 1>, scalar_prefetch = 0 : i64, scratch_operands = 1 : i64, tpu.core_type = #tpu.core_type<tc>, window_params = [{transform_indices = @transform_0, window_bounds = array<i64: 16, 256>}, {transform_indices = @transform_1, window_bounds = array<i64: 256, 128>}, {transform_indices = @transform_2, window_bounds = array<i64: 1, 128>}, {transform_indices = @transform_3, window_bounds = array<i64: 16, 128>}]} {
    %c0_i32 = arith.constant 0 : i32
    %0 = arith.cmpi eq, %arg2, %c0_i32 : i32
    %1 = arith.extui %0 : i1 to i32
    %c0_i32_0 = arith.constant 0 : i32
    %2 = arith.cmpi ne, %1, %c0_i32_0 : i32
    scf.if %2 {
      %cst_12 = arith.constant 0.000000e+00 : f32
      %17 = vector.broadcast %cst_12 : f32 to vector<16x128xf32>
      %c0_13 = arith.constant 0 : index
      %c0_14 = arith.constant 0 : index
      %18 = vector.load %arg7[%c0_13, %c0_14] : memref<16x128xf32, #tpu.memory_space<vmem>>, vector<16x128xf32>
      tpu.vector_store %arg7[%c0_13, %c0_14], %17 {strides = array<i32>} : memref<16x128xf32, #tpu.memory_space<vmem>>, vector<16x128xf32>,
    } else {
    }
    %c0 = arith.constant 0 : index
    %c0_1 = arith.constant 0 : index
    %3 = vector.load %arg3[%c0, %c0_1] : memref<16x256xbf16, #tpu.memory_space<vmem>>, vector<16x256xbf16>
    %cst = arith.constant 0.000000e+00 : bf16
    %4 = vector.broadcast %cst : bf16 to vector<16x256xbf16>
    %5 = arith.cmpf oge, %3, %4 : vector<16x256xbf16>
    %cst_2 = arith.constant 2.001950e-01 : bf16
    %6 = vector.broadcast %cst_2 : bf16 to vector<16x256xbf16>
    %7 = arith.mulf %6, %3 : vector<16x256xbf16>
    %8 = arith.select %5, %3, %7 : vector<16x256xi1>, vector<16x256xbf16>
    %c0_3 = arith.constant 0 : index
    %c0_4 = arith.constant 0 : index
    %9 = vector.load %arg7[%c0_3, %c0_4] : memref<16x128xf32, #tpu.memory_space<vmem>>, vector<16x128xf32>
    %c0_5 = arith.constant 0 : index
    %c0_6 = arith.constant 0 : index
    %10 = vector.load %arg4[%c0_5, %c0_6] : memref<256x128xbf16, #tpu.memory_space<vmem>>, vector<256x128xbf16>
    %cst_7 = arith.constant dense<0.000000e+00> : vector<16x128xf32>
    %11 = tpu.matmul %8, %10, %cst_7 {dimension_numbers = #tpu.dot_dimension_numbers<[1], [0], [0], [1], [0, 0, 1, 1], [], []>} : vector<16x256xbf16>, vector<256x128xbf16>, vector<16x128xf32> -> vector<16x128xf32>
    %12 = arith.addf %9, %11 : vector<16x128xf32>
    %c0_8 = arith.constant 0 : index
    %c0_9 = arith.constant 0 : index
    %13 = vector.load %arg7[%c0_8, %c0_9] : memref<16x128xf32, #tpu.memory_space<vmem>>, vector<16x128xf32>
    tpu.vector_store %arg7[%c0_8, %c0_9], %12 {strides = array<i32>} : memref<16x128xf32, #tpu.memory_space<vmem>>, vector<16x128xf32>,
    %c0_i32_10 = arith.constant 0 : i32
    %14 = arith.cmpi eq, %arg2, %c0_i32_10 : i32
    %15 = arith.extui %14 : i1 to i32
    %c0_i32_11 = arith.constant 0 : i32
    %16 = arith.cmpi ne, %15, %c0_i32_11 : i32
    scf.if %16 {
      %c0_12 = arith.constant 0 : index
      %c0_13 = arith.constant 0 : index
      %17 = vector.load %arg7[%c0_12, %c0_13] : memref<16x128xf32, #tpu.memory_space<vmem>>, vector<16x128xf32>
      %c0_14 = arith.constant 0 : index
      %c0_15 = arith.constant 0 : index
      %18 = vector.load %arg5[%c0_14, %c0_15] : memref<1x128xf32, #tpu.memory_space<vmem>>, vector<1x128xf32>
      %19 = vector.broadcast %18 : vector<1x128xf32> to vector<16x128xf32>
      %20 = arith.addf %17, %19 : vector<16x128xf32>
      %c0_16 = arith.constant 0 : index
      %c0_17 = arith.constant 0 : index
      %21 = vector.load %arg6[%c0_16, %c0_17] : memref<16x128xf32, #tpu.memory_space<vmem>>, vector<16x128xf32>
      tpu.vector_store %arg6[%c0_16, %c0_17], %20 {strides = array<i32>} : memref<16x128xf32, #tpu.memory_space<vmem>>, vector<16x128xf32>,
    } else {
    }
    return
  }
  func.func @transform_0(%arg0: i32, %arg1: i32, %arg2: i32) -> (i32, i32) {
    %c0_i32 = arith.constant 0 : i32
    return %arg0, %arg2 : i32, i32
  }
  func.func @transform_1(%arg0: i32, %arg1: i32, %arg2: i32) -> (i32, i32) {
    %c0_i32 = arith.constant 0 : i32
    return %arg2, %arg1 : i32, i32
  }
  func.func @transform_2(%arg0: i32, %arg1: i32, %arg2: i32) -> (i32, i32) {
    %c0_i32 = arith.constant 0 : i32
    %c0_i32_0 = arith.constant 0 : i32
    return %c0_i32, %arg1 : i32, i32
  }
  func.func @transform_3(%arg0: i32, %arg1: i32, %arg2: i32) -> (i32, i32) {
    %c0_i32 = arith.constant 0 : i32
    return %arg0, %arg1 : i32, i32
  }
}

module attributes {stable_mosaic.version = 11 : i64} {
  func.func @_bn_kernel(%arg0: memref<16x32xf32, #tpu.memory_space<vmem>>, %arg1: memref<1x32xf32, #tpu.memory_space<vmem>>, %arg2: memref<1x32xf32, #tpu.memory_space<vmem>>, %arg3: memref<16x32xf32, #tpu.memory_space<vmem>>) attributes {dimension_semantics = [], scalar_prefetch = 0 : i64, scratch_operands = 0 : i64, tpu.core_type = #tpu.core_type<tc>} {
    %c0 = arith.constant 0 : index
    %c0_0 = arith.constant 0 : index
    %0 = vector.load %arg0[%c0, %c0_0] : memref<16x32xf32, #tpu.memory_space<vmem>>, vector<16x32xf32>
    %cst = arith.constant dense<0.000000e+00> : vector<32xf32>
    %1 = vector.multi_reduction <add>, %0, %cst [0] : vector<16x32xf32> to vector<32xf32>
    %2 = vector.shape_cast %1 : vector<32xf32> to vector<1x32xf32>
    %cst_1 = arith.constant 1.600000e+01 : f32
    %3 = vector.broadcast %cst_1 : f32 to vector<1x32xf32>
    %4 = arith.divf %2, %3 : vector<1x32xf32>
    %5 = vector.broadcast %4 : vector<1x32xf32> to vector<16x32xf32>
    %6 = arith.subf %0, %5 : vector<16x32xf32>
    %7 = arith.mulf %6, %6 : vector<16x32xf32>
    %cst_2 = arith.constant dense<0.000000e+00> : vector<32xf32>
    %8 = vector.multi_reduction <add>, %7, %cst_2 [0] : vector<16x32xf32> to vector<32xf32>
    %9 = vector.shape_cast %8 : vector<32xf32> to vector<1x32xf32>
    %cst_3 = arith.constant 1.600000e+01 : f32
    %10 = vector.broadcast %cst_3 : f32 to vector<1x32xf32>
    %11 = arith.divf %9, %10 : vector<1x32xf32>
    %cst_4 = arith.constant 9.99999974E-6 : f32
    %12 = vector.broadcast %cst_4 : f32 to vector<1x32xf32>
    %13 = arith.addf %11, %12 : vector<1x32xf32>
    %14 = math.rsqrt %13 : vector<1x32xf32>
    %15 = vector.broadcast %4 : vector<1x32xf32> to vector<16x32xf32>
    %16 = arith.subf %0, %15 : vector<16x32xf32>
    %17 = vector.broadcast %14 : vector<1x32xf32> to vector<16x32xf32>
    %18 = arith.mulf %16, %17 : vector<16x32xf32>
    %c0_5 = arith.constant 0 : index
    %c0_6 = arith.constant 0 : index
    %19 = vector.load %arg1[%c0_5, %c0_6] : memref<1x32xf32, #tpu.memory_space<vmem>>, vector<1x32xf32>
    %20 = vector.broadcast %19 : vector<1x32xf32> to vector<16x32xf32>
    %21 = arith.mulf %18, %20 : vector<16x32xf32>
    %c0_7 = arith.constant 0 : index
    %c0_8 = arith.constant 0 : index
    %22 = vector.load %arg2[%c0_7, %c0_8] : memref<1x32xf32, #tpu.memory_space<vmem>>, vector<1x32xf32>
    %23 = vector.broadcast %22 : vector<1x32xf32> to vector<16x32xf32>
    %24 = arith.addf %21, %23 : vector<16x32xf32>
    %c0_9 = arith.constant 0 : index
    %c0_10 = arith.constant 0 : index
    %25 = vector.load %arg3[%c0_9, %c0_10] : memref<16x32xf32, #tpu.memory_space<vmem>>, vector<16x32xf32>
    tpu.vector_store %arg3[%c0_9, %c0_10], %24 {strides = array<i32>} : memref<16x32xf32, #tpu.memory_space<vmem>>, vector<16x32xf32>,
    return
  }
}

module attributes {stable_mosaic.version = 11 : i64} {
  func.func @_bn_kernel(%arg0: memref<4x64xf32, #tpu.memory_space<vmem>>, %arg1: memref<1x64xf32, #tpu.memory_space<vmem>>, %arg2: memref<1x64xf32, #tpu.memory_space<vmem>>, %arg3: memref<4x64xf32, #tpu.memory_space<vmem>>) attributes {dimension_semantics = [], scalar_prefetch = 0 : i64, scratch_operands = 0 : i64, tpu.core_type = #tpu.core_type<tc>} {
    %c0 = arith.constant 0 : index
    %c0_0 = arith.constant 0 : index
    %0 = vector.load %arg0[%c0, %c0_0] : memref<4x64xf32, #tpu.memory_space<vmem>>, vector<4x64xf32>
    %cst = arith.constant dense<0.000000e+00> : vector<64xf32>
    %1 = vector.multi_reduction <add>, %0, %cst [0] : vector<4x64xf32> to vector<64xf32>
    %2 = vector.shape_cast %1 : vector<64xf32> to vector<1x64xf32>
    %cst_1 = arith.constant 4.000000e+00 : f32
    %3 = vector.broadcast %cst_1 : f32 to vector<1x64xf32>
    %4 = arith.divf %2, %3 : vector<1x64xf32>
    %5 = vector.broadcast %4 : vector<1x64xf32> to vector<4x64xf32>
    %6 = arith.subf %0, %5 : vector<4x64xf32>
    %7 = arith.mulf %6, %6 : vector<4x64xf32>
    %cst_2 = arith.constant dense<0.000000e+00> : vector<64xf32>
    %8 = vector.multi_reduction <add>, %7, %cst_2 [0] : vector<4x64xf32> to vector<64xf32>
    %9 = vector.shape_cast %8 : vector<64xf32> to vector<1x64xf32>
    %cst_3 = arith.constant 4.000000e+00 : f32
    %10 = vector.broadcast %cst_3 : f32 to vector<1x64xf32>
    %11 = arith.divf %9, %10 : vector<1x64xf32>
    %cst_4 = arith.constant 9.99999974E-6 : f32
    %12 = vector.broadcast %cst_4 : f32 to vector<1x64xf32>
    %13 = arith.addf %11, %12 : vector<1x64xf32>
    %14 = math.rsqrt %13 : vector<1x64xf32>
    %15 = vector.broadcast %4 : vector<1x64xf32> to vector<4x64xf32>
    %16 = arith.subf %0, %15 : vector<4x64xf32>
    %17 = vector.broadcast %14 : vector<1x64xf32> to vector<4x64xf32>
    %18 = arith.mulf %16, %17 : vector<4x64xf32>
    %c0_5 = arith.constant 0 : index
    %c0_6 = arith.constant 0 : index
    %19 = vector.load %arg1[%c0_5, %c0_6] : memref<1x64xf32, #tpu.memory_space<vmem>>, vector<1x64xf32>
    %20 = vector.broadcast %19 : vector<1x64xf32> to vector<4x64xf32>
    %21 = arith.mulf %18, %20 : vector<4x64xf32>
    %c0_7 = arith.constant 0 : index
    %c0_8 = arith.constant 0 : index
    %22 = vector.load %arg2[%c0_7, %c0_8] : memref<1x64xf32, #tpu.memory_space<vmem>>, vector<1x64xf32>
    %23 = vector.broadcast %22 : vector<1x64xf32> to vector<4x64xf32>
    %24 = arith.addf %21, %23 : vector<4x64xf32>
    %c0_9 = arith.constant 0 : index
    %c0_10 = arith.constant 0 : index
    %25 = vector.load %arg3[%c0_9, %c0_10] : memref<4x64xf32, #tpu.memory_space<vmem>>, vector<4x64xf32>
    tpu.vector_store %arg3[%c0_9, %c0_10], %24 {strides = array<i32>} : memref<4x64xf32, #tpu.memory_space<vmem>>, vector<4x64xf32>,
    return
  }
}

module attributes {stable_mosaic.version = 11 : i64} {
  func.func @_mm_kernel(%arg0: i32, %arg1: i32, %arg2: i32, %arg3: memref<16x512xbf16, #tpu.memory_space<vmem>>, %arg4: memref<512x128xbf16, #tpu.memory_space<vmem>>, %arg5: memref<1x128xf32, #tpu.memory_space<vmem>>, %arg6: memref<16x128xf32, #tpu.memory_space<vmem>>, %arg7: memref<16x128xf32, #tpu.memory_space<vmem>>) attributes {dimension_semantics = [#tpu.dimension_semantics<parallel>, #tpu.dimension_semantics<parallel>, #tpu.dimension_semantics<arbitrary>], iteration_bounds = array<i64: 1, 1, 1>, scalar_prefetch = 0 : i64, scratch_operands = 1 : i64, tpu.core_type = #tpu.core_type<tc>, window_params = [{transform_indices = @transform_0, window_bounds = array<i64: 16, 512>}, {transform_indices = @transform_1, window_bounds = array<i64: 512, 128>}, {transform_indices = @transform_2, window_bounds = array<i64: 1, 128>}, {transform_indices = @transform_3, window_bounds = array<i64: 16, 128>}]} {
    %c0_i32 = arith.constant 0 : i32
    %0 = arith.cmpi eq, %arg2, %c0_i32 : i32
    %1 = arith.extui %0 : i1 to i32
    %c0_i32_0 = arith.constant 0 : i32
    %2 = arith.cmpi ne, %1, %c0_i32_0 : i32
    scf.if %2 {
      %cst_12 = arith.constant 0.000000e+00 : f32
      %17 = vector.broadcast %cst_12 : f32 to vector<16x128xf32>
      %c0_13 = arith.constant 0 : index
      %c0_14 = arith.constant 0 : index
      %18 = vector.load %arg7[%c0_13, %c0_14] : memref<16x128xf32, #tpu.memory_space<vmem>>, vector<16x128xf32>
      tpu.vector_store %arg7[%c0_13, %c0_14], %17 {strides = array<i32>} : memref<16x128xf32, #tpu.memory_space<vmem>>, vector<16x128xf32>,
    } else {
    }
    %c0 = arith.constant 0 : index
    %c0_1 = arith.constant 0 : index
    %3 = vector.load %arg3[%c0, %c0_1] : memref<16x512xbf16, #tpu.memory_space<vmem>>, vector<16x512xbf16>
    %cst = arith.constant 0.000000e+00 : bf16
    %4 = vector.broadcast %cst : bf16 to vector<16x512xbf16>
    %5 = arith.cmpf oge, %3, %4 : vector<16x512xbf16>
    %cst_2 = arith.constant 2.001950e-01 : bf16
    %6 = vector.broadcast %cst_2 : bf16 to vector<16x512xbf16>
    %7 = arith.mulf %6, %3 : vector<16x512xbf16>
    %8 = arith.select %5, %3, %7 : vector<16x512xi1>, vector<16x512xbf16>
    %c0_3 = arith.constant 0 : index
    %c0_4 = arith.constant 0 : index
    %9 = vector.load %arg7[%c0_3, %c0_4] : memref<16x128xf32, #tpu.memory_space<vmem>>, vector<16x128xf32>
    %c0_5 = arith.constant 0 : index
    %c0_6 = arith.constant 0 : index
    %10 = vector.load %arg4[%c0_5, %c0_6] : memref<512x128xbf16, #tpu.memory_space<vmem>>, vector<512x128xbf16>
    %cst_7 = arith.constant dense<0.000000e+00> : vector<16x128xf32>
    %11 = tpu.matmul %8, %10, %cst_7 {dimension_numbers = #tpu.dot_dimension_numbers<[1], [0], [0], [1], [0, 0, 1, 1], [], []>} : vector<16x512xbf16>, vector<512x128xbf16>, vector<16x128xf32> -> vector<16x128xf32>
    %12 = arith.addf %9, %11 : vector<16x128xf32>
    %c0_8 = arith.constant 0 : index
    %c0_9 = arith.constant 0 : index
    %13 = vector.load %arg7[%c0_8, %c0_9] : memref<16x128xf32, #tpu.memory_space<vmem>>, vector<16x128xf32>
    tpu.vector_store %arg7[%c0_8, %c0_9], %12 {strides = array<i32>} : memref<16x128xf32, #tpu.memory_space<vmem>>, vector<16x128xf32>,
    %c0_i32_10 = arith.constant 0 : i32
    %14 = arith.cmpi eq, %arg2, %c0_i32_10 : i32
    %15 = arith.extui %14 : i1 to i32
    %c0_i32_11 = arith.constant 0 : i32
    %16 = arith.cmpi ne, %15, %c0_i32_11 : i32
    scf.if %16 {
      %c0_12 = arith.constant 0 : index
      %c0_13 = arith.constant 0 : index
      %17 = vector.load %arg7[%c0_12, %c0_13] : memref<16x128xf32, #tpu.memory_space<vmem>>, vector<16x128xf32>
      %c0_14 = arith.constant 0 : index
      %c0_15 = arith.constant 0 : index
      %18 = vector.load %arg5[%c0_14, %c0_15] : memref<1x128xf32, #tpu.memory_space<vmem>>, vector<1x128xf32>
      %19 = vector.broadcast %18 : vector<1x128xf32> to vector<16x128xf32>
      %20 = arith.addf %17, %19 : vector<16x128xf32>
      %c0_16 = arith.constant 0 : index
      %c0_17 = arith.constant 0 : index
      %21 = vector.load %arg6[%c0_16, %c0_17] : memref<16x128xf32, #tpu.memory_space<vmem>>, vector<16x128xf32>
      tpu.vector_store %arg6[%c0_16, %c0_17], %20 {strides = array<i32>} : memref<16x128xf32, #tpu.memory_space<vmem>>, vector<16x128xf32>,
    } else {
    }
    return
  }
  func.func @transform_0(%arg0: i32, %arg1: i32, %arg2: i32) -> (i32, i32) {
    %c0_i32 = arith.constant 0 : i32
    return %arg0, %arg2 : i32, i32
  }
  func.func @transform_1(%arg0: i32, %arg1: i32, %arg2: i32) -> (i32, i32) {
    %c0_i32 = arith.constant 0 : i32
    return %arg2, %arg1 : i32, i32
  }
  func.func @transform_2(%arg0: i32, %arg1: i32, %arg2: i32) -> (i32, i32) {
    %c0_i32 = arith.constant 0 : i32
    %c0_i32_0 = arith.constant 0 : i32
    return %c0_i32, %arg1 : i32, i32
  }
  func.func @transform_3(%arg0: i32, %arg1: i32, %arg2: i32) -> (i32, i32) {
    %c0_i32 = arith.constant 0 : i32
    return %arg0, %arg1 : i32, i32
  }
}

module attributes {stable_mosaic.version = 11 : i64} {
  func.func @_mm_kernel(%arg0: i32, %arg1: i32, %arg2: i32, %arg3: memref<16x512xbf16, #tpu.memory_space<vmem>>, %arg4: memref<512x128xbf16, #tpu.memory_space<vmem>>, %arg5: memref<1x128xf32, #tpu.memory_space<vmem>>, %arg6: memref<16x128xf32, #tpu.memory_space<vmem>>, %arg7: memref<16x128xf32, #tpu.memory_space<vmem>>) attributes {dimension_semantics = [#tpu.dimension_semantics<parallel>, #tpu.dimension_semantics<parallel>, #tpu.dimension_semantics<arbitrary>], iteration_bounds = array<i64: 1, 1, 2>, scalar_prefetch = 0 : i64, scratch_operands = 1 : i64, tpu.core_type = #tpu.core_type<tc>, window_params = [{transform_indices = @transform_0, window_bounds = array<i64: 16, 512>}, {transform_indices = @transform_1, window_bounds = array<i64: 512, 128>}, {transform_indices = @transform_2, window_bounds = array<i64: 1, 128>}, {transform_indices = @transform_3, window_bounds = array<i64: 16, 128>}]} {
    %c0_i32 = arith.constant 0 : i32
    %0 = arith.cmpi eq, %arg2, %c0_i32 : i32
    %1 = arith.extui %0 : i1 to i32
    %c0_i32_0 = arith.constant 0 : i32
    %2 = arith.cmpi ne, %1, %c0_i32_0 : i32
    scf.if %2 {
      %cst_11 = arith.constant 0.000000e+00 : f32
      %17 = vector.broadcast %cst_11 : f32 to vector<16x128xf32>
      %c0_12 = arith.constant 0 : index
      %c0_13 = arith.constant 0 : index
      %18 = vector.load %arg7[%c0_12, %c0_13] : memref<16x128xf32, #tpu.memory_space<vmem>>, vector<16x128xf32>
      tpu.vector_store %arg7[%c0_12, %c0_13], %17 {strides = array<i32>} : memref<16x128xf32, #tpu.memory_space<vmem>>, vector<16x128xf32>,
    } else {
    }
    %c0 = arith.constant 0 : index
    %c0_1 = arith.constant 0 : index
    %3 = vector.load %arg3[%c0, %c0_1] : memref<16x512xbf16, #tpu.memory_space<vmem>>, vector<16x512xbf16>
    %cst = arith.constant 0.000000e+00 : bf16
    %4 = vector.broadcast %cst : bf16 to vector<16x512xbf16>
    %5 = arith.cmpf oge, %3, %4 : vector<16x512xbf16>
    %cst_2 = arith.constant 2.001950e-01 : bf16
    %6 = vector.broadcast %cst_2 : bf16 to vector<16x512xbf16>
    %7 = arith.mulf %6, %3 : vector<16x512xbf16>
    %8 = arith.select %5, %3, %7 : vector<16x512xi1>, vector<16x512xbf16>
    %c0_3 = arith.constant 0 : index
    %c0_4 = arith.constant 0 : index
    %9 = vector.load %arg7[%c0_3, %c0_4] : memref<16x128xf32, #tpu.memory_space<vmem>>, vector<16x128xf32>
    %c0_5 = arith.constant 0 : index
    %c0_6 = arith.constant 0 : index
    %10 = vector.load %arg4[%c0_5, %c0_6] : memref<512x128xbf16, #tpu.memory_space<vmem>>, vector<512x128xbf16>
    %cst_7 = arith.constant dense<0.000000e+00> : vector<16x128xf32>
    %11 = tpu.matmul %8, %10, %cst_7 {dimension_numbers = #tpu.dot_dimension_numbers<[1], [0], [0], [1], [0, 0, 1, 1], [], []>} : vector<16x512xbf16>, vector<512x128xbf16>, vector<16x128xf32> -> vector<16x128xf32>
    %12 = arith.addf %9, %11 : vector<16x128xf32>
    %c0_8 = arith.constant 0 : index
    %c0_9 = arith.constant 0 : index
    %13 = vector.load %arg7[%c0_8, %c0_9] : memref<16x128xf32, #tpu.memory_space<vmem>>, vector<16x128xf32>
    tpu.vector_store %arg7[%c0_8, %c0_9], %12 {strides = array<i32>} : memref<16x128xf32, #tpu.memory_space<vmem>>, vector<16x128xf32>,
    %c1_i32 = arith.constant 1 : i32
    %14 = arith.cmpi eq, %arg2, %c1_i32 : i32
    %15 = arith.extui %14 : i1 to i32
    %c0_i32_10 = arith.constant 0 : i32
    %16 = arith.cmpi ne, %15, %c0_i32_10 : i32
    scf.if %16 {
      %c0_11 = arith.constant 0 : index
      %c0_12 = arith.constant 0 : index
      %17 = vector.load %arg7[%c0_11, %c0_12] : memref<16x128xf32, #tpu.memory_space<vmem>>, vector<16x128xf32>
      %c0_13 = arith.constant 0 : index
      %c0_14 = arith.constant 0 : index
      %18 = vector.load %arg5[%c0_13, %c0_14] : memref<1x128xf32, #tpu.memory_space<vmem>>, vector<1x128xf32>
      %19 = vector.broadcast %18 : vector<1x128xf32> to vector<16x128xf32>
      %20 = arith.addf %17, %19 : vector<16x128xf32>
      %c0_15 = arith.constant 0 : index
      %c0_16 = arith.constant 0 : index
      %21 = vector.load %arg6[%c0_15, %c0_16] : memref<16x128xf32, #tpu.memory_space<vmem>>, vector<16x128xf32>
      tpu.vector_store %arg6[%c0_15, %c0_16], %20 {strides = array<i32>} : memref<16x128xf32, #tpu.memory_space<vmem>>, vector<16x128xf32>,
    } else {
    }
    return
  }
  func.func @transform_0(%arg0: i32, %arg1: i32, %arg2: i32) -> (i32, i32) {
    %c0_i32 = arith.constant 0 : i32
    return %arg0, %arg2 : i32, i32
  }
  func.func @transform_1(%arg0: i32, %arg1: i32, %arg2: i32) -> (i32, i32) {
    %c0_i32 = arith.constant 0 : i32
    return %arg2, %arg1 : i32, i32
  }
  func.func @transform_2(%arg0: i32, %arg1: i32, %arg2: i32) -> (i32, i32) {
    %c0_i32 = arith.constant 0 : i32
    %c0_i32_0 = arith.constant 0 : i32
    return %c0_i32, %arg1 : i32, i32
  }
  func.func @transform_3(%arg0: i32, %arg1: i32, %arg2: i32) -> (i32, i32) {
    %c0_i32 = arith.constant 0 : i32
    return %arg0, %arg1 : i32, i32
  }
}

module attributes {stable_mosaic.version = 11 : i64} {
  func.func @_mm_kernel(%arg0: i32, %arg1: i32, %arg2: i32, %arg3: memref<16x256xbf16, #tpu.memory_space<vmem>>, %arg4: memref<256x128xbf16, #tpu.memory_space<vmem>>, %arg5: memref<1x128xf32, #tpu.memory_space<vmem>>, %arg6: memref<16x128xf32, #tpu.memory_space<vmem>>, %arg7: memref<16x128xf32, #tpu.memory_space<vmem>>) attributes {dimension_semantics = [#tpu.dimension_semantics<parallel>, #tpu.dimension_semantics<parallel>, #tpu.dimension_semantics<arbitrary>], iteration_bounds = array<i64: 1, 1, 1>, scalar_prefetch = 0 : i64, scratch_operands = 1 : i64, tpu.core_type = #tpu.core_type<tc>, window_params = [{transform_indices = @transform_0, window_bounds = array<i64: 16, 256>}, {transform_indices = @transform_1, window_bounds = array<i64: 256, 128>}, {transform_indices = @transform_2, window_bounds = array<i64: 1, 128>}, {transform_indices = @transform_3, window_bounds = array<i64: 16, 128>}]} {
    %c0_i32 = arith.constant 0 : i32
    %0 = arith.cmpi eq, %arg2, %c0_i32 : i32
    %1 = arith.extui %0 : i1 to i32
    %c0_i32_0 = arith.constant 0 : i32
    %2 = arith.cmpi ne, %1, %c0_i32_0 : i32
    scf.if %2 {
      %cst_11 = arith.constant 0.000000e+00 : f32
      %14 = vector.broadcast %cst_11 : f32 to vector<16x128xf32>
      %c0_12 = arith.constant 0 : index
      %c0_13 = arith.constant 0 : index
      %15 = vector.load %arg7[%c0_12, %c0_13] : memref<16x128xf32, #tpu.memory_space<vmem>>, vector<16x128xf32>
      tpu.vector_store %arg7[%c0_12, %c0_13], %14 {strides = array<i32>} : memref<16x128xf32, #tpu.memory_space<vmem>>, vector<16x128xf32>,
    } else {
    }
    %c0 = arith.constant 0 : index
    %c0_1 = arith.constant 0 : index
    %3 = vector.load %arg3[%c0, %c0_1] : memref<16x256xbf16, #tpu.memory_space<vmem>>, vector<16x256xbf16>
    %cst = arith.constant 0.000000e+00 : bf16
    %4 = vector.broadcast %cst : bf16 to vector<16x256xbf16>
    %5 = arith.maximumf %3, %4 : vector<16x256xbf16>
    %c0_2 = arith.constant 0 : index
    %c0_3 = arith.constant 0 : index
    %6 = vector.load %arg7[%c0_2, %c0_3] : memref<16x128xf32, #tpu.memory_space<vmem>>, vector<16x128xf32>
    %c0_4 = arith.constant 0 : index
    %c0_5 = arith.constant 0 : index
    %7 = vector.load %arg4[%c0_4, %c0_5] : memref<256x128xbf16, #tpu.memory_space<vmem>>, vector<256x128xbf16>
    %cst_6 = arith.constant dense<0.000000e+00> : vector<16x128xf32>
    %8 = tpu.matmul %5, %7, %cst_6 {dimension_numbers = #tpu.dot_dimension_numbers<[1], [0], [0], [1], [0, 0, 1, 1], [], []>} : vector<16x256xbf16>, vector<256x128xbf16>, vector<16x128xf32> -> vector<16x128xf32>
    %9 = arith.addf %6, %8 : vector<16x128xf32>
    %c0_7 = arith.constant 0 : index
    %c0_8 = arith.constant 0 : index
    %10 = vector.load %arg7[%c0_7, %c0_8] : memref<16x128xf32, #tpu.memory_space<vmem>>, vector<16x128xf32>
    tpu.vector_store %arg7[%c0_7, %c0_8], %9 {strides = array<i32>} : memref<16x128xf32, #tpu.memory_space<vmem>>, vector<16x128xf32>,
    %c0_i32_9 = arith.constant 0 : i32
    %11 = arith.cmpi eq, %arg2, %c0_i32_9 : i32
    %12 = arith.extui %11 : i1 to i32
    %c0_i32_10 = arith.constant 0 : i32
    %13 = arith.cmpi ne, %12, %c0_i32_10 : i32
    scf.if %13 {
      %c0_11 = arith.constant 0 : index
      %c0_12 = arith.constant 0 : index
      %14 = vector.load %arg7[%c0_11, %c0_12] : memref<16x128xf32, #tpu.memory_space<vmem>>, vector<16x128xf32>
      %c0_13 = arith.constant 0 : index
      %c0_14 = arith.constant 0 : index
      %15 = vector.load %arg5[%c0_13, %c0_14] : memref<1x128xf32, #tpu.memory_space<vmem>>, vector<1x128xf32>
      %16 = vector.broadcast %15 : vector<1x128xf32> to vector<16x128xf32>
      %17 = arith.addf %14, %16 : vector<16x128xf32>
      %c0_15 = arith.constant 0 : index
      %c0_16 = arith.constant 0 : index
      %18 = vector.load %arg6[%c0_15, %c0_16] : memref<16x128xf32, #tpu.memory_space<vmem>>, vector<16x128xf32>
      tpu.vector_store %arg6[%c0_15, %c0_16], %17 {strides = array<i32>} : memref<16x128xf32, #tpu.memory_space<vmem>>, vector<16x128xf32>,
    } else {
    }
    return
  }
  func.func @transform_0(%arg0: i32, %arg1: i32, %arg2: i32) -> (i32, i32) {
    %c0_i32 = arith.constant 0 : i32
    return %arg0, %arg2 : i32, i32
  }
  func.func @transform_1(%arg0: i32, %arg1: i32, %arg2: i32) -> (i32, i32) {
    %c0_i32 = arith.constant 0 : i32
    return %arg2, %arg1 : i32, i32
  }
  func.func @transform_2(%arg0: i32, %arg1: i32, %arg2: i32) -> (i32, i32) {
    %c0_i32 = arith.constant 0 : i32
    %c0_i32_0 = arith.constant 0 : i32
    return %c0_i32, %arg1 : i32, i32
  }
  func.func @transform_3(%arg0: i32, %arg1: i32, %arg2: i32) -> (i32, i32) {
    %c0_i32 = arith.constant 0 : i32
    return %arg0, %arg1 : i32, i32
  }
}

module attributes {stable_mosaic.version = 11 : i64} {
  func.func @_mm_kernel(%arg0: i32, %arg1: i32, %arg2: i32, %arg3: memref<16x512xbf16, #tpu.memory_space<vmem>>, %arg4: memref<512x128xbf16, #tpu.memory_space<vmem>>, %arg5: memref<1x128xf32, #tpu.memory_space<vmem>>, %arg6: memref<16x128xf32, #tpu.memory_space<vmem>>, %arg7: memref<16x128xf32, #tpu.memory_space<vmem>>) attributes {dimension_semantics = [#tpu.dimension_semantics<parallel>, #tpu.dimension_semantics<parallel>, #tpu.dimension_semantics<arbitrary>], iteration_bounds = array<i64: 1, 1, 1>, scalar_prefetch = 0 : i64, scratch_operands = 1 : i64, tpu.core_type = #tpu.core_type<tc>, window_params = [{transform_indices = @transform_0, window_bounds = array<i64: 16, 512>}, {transform_indices = @transform_1, window_bounds = array<i64: 512, 128>}, {transform_indices = @transform_2, window_bounds = array<i64: 1, 128>}, {transform_indices = @transform_3, window_bounds = array<i64: 16, 128>}]} {
    %c0_i32 = arith.constant 0 : i32
    %0 = arith.cmpi eq, %arg2, %c0_i32 : i32
    %1 = arith.extui %0 : i1 to i32
    %c0_i32_0 = arith.constant 0 : i32
    %2 = arith.cmpi ne, %1, %c0_i32_0 : i32
    scf.if %2 {
      %cst_11 = arith.constant 0.000000e+00 : f32
      %14 = vector.broadcast %cst_11 : f32 to vector<16x128xf32>
      %c0_12 = arith.constant 0 : index
      %c0_13 = arith.constant 0 : index
      %15 = vector.load %arg7[%c0_12, %c0_13] : memref<16x128xf32, #tpu.memory_space<vmem>>, vector<16x128xf32>
      tpu.vector_store %arg7[%c0_12, %c0_13], %14 {strides = array<i32>} : memref<16x128xf32, #tpu.memory_space<vmem>>, vector<16x128xf32>,
    } else {
    }
    %c0 = arith.constant 0 : index
    %c0_1 = arith.constant 0 : index
    %3 = vector.load %arg3[%c0, %c0_1] : memref<16x512xbf16, #tpu.memory_space<vmem>>, vector<16x512xbf16>
    %cst = arith.constant 0.000000e+00 : bf16
    %4 = vector.broadcast %cst : bf16 to vector<16x512xbf16>
    %5 = arith.maximumf %3, %4 : vector<16x512xbf16>
    %c0_2 = arith.constant 0 : index
    %c0_3 = arith.constant 0 : index
    %6 = vector.load %arg7[%c0_2, %c0_3] : memref<16x128xf32, #tpu.memory_space<vmem>>, vector<16x128xf32>
    %c0_4 = arith.constant 0 : index
    %c0_5 = arith.constant 0 : index
    %7 = vector.load %arg4[%c0_4, %c0_5] : memref<512x128xbf16, #tpu.memory_space<vmem>>, vector<512x128xbf16>
    %cst_6 = arith.constant dense<0.000000e+00> : vector<16x128xf32>
    %8 = tpu.matmul %5, %7, %cst_6 {dimension_numbers = #tpu.dot_dimension_numbers<[1], [0], [0], [1], [0, 0, 1, 1], [], []>} : vector<16x512xbf16>, vector<512x128xbf16>, vector<16x128xf32> -> vector<16x128xf32>
    %9 = arith.addf %6, %8 : vector<16x128xf32>
    %c0_7 = arith.constant 0 : index
    %c0_8 = arith.constant 0 : index
    %10 = vector.load %arg7[%c0_7, %c0_8] : memref<16x128xf32, #tpu.memory_space<vmem>>, vector<16x128xf32>
    tpu.vector_store %arg7[%c0_7, %c0_8], %9 {strides = array<i32>} : memref<16x128xf32, #tpu.memory_space<vmem>>, vector<16x128xf32>,
    %c0_i32_9 = arith.constant 0 : i32
    %11 = arith.cmpi eq, %arg2, %c0_i32_9 : i32
    %12 = arith.extui %11 : i1 to i32
    %c0_i32_10 = arith.constant 0 : i32
    %13 = arith.cmpi ne, %12, %c0_i32_10 : i32
    scf.if %13 {
      %c0_11 = arith.constant 0 : index
      %c0_12 = arith.constant 0 : index
      %14 = vector.load %arg7[%c0_11, %c0_12] : memref<16x128xf32, #tpu.memory_space<vmem>>, vector<16x128xf32>
      %c0_13 = arith.constant 0 : index
      %c0_14 = arith.constant 0 : index
      %15 = vector.load %arg5[%c0_13, %c0_14] : memref<1x128xf32, #tpu.memory_space<vmem>>, vector<1x128xf32>
      %16 = vector.broadcast %15 : vector<1x128xf32> to vector<16x128xf32>
      %17 = arith.addf %14, %16 : vector<16x128xf32>
      %c0_15 = arith.constant 0 : index
      %c0_16 = arith.constant 0 : index
      %18 = vector.load %arg6[%c0_15, %c0_16] : memref<16x128xf32, #tpu.memory_space<vmem>>, vector<16x128xf32>
      tpu.vector_store %arg6[%c0_15, %c0_16], %17 {strides = array<i32>} : memref<16x128xf32, #tpu.memory_space<vmem>>, vector<16x128xf32>,
    } else {
    }
    return
  }
  func.func @transform_0(%arg0: i32, %arg1: i32, %arg2: i32) -> (i32, i32) {
    %c0_i32 = arith.constant 0 : i32
    return %arg0, %arg2 : i32, i32
  }
  func.func @transform_1(%arg0: i32, %arg1: i32, %arg2: i32) -> (i32, i32) {
    %c0_i32 = arith.constant 0 : i32
    return %arg2, %arg1 : i32, i32
  }
  func.func @transform_2(%arg0: i32, %arg1: i32, %arg2: i32) -> (i32, i32) {
    %c0_i32 = arith.constant 0 : i32
    %c0_i32_0 = arith.constant 0 : i32
    return %c0_i32, %arg1 : i32, i32
  }
  func.func @transform_3(%arg0: i32, %arg1: i32, %arg2: i32) -> (i32, i32) {
    %c0_i32 = arith.constant 0 : i32
    return %arg0, %arg1 : i32, i32
  }
}

module attributes {stable_mosaic.version = 11 : i64} {
  func.func @_mm_kernel(%arg0: i32, %arg1: i32, %arg2: i32, %arg3: memref<64x128xbf16, #tpu.memory_space<vmem>>, %arg4: memref<128x128xbf16, #tpu.memory_space<vmem>>, %arg5: memref<1x128xf32, #tpu.memory_space<vmem>>, %arg6: memref<64x128xf32, #tpu.memory_space<vmem>>, %arg7: memref<64x128xf32, #tpu.memory_space<vmem>>) attributes {dimension_semantics = [#tpu.dimension_semantics<parallel>, #tpu.dimension_semantics<parallel>, #tpu.dimension_semantics<arbitrary>], iteration_bounds = array<i64: 1, 1, 1>, scalar_prefetch = 0 : i64, scratch_operands = 1 : i64, tpu.core_type = #tpu.core_type<tc>, window_params = [{transform_indices = @transform_0, window_bounds = array<i64: 64, 128>}, {transform_indices = @transform_1, window_bounds = array<i64: 128, 128>}, {transform_indices = @transform_2, window_bounds = array<i64: 1, 128>}, {transform_indices = @transform_3, window_bounds = array<i64: 64, 128>}]} {
    %c0_i32 = arith.constant 0 : i32
    %0 = arith.cmpi eq, %arg2, %c0_i32 : i32
    %1 = arith.extui %0 : i1 to i32
    %c0_i32_0 = arith.constant 0 : i32
    %2 = arith.cmpi ne, %1, %c0_i32_0 : i32
    scf.if %2 {
      %cst_11 = arith.constant 0.000000e+00 : f32
      %14 = vector.broadcast %cst_11 : f32 to vector<64x128xf32>
      %c0_12 = arith.constant 0 : index
      %c0_13 = arith.constant 0 : index
      %15 = vector.load %arg7[%c0_12, %c0_13] : memref<64x128xf32, #tpu.memory_space<vmem>>, vector<64x128xf32>
      tpu.vector_store %arg7[%c0_12, %c0_13], %14 {strides = array<i32>} : memref<64x128xf32, #tpu.memory_space<vmem>>, vector<64x128xf32>,
    } else {
    }
    %c0 = arith.constant 0 : index
    %c0_1 = arith.constant 0 : index
    %3 = vector.load %arg3[%c0, %c0_1] : memref<64x128xbf16, #tpu.memory_space<vmem>>, vector<64x128xbf16>
    %cst = arith.constant 0.000000e+00 : bf16
    %4 = vector.broadcast %cst : bf16 to vector<64x128xbf16>
    %5 = arith.maximumf %3, %4 : vector<64x128xbf16>
    %c0_2 = arith.constant 0 : index
    %c0_3 = arith.constant 0 : index
    %6 = vector.load %arg7[%c0_2, %c0_3] : memref<64x128xf32, #tpu.memory_space<vmem>>, vector<64x128xf32>
    %c0_4 = arith.constant 0 : index
    %c0_5 = arith.constant 0 : index
    %7 = vector.load %arg4[%c0_4, %c0_5] : memref<128x128xbf16, #tpu.memory_space<vmem>>, vector<128x128xbf16>
    %cst_6 = arith.constant dense<0.000000e+00> : vector<64x128xf32>
    %8 = tpu.matmul %5, %7, %cst_6 {dimension_numbers = #tpu.dot_dimension_numbers<[1], [0], [0], [1], [0, 0, 1, 1], [], []>} : vector<64x128xbf16>, vector<128x128xbf16>, vector<64x128xf32> -> vector<64x128xf32>
    %9 = arith.addf %6, %8 : vector<64x128xf32>
    %c0_7 = arith.constant 0 : index
    %c0_8 = arith.constant 0 : index
    %10 = vector.load %arg7[%c0_7, %c0_8] : memref<64x128xf32, #tpu.memory_space<vmem>>, vector<64x128xf32>
    tpu.vector_store %arg7[%c0_7, %c0_8], %9 {strides = array<i32>} : memref<64x128xf32, #tpu.memory_space<vmem>>, vector<64x128xf32>,
    %c0_i32_9 = arith.constant 0 : i32
    %11 = arith.cmpi eq, %arg2, %c0_i32_9 : i32
    %12 = arith.extui %11 : i1 to i32
    %c0_i32_10 = arith.constant 0 : i32
    %13 = arith.cmpi ne, %12, %c0_i32_10 : i32
    scf.if %13 {
      %c0_11 = arith.constant 0 : index
      %c0_12 = arith.constant 0 : index
      %14 = vector.load %arg7[%c0_11, %c0_12] : memref<64x128xf32, #tpu.memory_space<vmem>>, vector<64x128xf32>
      %c0_13 = arith.constant 0 : index
      %c0_14 = arith.constant 0 : index
      %15 = vector.load %arg5[%c0_13, %c0_14] : memref<1x128xf32, #tpu.memory_space<vmem>>, vector<1x128xf32>
      %16 = vector.broadcast %15 : vector<1x128xf32> to vector<64x128xf32>
      %17 = arith.addf %14, %16 : vector<64x128xf32>
      %c0_15 = arith.constant 0 : index
      %c0_16 = arith.constant 0 : index
      %18 = vector.load %arg6[%c0_15, %c0_16] : memref<64x128xf32, #tpu.memory_space<vmem>>, vector<64x128xf32>
      tpu.vector_store %arg6[%c0_15, %c0_16], %17 {strides = array<i32>} : memref<64x128xf32, #tpu.memory_space<vmem>>, vector<64x128xf32>,
    } else {
    }
    return
  }
  func.func @transform_0(%arg0: i32, %arg1: i32, %arg2: i32) -> (i32, i32) {
    %c0_i32 = arith.constant 0 : i32
    return %arg0, %arg2 : i32, i32
  }
  func.func @transform_1(%arg0: i32, %arg1: i32, %arg2: i32) -> (i32, i32) {
    %c0_i32 = arith.constant 0 : i32
    return %arg2, %arg1 : i32, i32
  }
  func.func @transform_2(%arg0: i32, %arg1: i32, %arg2: i32) -> (i32, i32) {
    %c0_i32 = arith.constant 0 : i32
    %c0_i32_0 = arith.constant 0 : i32
    return %c0_i32, %arg1 : i32, i32
  }
  func.func @transform_3(%arg0: i32, %arg1: i32, %arg2: i32) -> (i32, i32) {
    %c0_i32 = arith.constant 0 : i32
    return %arg0, %arg1 : i32, i32
  }
}

module attributes {stable_mosaic.version = 11 : i64} {
  func.func @_bn_kernel(%arg0: memref<256x8xf32, #tpu.memory_space<vmem>>, %arg1: memref<1x8xf32, #tpu.memory_space<vmem>>, %arg2: memref<1x8xf32, #tpu.memory_space<vmem>>, %arg3: memref<256x8xf32, #tpu.memory_space<vmem>>) attributes {dimension_semantics = [], scalar_prefetch = 0 : i64, scratch_operands = 0 : i64, tpu.core_type = #tpu.core_type<tc>} {
    %c0 = arith.constant 0 : index
    %c0_0 = arith.constant 0 : index
    %0 = vector.load %arg0[%c0, %c0_0] : memref<256x8xf32, #tpu.memory_space<vmem>>, vector<256x8xf32>
    %cst = arith.constant dense<0.000000e+00> : vector<8xf32>
    %1 = vector.multi_reduction <add>, %0, %cst [0] : vector<256x8xf32> to vector<8xf32>
    %2 = vector.shape_cast %1 : vector<8xf32> to vector<1x8xf32>
    %cst_1 = arith.constant 2.560000e+02 : f32
    %3 = vector.broadcast %cst_1 : f32 to vector<1x8xf32>
    %4 = arith.divf %2, %3 : vector<1x8xf32>
    %5 = vector.broadcast %4 : vector<1x8xf32> to vector<256x8xf32>
    %6 = arith.subf %0, %5 : vector<256x8xf32>
    %7 = arith.mulf %6, %6 : vector<256x8xf32>
    %cst_2 = arith.constant dense<0.000000e+00> : vector<8xf32>
    %8 = vector.multi_reduction <add>, %7, %cst_2 [0] : vector<256x8xf32> to vector<8xf32>
    %9 = vector.shape_cast %8 : vector<8xf32> to vector<1x8xf32>
    %cst_3 = arith.constant 2.560000e+02 : f32
    %10 = vector.broadcast %cst_3 : f32 to vector<1x8xf32>
    %11 = arith.divf %9, %10 : vector<1x8xf32>
    %cst_4 = arith.constant 9.99999974E-6 : f32
    %12 = vector.broadcast %cst_4 : f32 to vector<1x8xf32>
    %13 = arith.addf %11, %12 : vector<1x8xf32>
    %14 = math.rsqrt %13 : vector<1x8xf32>
    %15 = vector.broadcast %4 : vector<1x8xf32> to vector<256x8xf32>
    %16 = arith.subf %0, %15 : vector<256x8xf32>
    %17 = vector.broadcast %14 : vector<1x8xf32> to vector<256x8xf32>
    %18 = arith.mulf %16, %17 : vector<256x8xf32>
    %c0_5 = arith.constant 0 : index
    %c0_6 = arith.constant 0 : index
    %19 = vector.load %arg1[%c0_5, %c0_6] : memref<1x8xf32, #tpu.memory_space<vmem>>, vector<1x8xf32>
    %20 = vector.broadcast %19 : vector<1x8xf32> to vector<256x8xf32>
    %21 = arith.mulf %18, %20 : vector<256x8xf32>
    %c0_7 = arith.constant 0 : index
    %c0_8 = arith.constant 0 : index
    %22 = vector.load %arg2[%c0_7, %c0_8] : memref<1x8xf32, #tpu.memory_space<vmem>>, vector<1x8xf32>
    %23 = vector.broadcast %22 : vector<1x8xf32> to vector<256x8xf32>
    %24 = arith.addf %21, %23 : vector<256x8xf32>
    %c0_9 = arith.constant 0 : index
    %c0_10 = arith.constant 0 : index
    %25 = vector.load %arg3[%c0_9, %c0_10] : memref<256x8xf32, #tpu.memory_space<vmem>>, vector<256x8xf32>
    tpu.vector_store %arg3[%c0_9, %c0_10], %24 {strides = array<i32>} : memref<256x8xf32, #tpu.memory_space<vmem>>, vector<256x8xf32>,
    return
  }
}

module attributes {stable_mosaic.version = 11 : i64} {
  func.func @_mm_kernel(%arg0: i32, %arg1: i32, %arg2: i32, %arg3: memref<256x128xbf16, #tpu.memory_space<vmem>>, %arg4: memref<128x128xbf16, #tpu.memory_space<vmem>>, %arg5: memref<1x128xf32, #tpu.memory_space<vmem>>, %arg6: memref<256x128xf32, #tpu.memory_space<vmem>>, %arg7: memref<256x128xf32, #tpu.memory_space<vmem>>) attributes {dimension_semantics = [#tpu.dimension_semantics<parallel>, #tpu.dimension_semantics<parallel>, #tpu.dimension_semantics<arbitrary>], iteration_bounds = array<i64: 1, 1, 1>, scalar_prefetch = 0 : i64, scratch_operands = 1 : i64, tpu.core_type = #tpu.core_type<tc>, window_params = [{transform_indices = @transform_0, window_bounds = array<i64: 256, 128>}, {transform_indices = @transform_1, window_bounds = array<i64: 128, 128>}, {transform_indices = @transform_2, window_bounds = array<i64: 1, 128>}, {transform_indices = @transform_3, window_bounds = array<i64: 256, 128>}]} {
    %c0_i32 = arith.constant 0 : i32
    %0 = arith.cmpi eq, %arg2, %c0_i32 : i32
    %1 = arith.extui %0 : i1 to i32
    %c0_i32_0 = arith.constant 0 : i32
    %2 = arith.cmpi ne, %1, %c0_i32_0 : i32
    scf.if %2 {
      %cst_11 = arith.constant 0.000000e+00 : f32
      %14 = vector.broadcast %cst_11 : f32 to vector<256x128xf32>
      %c0_12 = arith.constant 0 : index
      %c0_13 = arith.constant 0 : index
      %15 = vector.load %arg7[%c0_12, %c0_13] : memref<256x128xf32, #tpu.memory_space<vmem>>, vector<256x128xf32>
      tpu.vector_store %arg7[%c0_12, %c0_13], %14 {strides = array<i32>} : memref<256x128xf32, #tpu.memory_space<vmem>>, vector<256x128xf32>,
    } else {
    }
    %c0 = arith.constant 0 : index
    %c0_1 = arith.constant 0 : index
    %3 = vector.load %arg3[%c0, %c0_1] : memref<256x128xbf16, #tpu.memory_space<vmem>>, vector<256x128xbf16>
    %cst = arith.constant 0.000000e+00 : bf16
    %4 = vector.broadcast %cst : bf16 to vector<256x128xbf16>
    %5 = arith.maximumf %3, %4 : vector<256x128xbf16>
    %c0_2 = arith.constant 0 : index
    %c0_3 = arith.constant 0 : index
    %6 = vector.load %arg7[%c0_2, %c0_3] : memref<256x128xf32, #tpu.memory_space<vmem>>, vector<256x128xf32>
    %c0_4 = arith.constant 0 : index
    %c0_5 = arith.constant 0 : index
    %7 = vector.load %arg4[%c0_4, %c0_5] : memref<128x128xbf16, #tpu.memory_space<vmem>>, vector<128x128xbf16>
    %cst_6 = arith.constant dense<0.000000e+00> : vector<256x128xf32>
    %8 = tpu.matmul %5, %7, %cst_6 {dimension_numbers = #tpu.dot_dimension_numbers<[1], [0], [0], [1], [0, 0, 1, 1], [], []>} : vector<256x128xbf16>, vector<128x128xbf16>, vector<256x128xf32> -> vector<256x128xf32>
    %9 = arith.addf %6, %8 : vector<256x128xf32>
    %c0_7 = arith.constant 0 : index
    %c0_8 = arith.constant 0 : index
    %10 = vector.load %arg7[%c0_7, %c0_8] : memref<256x128xf32, #tpu.memory_space<vmem>>, vector<256x128xf32>
    tpu.vector_store %arg7[%c0_7, %c0_8], %9 {strides = array<i32>} : memref<256x128xf32, #tpu.memory_space<vmem>>, vector<256x128xf32>,
    %c0_i32_9 = arith.constant 0 : i32
    %11 = arith.cmpi eq, %arg2, %c0_i32_9 : i32
    %12 = arith.extui %11 : i1 to i32
    %c0_i32_10 = arith.constant 0 : i32
    %13 = arith.cmpi ne, %12, %c0_i32_10 : i32
    scf.if %13 {
      %c0_11 = arith.constant 0 : index
      %c0_12 = arith.constant 0 : index
      %14 = vector.load %arg7[%c0_11, %c0_12] : memref<256x128xf32, #tpu.memory_space<vmem>>, vector<256x128xf32>
      %c0_13 = arith.constant 0 : index
      %c0_14 = arith.constant 0 : index
      %15 = vector.load %arg5[%c0_13, %c0_14] : memref<1x128xf32, #tpu.memory_space<vmem>>, vector<1x128xf32>
      %16 = vector.broadcast %15 : vector<1x128xf32> to vector<256x128xf32>
      %17 = arith.addf %14, %16 : vector<256x128xf32>
      %18 = math.tanh %17 : vector<256x128xf32>
      %c0_15 = arith.constant 0 : index
      %c0_16 = arith.constant 0 : index
      %19 = vector.load %arg6[%c0_15, %c0_16] : memref<256x128xf32, #tpu.memory_space<vmem>>, vector<256x128xf32>
      tpu.vector_store %arg6[%c0_15, %c0_16], %18 {strides = array<i32>} : memref<256x128xf32, #tpu.memory_space<vmem>>, vector<256x128xf32>,
    } else {
    }
    return
  }
  func.func @transform_0(%arg0: i32, %arg1: i32, %arg2: i32) -> (i32, i32) {
    %c0_i32 = arith.constant 0 : i32
    return %arg0, %arg2 : i32, i32
  }
  func.func @transform_1(%arg0: i32, %arg1: i32, %arg2: i32) -> (i32, i32) {
    %c0_i32 = arith.constant 0 : i32
    return %arg2, %arg1 : i32, i32
  }
  func.func @transform_2(%arg0: i32, %arg1: i32, %arg2: i32) -> (i32, i32) {
    %c0_i32 = arith.constant 0 : i32
    %c0_i32_0 = arith.constant 0 : i32
    return %c0_i32, %arg1 : i32, i32
  }
  func.func @transform_3(%arg0: i32, %arg1: i32, %arg2: i32) -> (i32, i32) {
    %c0_i32 = arith.constant 0 : i32
    return %arg0, %arg1 : i32, i32
  }
}

</mosaic_0001>

<llo_original>
// kernel: pix2pix_forward.34
$region0: #{pix2pix_forward.34}
  #allocation0 [shape = 'u32[]', space=smem, size = 0x4, offset = 0x4, fixed_abs, tag = 'smem constant byte address 0x4 - core index']
  #allocation1 [shape = 'u32[72,128]{1,0:T(1,128)}', space=vmem, size = 0x9000, scoped, tag = 'internal scratch']
  %s0 = inlined_call_operand.vmem [shape: f32[64,16], index: 0, kind: input, shape index: {}]
  %s1 = inlined_call_operand.vmem [shape: f32[1,16], index: 1, kind: input, shape index: {}]
  %s2 = inlined_call_operand.vmem [shape: f32[1,16], index: 2, kind: input, shape index: {}]
  %s3 = inlined_call_operand.vmem [shape: f32[64,16], index: 3, kind: output, shape index: {}]
  %s4 = sld [smem:[#allocation0]]
  $region22: #{pix2pix_forward.34} parent=0
    _
  %s6 = ssub.s32 1, %s4
  %s7 = scalar_select 0, %s6, %s4
  // Predicated region
  $region2: #{pix2pix_forward.34} parent=0 // pred_check
    _
  $region3: #{pix2pix_forward.34} parent=0 // pred_check_branch
    %9 = sbr.rel (0) target = $region5
  $region4: #{pix2pix_forward.34} parent=0 // pred_region
    _
  $region5: #{pix2pix_forward.34} parent=0 // pred_fallthru
    _
  // Predicated region
  $region6: #{pix2pix_forward.34} parent=0 // pred_check
    _
  $region7: #{pix2pix_forward.34} parent=0 // pred_check_branch
    %11 = sbr.rel (0) target = $region9
  $region8: #{pix2pix_forward.34} parent=0 // pred_region
    _
  $region9: #{pix2pix_forward.34} parent=0 // pred_fallthru
    _
  // Predicated region
  $region10: #{pix2pix_forward.34} parent=0 // pred_check
    _
  $region11: #{pix2pix_forward.34} parent=0 // pred_check_branch
    %13 = sbr.rel (0) target = $region13
  $region12: #{pix2pix_forward.34} parent=0 // pred_region
    _
  $region13: #{pix2pix_forward.34} parent=0 // pred_fallthru
    _
  %v14 = vld [vmem:[%s0] sm:$0xff]
  %v15 = vld [vmem:[%s0 + $0x8] sm:$0xff]
  %v16 = vld [vmem:[%s0 + $0x10] sm:$0xff]
  %v17 = vld [vmem:[%s0 + $0x18] sm:$0xff]
  %v18 = vld [vmem:[%s0 + $0x20] sm:$0xff]
  %v19 = vld [vmem:[%s0 + $0x28] sm:$0xff]
  %v20 = vld [vmem:[%s0 + $0x30] sm:$0xff]
  %v21 = vld [vmem:[%s0 + $0x38] sm:$0xff]
  %vm22 = vcmask 130048
  %v23 = vsel %vm22, %v14, 0.0
  %v24 = vsel %vm22, %v15, 0.0
  %v25 = vadd.f32 %v23, %v24
  %v26 = vsel %vm22, %v16, 0.0
  %v27 = vadd.f32 %v25, %v26
  %v28 = vsel %vm22, %v17, 0.0
  %v29 = vadd.f32 %v27, %v28
  %v30 = vsel %vm22, %v18, 0.0
  %v31 = vadd.f32 %v29, %v30
  %v32 = vsel %vm22, %v19, 0.0
  %v33 = vadd.f32 %v31, %v32
  %v34 = vsel %vm22, %v20, 0.0
  %v35 = vadd.f32 %v33, %v34
  %v36 = vsel %vm22, %v21, 0.0
  %v37 = vadd.f32 %v35, %v36
  %v38 = vrot.slane %v37, 4
  %v39 = vadd.f32 %v37, %v38
  %v40 = vrot.slane %v39, 2
  %v41 = vadd.f32 %v39, %v40
  %v42 = vrot.slane %v41, 1
  %v43 = vadd.f32 %v41, %v42
  %v44 = vrcp.pop 64.0
  %v45 = vmul.f32 64.0, %v44
  %v46 = vsub.f32 1.0, %v45
  %v47 = vmul.f32 %v44, %v46
  %v48 = vadd.f32 %v44, %v47
  %vm49 = vweird.f32 %v44
  %v50 = vsel %vm49, %v44, %v48
  %v51 = vmul.f32 %v43, %v50
  %v52 = vsub.f32 %v14, %v51
  %v53 = vsub.f32 %v15, %v51
  %v54 = vsub.f32 %v16, %v51
  %v55 = vsub.f32 %v17, %v51
  %v56 = vsub.f32 %v18, %v51
  %v57 = vsub.f32 %v19, %v51
  %v58 = vsub.f32 %v20, %v51
  %v59 = vsub.f32 %v21, %v51
  %v60 = vmul.f32 %v52, %v52
  %v61 = vmul.f32 %v53, %v53
  %v62 = vmul.f32 %v54, %v54
  %v63 = vmul.f32 %v55, %v55
  %v64 = vmul.f32 %v56, %v56
  %v65 = vmul.f32 %v57, %v57
  %v66 = vmul.f32 %v58, %v58
  %v67 = vmul.f32 %v59, %v59
  %v68 = vsel %vm22, %v60, 0.0
  %v69 = vsel %vm22, %v61, 0.0
  %v70 = vadd.f32 %v68, %v69
  %v71 = vsel %vm22, %v62, 0.0
  %v72 = vadd.f32 %v70, %v71
  %v73 = vsel %vm22, %v63, 0.0
  %v74 = vadd.f32 %v72, %v73
  %v75 = vsel %vm22, %v64, 0.0
  %v76 = vadd.f32 %v74, %v75
  %v77 = vsel %vm22, %v65, 0.0
  %v78 = vadd.f32 %v76, %v77
  %v79 = vsel %vm22, %v66, 0.0
  %v80 = vadd.f32 %v78, %v79
  %v81 = vsel %vm22, %v67, 0.0
  %v82 = vadd.f32 %v80, %v81
  %v83 = vrot.slane %v82, 4
  %v84 = vadd.f32 %v82, %v83
  %v85 = vrot.slane %v84, 2
  %v86 = vadd.f32 %v84, %v85
  %v87 = vrot.slane %v86, 1
  %v88 = vadd.f32 %v86, %v87
  %v89 = vmul.f32 %v88, %v50
  %v90 = vadd.f32 %v89, 1e-05
  %v91 = vrsqrt.pop %v90
  %v92 = vmul.f32 %v91, %v90
  %v93 = vmul.f32 %v92, %v91
  %v94 = vmul.f32 0.5, %v93
  %v95 = vsub.f32 1.5, %v94
  %v96 = vmul.f32 %v91, %v95
  %vm97 = vweird.f32 %v90
  %vm98 = vweird.f32 %v91
  %vm99 = vmor %vm97, %vm98
  %v100 = vsel %vm99, %v91, %v96
  %v101 = vmul.f32 %v52, %v100
  %v102 = vmul.f32 %v53, %v100
  %v103 = vmul.f32 %v54, %v100
  %v104 = vmul.f32 %v55, %v100
  %v105 = vmul.f32 %v56, %v100
  %v106 = vmul.f32 %v57, %v100
  %v107 = vmul.f32 %v58, %v100
  %v108 = vmul.f32 %v59, %v100
  %v109 = vld [vmem:[%s1] sm:$0x1]
  %v111 = vperm.slane %v109, 0
  %v113 = vmul.f32 %v101, %v111
  %v114 = vmul.f32 %v102, %v111
  %v115 = vmul.f32 %v103, %v111
  %v116 = vmul.f32 %v104, %v111
  %v117 = vmul.f32 %v105, %v111
  %v118 = vmul.f32 %v106, %v111
  %v119 = vmul.f32 %v107, %v111
  %v120 = vmul.f32 %v108, %v111
  %v121 = vld [vmem:[%s2] sm:$0x1]
  %v123 = vperm.slane %v121, 0
  %v125 = vadd.f32 %v113, %v123
  %v126 = vadd.f32 %v114, %v123
  %v127 = vadd.f32 %v115, %v123
  %v128 = vadd.f32 %v116, %v123
  %v129 = vadd.f32 %v117, %v123
  %v130 = vadd.f32 %v118, %v123
  %v131 = vadd.f32 %v119, %v123
  %v132 = vadd.f32 %v120, %v123
  %133 = vst.msk [vmem:[%s3] sm:$0xff] %vm22, %v125
  %134 = vst.msk [vmem:[%s3 + $0x8] sm:$0xff] %vm22, %v126
  %135 = vst.msk [vmem:[%s3 + $0x10] sm:$0xff] %vm22, %v127
  %136 = vst.msk [vmem:[%s3 + $0x18] sm:$0xff] %vm22, %v128
  %137 = vst.msk [vmem:[%s3 + $0x20] sm:$0xff] %vm22, %v129
  %138 = vst.msk [vmem:[%s3 + $0x28] sm:$0xff] %vm22, %v130
  %139 = vst.msk [vmem:[%s3 + $0x30] sm:$0xff] %vm22, %v131
  %140 = vst.msk [vmem:[%s3 + $0x38] sm:$0xff] %vm22, %v132
  // Predicated region
  $region14: #{pix2pix_forward.34} parent=0 // pred_check
    _
  $region15: #{pix2pix_forward.34} parent=0 // pred_check_branch
    %142 = sbr.rel (0) target = $region17
  $region16: #{pix2pix_forward.34} parent=0 // pred_region
    _
  $region17: #{pix2pix_forward.34} parent=0 // pred_fallthru
    _
  // Predicated region
  $region18: #{pix2pix_forward.34} parent=0 // pred_check
    _
  $region19: #{pix2pix_forward.34} parent=0 // pred_check_branch
    %144 = sbr.rel (0) target = $region21
  $region20: #{pix2pix_forward.34} parent=0 // pred_region
    _
  $region21: #{pix2pix_forward.34} parent=0 // pred_fallthru
    _

// kernel: pix2pix_forward.32
$region0: #{pix2pix_forward.32}
  #allocation0 [shape = 'u32[]', space=smem, size = 0x4, offset = 0x4, fixed_abs, tag = 'smem constant byte address 0x4 - core index']
  #allocation1 [shape = 'u32[72,128]{1,0:T(1,128)}', space=vmem, size = 0x9000, scoped, tag = 'internal scratch']
  #allocation2 [shape = 'f32[256,128]{1,0:T(8,128)}', space=vmem, size = 0x20000, scoped, tag = 'scratch operand']
  %s0 = inlined_call_operand.vmem [shape: bf16[256,128], index: 0, kind: input, shape index: {}]
  %s1 = inlined_call_operand.vmem [shape: bf16[128,128], index: 1, kind: input, shape index: {}]
  %s2 = inlined_call_operand.vmem [shape: f32[1,128], index: 2, kind: input, shape index: {}]
  %s3 = inlined_call_operand.vmem [shape: f32[256,128], index: 3, kind: output, shape index: {}]
  %s4 = sld [smem:[#allocation0]]
  $region30: #{pix2pix_forward.32} parent=0
    _
  %s6 = ssub.s32 1, %s4
  %s7 = scalar_select 0, %s6, %s4
  // Predicated region
  $region2: #{pix2pix_forward.32} parent=0 // pred_check
    _
  $region3: #{pix2pix_forward.32} parent=0 // pred_check_branch
    %9 = sbr.rel (0) target = $region5
  $region4: #{pix2pix_forward.32} parent=0 // pred_region
    _
  $region5: #{pix2pix_forward.32} parent=0 // pred_fallthru
    _
  // Predicated region
  $region6: #{pix2pix_forward.32} parent=0 // pred_check
    _
  $region7: #{pix2pix_forward.32} parent=0 // pred_check_branch
    %11 = sbr.rel (0) target = $region9
  $region8: #{pix2pix_forward.32} parent=0 // pred_region
    _
  $region9: #{pix2pix_forward.32} parent=0 // pred_fallthru
    _
  // Predicated region
  $region10: #{pix2pix_forward.32} parent=0 // pred_check
    _
  $region11: #{pix2pix_forward.32} parent=0 // pred_check_branch
    %13 = sbr.rel (0) target = $region13
  $region12: #{pix2pix_forward.32} parent=0 // pred_region
    _
  $region13: #{pix2pix_forward.32} parent=0 // pred_fallthru
    _
  %p14 = scmp.eq.s32.totalorder 0, 0
  // Predicated region
  $region14: #{pix2pix_forward.32} parent=0 // pred_check
    %p15 = pneg %p14
  $region15: #{pix2pix_forward.32} parent=0 // pred_check_branch
    %17 = sbr.rel (%p15) target = $region17
  $region16: #{pix2pix_forward.32} parent=0 // pred_region
    %18 = vst [vmem:[#allocation2] sm:$0xff] 0.0
    %19 = vst [vmem:[#allocation2 + $0x8] sm:$0xff] 0.0
    %20 = vst [vmem:[#allocation2 + $0x10] sm:$0xff] 0.0
    %21 = vst [vmem:[#allocation2 + $0x18] sm:$0xff] 0.0
    %22 = vst [vmem:[#allocation2 + $0x20] sm:$0xff] 0.0
    %23 = vst [vmem:[#allocation2 + $0x28] sm:$0xff] 0.0
    %24 = vst [vmem:[#allocation2 + $0x30] sm:$0xff] 0.0
    %25 = vst [vmem:[#allocation2 + $0x38] sm:$0xff] 0.0
    %26 = vst [vmem:[#allocation2 + $0x40] sm:$0xff] 0.0
    %27 = vst [vmem:[#allocation2 + $0x48] sm:$0xff] 0.0
    %28 = vst [vmem:[#allocation2 + $0x50] sm:$0xff] 0.0
    %29 = vst [vmem:[#allocation2 + $0x58] sm:$0xff] 0.0
    %30 = vst [vmem:[#allocation2 + $0x60] sm:$0xff] 0.0
    %31 = vst [vmem:[#allocation2 + $0x68] sm:$0xff] 0.0
    %32 = vst [vmem:[#allocation2 + $0x70] sm:$0xff] 0.0
    %33 = vst [vmem:[#allocation2 + $0x78] sm:$0xff] 0.0
    %34 = vst [vmem:[#allocation2 + $0x80] sm:$0xff] 0.0
    %35 = vst [vmem:[#allocation2 + $0x88] sm:$0xff] 0.0
    %36 = vst [vmem:[#allocation2 + $0x90] sm:$0xff] 0.0
    %37 = vst [vmem:[#allocation2 + $0x98] sm:$0xff] 0.0
    %38 = vst [vmem:[#allocation2 + $0xa0] sm:$0xff] 0.0
    %39 = vst [vmem:[#allocation2 + $0xa8] sm:$0xff] 0.0
    %40 = vst [vmem:[#allocation2 + $0xb0] sm:$0xff] 0.0
    %41 = vst [vmem:[#allocation2 + $0xb8] sm:$0xff] 0.0
    %42 = vst [vmem:[#allocation2 + $0xc0] sm:$0xff] 0.0
    %43 = vst [vmem:[#allocation2 + $0xc8] sm:$0xff] 0.0
    %44 = vst [vmem:[#allocation2 + $0xd0] sm:$0xff] 0.0
    %45 = vst [vmem:[#allocation2 + $0xd8] sm:$0xff] 0.0
    %46 = vst [vmem:[#allocation2 + $0xe0] sm:$0xff] 0.0
    %47 = vst [vmem:[#allocation2 + $0xe8] sm:$0xff] 0.0
    %48 = vst [vmem:[#allocation2 + $0xf0] sm:$0xff] 0.0
    %49 = vst [vmem:[#allocation2 + $0xf8] sm:$0xff] 0.0
  $region17: #{pix2pix_forward.32} parent=0 // pred_fallthru
    _
  %v50 = vld [vmem:[%s0] sm:$0xf]
  %v51 = vld [vmem:[%s0 + $0x4] sm:$0xf]
  %v52 = vld [vmem:[%s0 + $0x8] sm:$0xf]
  %v53 = vld [vmem:[%s0 + $0xc] sm:$0xf]
  %v54 = vld [vmem:[%s0 + $0x10] sm:$0xf]
  %v55 = vld [vmem:[%s0 + $0x14] sm:$0xf]
  %v56 = vld [vmem:[%s0 + $0x18] sm:$0xf]
  %v57 = vld [vmem:[%s0 + $0x1c] sm:$0xf]
  %v58 = vld [vmem:[%s0 + $0x20] sm:$0xf]
  %v59 = vld [vmem:[%s0 + $0x24] sm:$0xf]
  %v60 = vld [vmem:[%s0 + $0x28] sm:$0xf]
  %v61 = vld [vmem:[%s0 + $0x2c] sm:$0xf]
  %v62 = vld [vmem:[%s0 + $0x30] sm:$0xf]
  %v63 = vld [vmem:[%s0 + $0x34] sm:$0xf]
  %v64 = vld [vmem:[%s0 + $0x38] sm:$0xf]
  %v65 = vld [vmem:[%s0 + $0x3c] sm:$0xf]
  %v66 = vld [vmem:[%s0 + $0x40] sm:$0xf]
  %v67 = vld [vmem:[%s0 + $0x44] sm:$0xf]
  %v68 = vld [vmem:[%s0 + $0x48] sm:$0xf]
  %v69 = vld [vmem:[%s0 + $0x4c] sm:$0xf]
  %v70 = vld [vmem:[%s0 + $0x50] sm:$0xf]
  %v71 = vld [vmem:[%s0 + $0x54] sm:$0xf]
  %v72 = vld [vmem:[%s0 + $0x58] sm:$0xf]
  %v73 = vld [vmem:[%s0 + $0x5c] sm:$0xf]
  %v74 = vld [vmem:[%s0 + $0x60] sm:$0xf]
  %v75 = vld [vmem:[%s0 + $0x64] sm:$0xf]
  %v76 = vld [vmem:[%s0 + $0x68] sm:$0xf]
  %v77 = vld [vmem:[%s0 + $0x6c] sm:$0xf]
  %v78 = vld [vmem:[%s0 + $0x70] sm:$0xf]
  %v79 = vld [vmem:[%s0 + $0x74] sm:$0xf]
  %v80 = vld [vmem:[%s0 + $0x78] sm:$0xf]
  %v81 = vld [vmem:[%s0 + $0x7c] sm:$0xf]
  %v82 = vld [vmem:[#allocation2] sm:$0xff]
  %v83 = vld [vmem:[#allocation2 + $0x8] sm:$0xff]
  %v84 = vld [vmem:[#allocation2 + $0x10] sm:$0xff]
  %v85 = vld [vmem:[#allocation2 + $0x18] sm:$0xff]
  %v86 = vld [vmem:[#allocation2 + $0x20] sm:$0xff]
  %v87 = vld [vmem:[#allocation2 + $0x28] sm:$0xff]
  %v88 = vld [vmem:[#allocation2 + $0x30] sm:$0xff]
  %v89 = vld [vmem:[#allocation2 + $0x38] sm:$0xff]
  %v90 = vld [vmem:[#allocation2 + $0x40] sm:$0xff]
  %v91 = vld [vmem:[#allocation2 + $0x48] sm:$0xff]
  %v92 = vld [vmem:[#allocation2 + $0x50] sm:$0xff]
  %v93 = vld [vmem:[#allocation2 + $0x58] sm:$0xff]
  %v94 = vld [vmem:[#allocation2 + $0x60] sm:$0xff]
  %v95 = vld [vmem:[#allocation2 + $0x68] sm:$0xff]
  %v96 = vld [vmem:[#allocation2 + $0x70] sm:$0xff]
  %v97 = vld [vmem:[#allocation2 + $0x78] sm:$0xff]
  %v98 = vld [vmem:[#allocation2 + $0x80] sm:$0xff]
  %v99 = vld [vmem:[#allocation2 + $0x88] sm:$0xff]
  %v100 = vld [vmem:[#allocation2 + $0x90] sm:$0xff]
  %v101 = vld [vmem:[#allocation2 + $0x98] sm:$0xff]
  %v102 = vld [vmem:[#allocation2 + $0xa0] sm:$0xff]
  %v103 = vld [vmem:[#allocation2 + $0xa8] sm:$0xff]
  %v104 = vld [vmem:[#allocation2 + $0xb0] sm:$0xff]
  %v105 = vld [vmem:[#allocation2 + $0xb8] sm:$0xff]
  %v106 = vld [vmem:[#allocation2 + $0xc0] sm:$0xff]
  %v107 = vld [vmem:[#allocation2 + $0xc8] sm:$0xff]
  %v108 = vld [vmem:[#allocation2 + $0xd0] sm:$0xff]
  %v109 = vld [vmem:[#allocation2 + $0xd8] sm:$0xff]
  %v110 = vld [vmem:[#allocation2 + $0xe0] sm:$0xff]
  %v111 = vld [vmem:[#allocation2 + $0xe8] sm:$0xff]
  %v112 = vld [vmem:[#allocation2 + $0xf0] sm:$0xff]
  %v113 = vld [vmem:[#allocation2 + $0xf8] sm:$0xff]
  %v114 = vld [vmem:[%s1] sm:$0xf]
  %v115 = vld [vmem:[%s1 + $0x4] sm:$0xf]
  %v116 = vld [vmem:[%s1 + $0x8] sm:$0xf]
  %v117 = vld [vmem:[%s1 + $0xc] sm:$0xf]
  %v118 = vld [vmem:[%s1 + $0x10] sm:$0xf]
  %v119 = vld [vmem:[%s1 + $0x14] sm:$0xf]
  %v120 = vld [vmem:[%s1 + $0x18] sm:$0xf]
  %v121 = vld [vmem:[%s1 + $0x1c] sm:$0xf]
  %v122 = vld [vmem:[%s1 + $0x20] sm:$0xf]
  %v123 = vld [vmem:[%s1 + $0x24] sm:$0xf]
  %v124 = vld [vmem:[%s1 + $0x28] sm:$0xf]
  %v125 = vld [vmem:[%s1 + $0x2c] sm:$0xf]
  %v126 = vld [vmem:[%s1 + $0x30] sm:$0xf]
  %v127 = vld [vmem:[%s1 + $0x34] sm:$0xf]
  %v128 = vld [vmem:[%s1 + $0x38] sm:$0xf]
  %v129 = vld [vmem:[%s1 + $0x3c] sm:$0xf]
  %v162 = vunpack.c.l.b16 %v50
  %v163 = vunpack.c.l.b16 %v51
  %v164 = vunpack.c.l.b16 %v52
  %v165 = vunpack.c.l.b16 %v53
  %v166 = vunpack.c.l.b16 %v54
  %v167 = vunpack.c.l.b16 %v55
  %v168 = vunpack.c.l.b16 %v56
  %v169 = vunpack.c.l.b16 %v57
  %v170 = vunpack.c.l.b16 %v58
  %v171 = vunpack.c.l.b16 %v59
  %v172 = vunpack.c.l.b16 %v60
  %v173 = vunpack.c.l.b16 %v61
  %v174 = vunpack.c.l.b16 %v62
  %v175 = vunpack.c.l.b16 %v63
  %v176 = vunpack.c.l.b16 %v64
  %v177 = vunpack.c.l.b16 %v65
  %v178 = vunpack.c.l.b16 %v66
  %v179 = vunpack.c.l.b16 %v67
  %v180 = vunpack.c.l.b16 %v68
  %v181 = vunpack.c.l.b16 %v69
  %v182 = vunpack.c.l.b16 %v70
  %v183 = vunpack.c.l.b16 %v71
  %v184 = vunpack.c.l.b16 %v72
  %v185 = vunpack.c.l.b16 %v73
  %v186 = vunpack.c.l.b16 %v74
  %v187 = vunpack.c.l.b16 %v75
  %v188 = vunpack.c.l.b16 %v76
  %v189 = vunpack.c.l.b16 %v77
  %v190 = vunpack.c.l.b16 %v78
  %v191 = vunpack.c.l.b16 %v79
  %v192 = vunpack.c.l.b16 %v80
  %v193 = vunpack.c.l.b16 %v81
  %v194 = vpack.c.b16 %v163, %v162
  %v195 = vpack.c.b16 %v165, %v164
  %v196 = vpack.c.b16 %v167, %v166
  %v197 = vpack.c.b16 %v169, %v168
  %v198 = vpack.c.b16 %v171, %v170
  %v199 = vpack.c.b16 %v173, %v172
  %v200 = vpack.c.b16 %v175, %v174
  %v201 = vpack.c.b16 %v177, %v176
  %v202 = vpack.c.b16 %v179, %v178
  %v203 = vpack.c.b16 %v181, %v180
  %v204 = vpack.c.b16 %v183, %v182
  %v205 = vpack.c.b16 %v185, %v184
  %v206 = vpack.c.b16 %v187, %v186
  %v207 = vpack.c.b16 %v189, %v188
  %v208 = vpack.c.b16 %v191, %v190
  %v209 = vpack.c.b16 %v193, %v192
  %v242 = vunpack.c.l.b16 %v114
  %v243 = vunpack.c.l.b16 %v115
  %v244 = vunpack.c.l.b16 %v116
  %v245 = vunpack.c.l.b16 %v117
  %v246 = vunpack.c.l.b16 %v118
  %v247 = vunpack.c.l.b16 %v119
  %v248 = vunpack.c.l.b16 %v120
  %v249 = vunpack.c.l.b16 %v121
  %v250 = vunpack.c.l.b16 %v122
  %v251 = vunpack.c.l.b16 %v123
  %v252 = vunpack.c.l.b16 %v124
  %v253 = vunpack.c.l.b16 %v125
  %v254 = vunpack.c.l.b16 %v126
  %v255 = vunpack.c.l.b16 %v127
  %v256 = vunpack.c.l.b16 %v128
  %v257 = vunpack.c.l.b16 %v129
  %v258 = vpack.c.b16 %v243, %v242
  %v259 = vpack.c.b16 %v245, %v244
  %v260 = vpack.c.b16 %v247, %v246
  %v261 = vpack.c.b16 %v249, %v248
  %v262 = vpack.c.b16 %v251, %v250
  %v263 = vpack.c.b16 %v253, %v252
  %v264 = vpack.c.b16 %v255, %v254
  %v265 = vpack.c.b16 %v257, %v256
  %274 = vmatpush.bf16.msra.mxu0 %v265
  %275 = vmatpush.bf16.msra.mxu0 %v264
  %276 = vmatpush.bf16.msra.mxu0 %v263
  %277 = vmatpush.bf16.msra.mxu0 %v262
  %278 = vmatpush.bf16.msra.mxu0 %v261
  %279 = vmatpush.bf16.msra.mxu0 %v260
  %280 = vmatpush.bf16.msra.mxu0 %v259
  %281 = vmatpush.bf16.msra.mxu0 %v258
  %282 = vmatmul.bf16.gmra.mxu0 %v194
  %v283 = vpop.f32.mrf.mxu0
  %v284 = vadd.f32 0.0, %v283
  %v285 = vpop.f32.mrf.mxu0
  %v286 = vadd.f32 0.0, %v285
  %287 = vmatmul.bf16.gmra.mxu0 %v195
  %v288 = vpop.f32.mrf.mxu0
  %v289 = vadd.f32 0.0, %v288
  %v290 = vpop.f32.mrf.mxu0
  %v291 = vadd.f32 0.0, %v290
  %292 = vmatmul.bf16.gmra.mxu0 %v196
  %v293 = vpop.f32.mrf.mxu0
  %v294 = vadd.f32 0.0, %v293
  %v295 = vpop.f32.mrf.mxu0
  %v296 = vadd.f32 0.0, %v295
  %297 = vmatmul.bf16.gmra.mxu0 %v197
  %v298 = vpop.f32.mrf.mxu0
  %v299 = vadd.f32 0.0, %v298
  %v300 = vpop.f32.mrf.mxu0
  %v301 = vadd.f32 0.0, %v300
  %302 = vmatmul.bf16.gmra.mxu0 %v198
  %v303 = vpop.f32.mrf.mxu0
  %v304 = vadd.f32 0.0, %v303
  %v305 = vpop.f32.mrf.mxu0
  %v306 = vadd.f32 0.0, %v305
  %307 = vmatmul.bf16.gmra.mxu0 %v199
  %v308 = vpop.f32.mrf.mxu0
  %v309 = vadd.f32 0.0, %v308
  %v310 = vpop.f32.mrf.mxu0
  %v311 = vadd.f32 0.0, %v310
  %312 = vmatmul.bf16.gmra.mxu0 %v200
  %v313 = vpop.f32.mrf.mxu0
  %v314 = vadd.f32 0.0, %v313
  %v315 = vpop.f32.mrf.mxu0
  %v316 = vadd.f32 0.0, %v315
  %317 = vmatmul.bf16.gmra.mxu0 %v201
  %v318 = vpop.f32.mrf.mxu0
  %v319 = vadd.f32 0.0, %v318
  %v320 = vpop.f32.mrf.mxu0
  %v321 = vadd.f32 0.0, %v320
  %322 = vmatmul.bf16.gmra.mxu0 %v202
  %v323 = vpop.f32.mrf.mxu0
  %v324 = vadd.f32 0.0, %v323
  %v325 = vpop.f32.mrf.mxu0
  %v326 = vadd.f32 0.0, %v325
  %327 = vmatmul.bf16.gmra.mxu0 %v203
  %v328 = vpop.f32.mrf.mxu0
  %v329 = vadd.f32 0.0, %v328
  %v330 = vpop.f32.mrf.mxu0
  %v331 = vadd.f32 0.0, %v330
  %332 = vmatmul.bf16.gmra.mxu0 %v204
  %v333 = vpop.f32.mrf.mxu0
  %v334 = vadd.f32 0.0, %v333
  %v335 = vpop.f32.mrf.mxu0
  %v336 = vadd.f32 0.0, %v335
  %337 = vmatmul.bf16.gmra.mxu0 %v205
  %v338 = vpop.f32.mrf.mxu0
  %v339 = vadd.f32 0.0, %v338
  %v340 = vpop.f32.mrf.mxu0
  %v341 = vadd.f32 0.0, %v340
  %342 = vmatmul.bf16.gmra.mxu0 %v206
  %v343 = vpop.f32.mrf.mxu0
  %v344 = vadd.f32 0.0, %v343
  %v345 = vpop.f32.mrf.mxu0
  %v346 = vadd.f32 0.0, %v345
  %347 = vmatmul.bf16.gmra.mxu0 %v207
  %v348 = vpop.f32.mrf.mxu0
  %v349 = vadd.f32 0.0, %v348
  %v350 = vpop.f32.mrf.mxu0
  %v351 = vadd.f32 0.0, %v350
  %352 = vmatmul.bf16.gmra.mxu0 %v208
  %v353 = vpop.f32.mrf.mxu0
  %v354 = vadd.f32 0.0, %v353
  %v355 = vpop.f32.mrf.mxu0
  %v356 = vadd.f32 0.0, %v355
  %357 = vmatmul.bf16.gmra.mxu0 %v209
  %v358 = vpop.f32.mrf.mxu0
  %v359 = vadd.f32 0.0, %v358
  %v360 = vpop.f32.mrf.mxu0
  %v361 = vadd.f32 0.0, %v360
  %362 = vdwg.mxu0
  %v363 = vadd.f32 %v82, %v284
  %v364 = vadd.f32 %v83, %v286
  %v365 = vadd.f32 %v84, %v289
  %v366 = vadd.f32 %v85, %v291
  %v367 = vadd.f32 %v86, %v294
  %v368 = vadd.f32 %v87, %v296
  %v369 = vadd.f32 %v88, %v299
  %v370 = vadd.f32 %v89, %v301
  %v371 = vadd.f32 %v90, %v304
  %v372 = vadd.f32 %v91, %v306
  %v373 = vadd.f32 %v92, %v309
  %v374 = vadd.f32 %v93, %v311
  %v375 = vadd.f32 %v94, %v314
  %v376 = vadd.f32 %v95, %v316
  %v377 = vadd.f32 %v96, %v319
  %v378 = vadd.f32 %v97, %v321
  %v379 = vadd.f32 %v98, %v324
  %v380 = vadd.f32 %v99, %v326
  %v381 = vadd.f32 %v100, %v329
  %v382 = vadd.f32 %v101, %v331
  %v383 = vadd.f32 %v102, %v334
  %v384 = vadd.f32 %v103, %v336
  %v385 = vadd.f32 %v104, %v339
  %v386 = vadd.f32 %v105, %v341
  %v387 = vadd.f32 %v106, %v344
  %v388 = vadd.f32 %v107, %v346
  %v389 = vadd.f32 %v108, %v349
  %v390 = vadd.f32 %v109, %v351
  %v391 = vadd.f32 %v110, %v354
  %v392 = vadd.f32 %v111, %v356
  %v393 = vadd.f32 %v112, %v359
  %v394 = vadd.f32 %v113, %v361
  %395 = vst [vmem:[#allocation2] sm:$0xff] %v363
  %396 = vst [vmem:[#allocation2 + $0x8] sm:$0xff] %v364
  %397 = vst [vmem:[#allocation2 + $0x10] sm:$0xff] %v365
  %398 = vst [vmem:[#allocation2 + $0x18] sm:$0xff] %v366
  %399 = vst [vmem:[#allocation2 + $0x20] sm:$0xff] %v367
  %400 = vst [vmem:[#allocation2 + $0x28] sm:$0xff] %v368
  %401 = vst [vmem:[#allocation2 + $0x30] sm:$0xff] %v369
  %402 = vst [vmem:[#allocation2 + $0x38] sm:$0xff] %v370
  %403 = vst [vmem:[#allocation2 + $0x40] sm:$0xff] %v371
  %404 = vst [vmem:[#allocation2 + $0x48] sm:$0xff] %v372
  %405 = vst [vmem:[#allocation2 + $0x50] sm:$0xff] %v373
  %406 = vst [vmem:[#allocation2 + $0x58] sm:$0xff] %v374
  %407 = vst [vmem:[#allocation2 + $0x60] sm:$0xff] %v375
  %408 = vst [vmem:[#allocation2 + $0x68] sm:$0xff] %v376
  %409 = vst [vmem:[#allocation2 + $0x70] sm:$0xff] %v377
  %410 = vst [vmem:[#allocation2 + $0x78] sm:$0xff] %v378
  %411 = vst [vmem:[#allocation2 + $0x80] sm:$0xff] %v379
  %412 = vst [vmem:[#allocation2 + $0x88] sm:$0xff] %v380
  %413 = vst [vmem:[#allocation2 + $0x90] sm:$0xff] %v381
  %414 = vst [vmem:[#allocation2 + $0x98] sm:$0xff] %v382
  %415 = vst [vmem:[#allocation2 + $0xa0] sm:$0xff] %v383
  %416 = vst [vmem:[#allocation2 + $0xa8] sm:$0xff] %v384
  %417 = vst [vmem:[#allocation2 + $0xb0] sm:$0xff] %v385
  %418 = vst [vmem:[#allocation2 + $0xb8] sm:$0xff] %v386
  %419 = vst [vmem:[#allocation2 + $0xc0] sm:$0xff] %v387
  %420 = vst [vmem:[#allocation2 + $0xc8] sm:$0xff] %v388
  %421 = vst [vmem:[#allocation2 + $0xd0] sm:$0xff] %v389
  %422 = vst [vmem:[#allocation2 + $0xd8] sm:$0xff] %v390
  %423 = vst [vmem:[#allocation2 + $0xe0] sm:$0xff] %v391
  %424 = vst [vmem:[#allocation2 + $0xe8] sm:$0xff] %v392
  %425 = vst [vmem:[#allocation2 + $0xf0] sm:$0xff] %v393
  %426 = vst [vmem:[#allocation2 + $0xf8] sm:$0xff] %v394
  // Predicated region
  $region18: #{pix2pix_forward.32} parent=0 // pred_check
    %p427 = pneg %p14
  $region19: #{pix2pix_forward.32} parent=0 // pred_check_branch
    %429 = sbr.rel (%p427) target = $region21
  $region20: #{pix2pix_forward.32} parent=0 // pred_region
    %v430 = vld [vmem:[#allocation2] sm:$0xff]
    %v431 = vld [vmem:[#allocation2 + $0x8] sm:$0xff]
    %v432 = vld [vmem:[#allocation2 + $0x10] sm:$0xff]
    %v433 = vld [vmem:[#allocation2 + $0x18] sm:$0xff]
    %v434 = vld [vmem:[#allocation2 + $0x20] sm:$0xff]
    %v435 = vld [vmem:[#allocation2 + $0x28] sm:$0xff]
    %v436 = vld [vmem:[#allocation2 + $0x30] sm:$0xff]
    %v437 = vld [vmem:[#allocation2 + $0x38] sm:$0xff]
    %v438 = vld [vmem:[#allocation2 + $0x40] sm:$0xff]
    %v439 = vld [vmem:[#allocation2 + $0x48] sm:$0xff]
    %v440 = vld [vmem:[#allocation2 + $0x50] sm:$0xff]
    %v441 = vld [vmem:[#allocation2 + $0x58] sm:$0xff]
    %v442 = vld [vmem:[#allocation2 + $0x60] sm:$0xff]
    %v443 = vld [vmem:[#allocation2 + $0x68] sm:$0xff]
    %v444 = vld [vmem:[#allocation2 + $0x70] sm:$0xff]
    %v445 = vld [vmem:[#allocation2 + $0x78] sm:$0xff]
    %v446 = vld [vmem:[#allocation2 + $0x80] sm:$0xff]
    %v447 = vld [vmem:[#allocation2 + $0x88] sm:$0xff]
    %v448 = vld [vmem:[#allocation2 + $0x90] sm:$0xff]
    %v449 = vld [vmem:[#allocation2 + $0x98] sm:$0xff]
    %v450 = vld [vmem:[#allocation2 + $0xa0] sm:$0xff]
    %v451 = vld [vmem:[#allocation2 + $0xa8] sm:$0xff]
    %v452 = vld [vmem:[#allocation2 + $0xb0] sm:$0xff]
    %v453 = vld [vmem:[#allocation2 + $0xb8] sm:$0xff]
    %v454 = vld [vmem:[#allocation2 + $0xc0] sm:$0xff]
    %v455 = vld [vmem:[#allocation2 + $0xc8] sm:$0xff]
    %v456 = vld [vmem:[#allocation2 + $0xd0] sm:$0xff]
    %v457 = vld [vmem:[#allocation2 + $0xd8] sm:$0xff]
    %v458 = vld [vmem:[#allocation2 + $0xe0] sm:$0xff]
    %v459 = vld [vmem:[#allocation2 + $0xe8] sm:$0xff]
    %v460 = vld [vmem:[#allocation2 + $0xf0] sm:$0xff]
    %v461 = vld [vmem:[#allocation2 + $0xf8] sm:$0xff]
    %v462 = vld [vmem:[%s2] sm:$0x1]
    %v464 = vperm.slane %v462, 0
    %v466 = vadd.f32 %v430, %v464
    %v467 = vadd.f32 %v431, %v464
    %v468 = vadd.f32 %v432, %v464
    %v469 = vadd.f32 %v433, %v464
    %v470 = vadd.f32 %v434, %v464
    %v471 = vadd.f32 %v435, %v464
    %v472 = vadd.f32 %v436, %v464
    %v473 = vadd.f32 %v437, %v464
    %v474 = vadd.f32 %v438, %v464
    %v475 = vadd.f32 %v439, %v464
    %v476 = vadd.f32 %v440, %v464
    %v477 = vadd.f32 %v441, %v464
    %v478 = vadd.f32 %v442, %v464
    %v479 = vadd.f32 %v443, %v464
    %v480 = vadd.f32 %v444, %v464
    %v481 = vadd.f32 %v445, %v464
    %v482 = vadd.f32 %v446, %v464
    %v483 = vadd.f32 %v447, %v464
    %v484 = vadd.f32 %v448, %v464
    %v485 = vadd.f32 %v449, %v464
    %v486 = vadd.f32 %v450, %v464
    %v487 = vadd.f32 %v451, %v464
    %v488 = vadd.f32 %v452, %v464
    %v489 = vadd.f32 %v453, %v464
    %v490 = vadd.f32 %v454, %v464
    %v491 = vadd.f32 %v455, %v464
    %v492 = vadd.f32 %v456, %v464
    %v493 = vadd.f32 %v457, %v464
    %v494 = vadd.f32 %v458, %v464
    %v495 = vadd.f32 %v459, %v464
    %v496 = vadd.f32 %v460, %v464
    %v497 = vadd.f32 %v461, %v464
    %498 = vst [vmem:[%s3] sm:$0xff] %v466
    %499 = vst [vmem:[%s3 + $0x8] sm:$0xff] %v467
    %500 = vst [vmem:[%s3 + $0x10] sm:$0xff] %v468
    %501 = vst [vmem:[%s3 + $0x18] sm:$0xff] %v469
    %502 = vst [vmem:[%s3 + $0x20] sm:$0xff] %v470
    %503 = vst [vmem:[%s3 + $0x28] sm:$0xff] %v471
    %504 = vst [vmem:[%s3 + $0x30] sm:$0xff] %v472
    %505 = vst [vmem:[%s3 + $0x38] sm:$0xff] %v473
    %506 = vst [vmem:[%s3 + $0x40] sm:$0xff] %v474
    %507 = vst [vmem:[%s3 + $0x48] sm:$0xff] %v475
    %508 = vst [vmem:[%s3 + $0x50] sm:$0xff] %v476
    %509 = vst [vmem:[%s3 + $0x58] sm:$0xff] %v477
    %510 = vst [vmem:[%s3 + $0x60] sm:$0xff] %v478
    %511 = vst [vmem:[%s3 + $0x68] sm:$0xff] %v479
    %512 = vst [vmem:[%s3 + $0x70] sm:$0xff] %v480
    %513 = vst [vmem:[%s3 + $0x78] sm:$0xff] %v481
    %514 = vst [vmem:[%s3 + $0x80] sm:$0xff] %v482
    %515 = vst [vmem:[%s3 + $0x88] sm:$0xff] %v483
    %516 = vst [vmem:[%s3 + $0x90] sm:$0xff] %v484
    %517 = vst [vmem:[%s3 + $0x98] sm:$0xff] %v485
    %518 = vst [vmem:[%s3 + $0xa0] sm:$0xff] %v486
    %519 = vst [vmem:[%s3 + $0xa8] sm:$0xff] %v487
    %520 = vst [vmem:[%s3 + $0xb0] sm:$0xff] %v488
    %521 = vst [vmem:[%s3 + $0xb8] sm:$0xff] %v489
    %522 = vst [vmem:[%s3 + $0xc0] sm:$0xff] %v490
    %523 = vst [vmem:[%s3 + $0xc8] sm:$0xff] %v491
    %524 = vst [vmem:[%s3 + $0xd0] sm:$0xff] %v492
    %525 = vst [vmem:[%s3 + $0xd8] sm:$0xff] %v493
    %526 = vst [vmem:[%s3 + $0xe0] sm:$0xff] %v494
    %527 = vst [vmem:[%s3 + $0xe8] sm:$0xff] %v495
    %528 = vst [vmem:[%s3 + $0xf0] sm:$0xff] %v496
    %529 = vst [vmem:[%s3 + $0xf8] sm:$0xff] %v497
  $region21: #{pix2pix_forward.32} parent=0 // pred_fallthru
    _
  // Predicated region
  $region22: #{pix2pix_forward.32} parent=0 // pred_check
    _
  $region23: #{pix2pix_forward.32} parent=0 // pred_check_branch
    %531 = sbr.rel (0) target = $region25
  $region24: #{pix2pix_forward.32} parent=0 // pred_region
    _
  $region25: #{pix2pix_forward.32} parent=0 // pred_fallthru
    _
  // Predicated region
  $region26: #{pix2pix_forward.32} parent=0 // pred_check
    _
  $region27: #{pix2pix_forward.32} parent=0 // pred_check_branch
    %533 = sbr.rel (0) target = $region29
  $region28: #{pix2pix_forward.32} parent=0 // pred_region
    _
  $region29: #{pix2pix_forward.32} parent=0 // pred_fallthru
    _

// kernel: pix2pix_forward.33
$region0: #{pix2pix_forward.33}
  #allocation0 [shape = 'u32[]', space=smem, size = 0x4, offset = 0x4, fixed_abs, tag = 'smem constant byte address 0x4 - core index']
  #allocation1 [shape = 'u32[72,128]{1,0:T(1,128)}', space=vmem, size = 0x9000, scoped, tag = 'internal scratch']
  #allocation2 [shape = 'f32[64,128]{1,0:T(8,128)}', space=vmem, size = 0x8000, scoped, tag = 'scratch operand']
  %s0 = inlined_call_operand.vmem [shape: bf16[64,128], index: 0, kind: input, shape index: {}]
  %s1 = inlined_call_operand.vmem [shape: bf16[128,128], index: 1, kind: input, shape index: {}]
  %s2 = inlined_call_operand.vmem [shape: f32[1,128], index: 2, kind: input, shape index: {}]
  %s3 = inlined_call_operand.vmem [shape: f32[64,128], index: 3, kind: output, shape index: {}]
  %s4 = sld [smem:[#allocation0]]
  $region30: #{pix2pix_forward.33} parent=0
    _
  %s6 = ssub.s32 1, %s4
  %s7 = scalar_select 0, %s6, %s4
  // Predicated region
  $region2: #{pix2pix_forward.33} parent=0 // pred_check
    _
  $region3: #{pix2pix_forward.33} parent=0 // pred_check_branch
    %9 = sbr.rel (0) target = $region5
  $region4: #{pix2pix_forward.33} parent=0 // pred_region
    _
  $region5: #{pix2pix_forward.33} parent=0 // pred_fallthru
    _
  // Predicated region
  $region6: #{pix2pix_forward.33} parent=0 // pred_check
    _
  $region7: #{pix2pix_forward.33} parent=0 // pred_check_branch
    %11 = sbr.rel (0) target = $region9
  $region8: #{pix2pix_forward.33} parent=0 // pred_region
    _
  $region9: #{pix2pix_forward.33} parent=0 // pred_fallthru
    _
  // Predicated region
  $region10: #{pix2pix_forward.33} parent=0 // pred_check
    _
  $region11: #{pix2pix_forward.33} parent=0 // pred_check_branch
    %13 = sbr.rel (0) target = $region13
  $region12: #{pix2pix_forward.33} parent=0 // pred_region
    _
  $region13: #{pix2pix_forward.33} parent=0 // pred_fallthru
    _
  %p14 = scmp.eq.s32.totalorder 0, 0
  // Predicated region
  $region14: #{pix2pix_forward.33} parent=0 // pred_check
    %p15 = pneg %p14
  $region15: #{pix2pix_forward.33} parent=0 // pred_check_branch
    %17 = sbr.rel (%p15) target = $region17
  $region16: #{pix2pix_forward.33} parent=0 // pred_region
    %18 = vst [vmem:[#allocation2] sm:$0xff] 0.0
    %19 = vst [vmem:[#allocation2 + $0x8] sm:$0xff] 0.0
    %20 = vst [vmem:[#allocation2 + $0x10] sm:$0xff] 0.0
    %21 = vst [vmem:[#allocation2 + $0x18] sm:$0xff] 0.0
    %22 = vst [vmem:[#allocation2 + $0x20] sm:$0xff] 0.0
    %23 = vst [vmem:[#allocation2 + $0x28] sm:$0xff] 0.0
    %24 = vst [vmem:[#allocation2 + $0x30] sm:$0xff] 0.0
    %25 = vst [vmem:[#allocation2 + $0x38] sm:$0xff] 0.0
  $region17: #{pix2pix_forward.33} parent=0 // pred_fallthru
    _
  %v26 = vld [vmem:[%s0] sm:$0xf]
  %v27 = vld [vmem:[%s0 + $0x4] sm:$0xf]
  %v28 = vld [vmem:[%s0 + $0x8] sm:$0xf]
  %v29 = vld [vmem:[%s0 + $0xc] sm:$0xf]
  %v30 = vld [vmem:[%s0 + $0x10] sm:$0xf]
  %v31 = vld [vmem:[%s0 + $0x14] sm:$0xf]
  %v32 = vld [vmem:[%s0 + $0x18] sm:$0xf]
  %v33 = vld [vmem:[%s0 + $0x1c] sm:$0xf]
  %v34 = vunpack.c.l.bf16 %v26
  %v35 = vunpack.c.l.bf16 %v27
  %v36 = vunpack.c.l.bf16 %v28
  %v37 = vunpack.c.l.bf16 %v29
  %v38 = vunpack.c.l.bf16 %v30
  %v39 = vunpack.c.l.bf16 %v31
  %v40 = vunpack.c.l.bf16 %v32
  %v41 = vunpack.c.l.bf16 %v33
  %vm42 = vcmp.ge.f32.partialorder %v34, 0.0
  %vm43 = vcmp.ge.f32.partialorder %v35, 0.0
  %vm44 = vcmp.ge.f32.partialorder %v36, 0.0
  %vm45 = vcmp.ge.f32.partialorder %v37, 0.0
  %vm46 = vcmp.ge.f32.partialorder %v38, 0.0
  %vm47 = vcmp.ge.f32.partialorder %v39, 0.0
  %vm48 = vcmp.ge.f32.partialorder %v40, 0.0
  %vm49 = vcmp.ge.f32.partialorder %v41, 0.0
  %v50 = vmul.f32 %v34, 0.20019531
  %v51 = vmul.f32 %v35, 0.20019531
  %v52 = vmul.f32 %v36, 0.20019531
  %v53 = vmul.f32 %v37, 0.20019531
  %v54 = vmul.f32 %v38, 0.20019531
  %v55 = vmul.f32 %v39, 0.20019531
  %v56 = vmul.f32 %v40, 0.20019531
  %v57 = vmul.f32 %v41, 0.20019531
  %v58 = vpack.c.bf16 %v50, %v50
  %v59 = vpack.c.bf16 %v51, %v51
  %v60 = vpack.c.bf16 %v52, %v52
  %v61 = vpack.c.bf16 %v53, %v53
  %v62 = vpack.c.bf16 %v54, %v54
  %v63 = vpack.c.bf16 %v55, %v55
  %v64 = vpack.c.bf16 %v56, %v56
  %v65 = vpack.c.bf16 %v57, %v57
  %vm66 = vmpackc.low %vm42, %vm42
  %vm67 = vmpackc.low %vm43, %vm43
  %vm68 = vmpackc.low %vm44, %vm44
  %vm69 = vmpackc.low %vm45, %vm45
  %vm70 = vmpackc.low %vm46, %vm46
  %vm71 = vmpackc.low %vm47, %vm47
  %vm72 = vmpackc.low %vm48, %vm48
  %vm73 = vmpackc.low %vm49, %vm49
  %v74 = vsel %vm66, %v26, %v58
  %v75 = vsel %vm67, %v27, %v59
  %v76 = vsel %vm68, %v28, %v60
  %v77 = vsel %vm69, %v29, %v61
  %v78 = vsel %vm70, %v30, %v62
  %v79 = vsel %vm71, %v31, %v63
  %v80 = vsel %vm72, %v32, %v64
  %v81 = vsel %vm73, %v33, %v65
  %v82 = vld [vmem:[#allocation2] sm:$0xff]
  %v83 = vld [vmem:[#allocation2 + $0x8] sm:$0xff]
  %v84 = vld [vmem:[#allocation2 + $0x10] sm:$0xff]
  %v85 = vld [vmem:[#allocation2 + $0x18] sm:$0xff]
  %v86 = vld [vmem:[#allocation2 + $0x20] sm:$0xff]
  %v87 = vld [vmem:[#allocation2 + $0x28] sm:$0xff]
  %v88 = vld [vmem:[#allocation2 + $0x30] sm:$0xff]
  %v89 = vld [vmem:[#allocation2 + $0x38] sm:$0xff]
  %v90 = vld [vmem:[%s1] sm:$0xf]
  %v91 = vld [vmem:[%s1 + $0x4] sm:$0xf]
  %v92 = vld [vmem:[%s1 + $0x8] sm:$0xf]
  %v93 = vld [vmem:[%s1 + $0xc] sm:$0xf]
  %v94 = vld [vmem:[%s1 + $0x10] sm:$0xf]
  %v95 = vld [vmem:[%s1 + $0x14] sm:$0xf]
  %v96 = vld [vmem:[%s1 + $0x18] sm:$0xf]
  %v97 = vld [vmem:[%s1 + $0x1c] sm:$0xf]
  %v98 = vld [vmem:[%s1 + $0x20] sm:$0xf]
  %v99 = vld [vmem:[%s1 + $0x24] sm:$0xf]
  %v100 = vld [vmem:[%s1 + $0x28] sm:$0xf]
  %v101 = vld [vmem:[%s1 + $0x2c] sm:$0xf]
  %v102 = vld [vmem:[%s1 + $0x30] sm:$0xf]
  %v103 = vld [vmem:[%s1 + $0x34] sm:$0xf]
  %v104 = vld [vmem:[%s1 + $0x38] sm:$0xf]
  %v105 = vld [vmem:[%s1 + $0x3c] sm:$0xf]
  %v114 = vunpack.c.l.b16 %v74
  %v115 = vunpack.c.l.b16 %v75
  %v116 = vunpack.c.l.b16 %v76
  %v117 = vunpack.c.l.b16 %v77
  %v118 = vunpack.c.l.b16 %v78
  %v119 = vunpack.c.l.b16 %v79
  %v120 = vunpack.c.l.b16 %v80
  %v121 = vunpack.c.l.b16 %v81
  %v122 = vpack.c.b16 %v115, %v114
  %v123 = vpack.c.b16 %v117, %v116
  %v124 = vpack.c.b16 %v119, %v118
  %v125 = vpack.c.b16 %v121, %v120
  %v146 = vunpack.c.l.b16 %v90
  %v147 = vunpack.c.l.b16 %v91
  %v148 = vunpack.c.l.b16 %v92
  %v149 = vunpack.c.l.b16 %v93
  %v150 = vunpack.c.l.b16 %v94
  %v151 = vunpack.c.l.b16 %v95
  %v152 = vunpack.c.l.b16 %v96
  %v153 = vunpack.c.l.b16 %v97
  %v154 = vunpack.c.l.b16 %v98
  %v155 = vunpack.c.l.b16 %v99
  %v156 = vunpack.c.l.b16 %v100
  %v157 = vunpack.c.l.b16 %v101
  %v158 = vunpack.c.l.b16 %v102
  %v159 = vunpack.c.l.b16 %v103
  %v160 = vunpack.c.l.b16 %v104
  %v161 = vunpack.c.l.b16 %v105
  %v162 = vpack.c.b16 %v147, %v146
  %v163 = vpack.c.b16 %v149, %v148
  %v164 = vpack.c.b16 %v151, %v150
  %v165 = vpack.c.b16 %v153, %v152
  %v166 = vpack.c.b16 %v155, %v154
  %v167 = vpack.c.b16 %v157, %v156
  %v168 = vpack.c.b16 %v159, %v158
  %v169 = vpack.c.b16 %v161, %v160
  %178 = vmatpush.bf16.msra.mxu0 %v169
  %179 = vmatpush.bf16.msra.mxu0 %v168
  %180 = vmatpush.bf16.msra.mxu0 %v167
  %181 = vmatpush.bf16.msra.mxu0 %v166
  %182 = vmatpush.bf16.msra.mxu0 %v165
  %183 = vmatpush.bf16.msra.mxu0 %v164
  %184 = vmatpush.bf16.msra.mxu0 %v163
  %185 = vmatpush.bf16.msra.mxu0 %v162
  %186 = vmatmul.bf16.gmra.mxu0 %v122
  %v187 = vpop.f32.mrf.mxu0
  %v188 = vadd.f32 0.0, %v187
  %v189 = vpop.f32.mrf.mxu0
  %v190 = vadd.f32 0.0, %v189
  %191 = vmatmul.bf16.gmra.mxu0 %v123
  %v192 = vpop.f32.mrf.mxu0
  %v193 = vadd.f32 0.0, %v192
  %v194 = vpop.f32.mrf.mxu0
  %v195 = vadd.f32 0.0, %v194
  %196 = vmatmul.bf16.gmra.mxu0 %v124
  %v197 = vpop.f32.mrf.mxu0
  %v198 = vadd.f32 0.0, %v197
  %v199 = vpop.f32.mrf.mxu0
  %v200 = vadd.f32 0.0, %v199
  %201 = vmatmul.bf16.gmra.mxu0 %v125
  %v202 = vpop.f32.mrf.mxu0
  %v203 = vadd.f32 0.0, %v202
  %v204 = vpop.f32.mrf.mxu0
  %v205 = vadd.f32 0.0, %v204
  %206 = vdwg.mxu0
  %v207 = vadd.f32 %v82, %v188
  %v208 = vadd.f32 %v83, %v190
  %v209 = vadd.f32 %v84, %v193
  %v210 = vadd.f32 %v85, %v195
  %v211 = vadd.f32 %v86, %v198
  %v212 = vadd.f32 %v87, %v200
  %v213 = vadd.f32 %v88, %v203
  %v214 = vadd.f32 %v89, %v205
  %215 = vst [vmem:[#allocation2] sm:$0xff] %v207
  %216 = vst [vmem:[#allocation2 + $0x8] sm:$0xff] %v208
  %217 = vst [vmem:[#allocation2 + $0x10] sm:$0xff] %v209
  %218 = vst [vmem:[#allocation2 + $0x18] sm:$0xff] %v210
  %219 = vst [vmem:[#allocation2 + $0x20] sm:$0xff] %v211
  %220 = vst [vmem:[#allocation2 + $0x28] sm:$0xff] %v212
  %221 = vst [vmem:[#allocation2 + $0x30] sm:$0xff] %v213
  %222 = vst [vmem:[#allocation2 + $0x38] sm:$0xff] %v214
  // Predicated region
  $region18: #{pix2pix_forward.33} parent=0 // pred_check
    %p223 = pneg %p14
  $region19: #{pix2pix_forward.33} parent=0 // pred_check_branch
    %225 = sbr.rel (%p223) target = $region21
  $region20: #{pix2pix_forward.33} parent=0 // pred_region
    %v226 = vld [vmem:[#allocation2] sm:$0xff]
    %v227 = vld [vmem:[#allocation2 + $0x8] sm:$0xff]
    %v228 = vld [vmem:[#allocation2 + $0x10] sm:$0xff]
    %v229 = vld [vmem:[#allocation2 + $0x18] sm:$0xff]
    %v230 = vld [vmem:[#allocation2 + $0x20] sm:$0xff]
    %v231 = vld [vmem:[#allocation2 + $0x28] sm:$0xff]
    %v232 = vld [vmem:[#allocation2 + $0x30] sm:$0xff]
    %v233 = vld [vmem:[#allocation2 + $0x38] sm:$0xff]
    %v234 = vld [vmem:[%s2] sm:$0x1]
    %v236 = vperm.slane %v234, 0
    %v238 = vadd.f32 %v226, %v236
    %v239 = vadd.f32 %v227, %v236
    %v240 = vadd.f32 %v228, %v236
    %v241 = vadd.f32 %v229, %v236
    %v242 = vadd.f32 %v230, %v236
    %v243 = vadd.f32 %v231, %v236
    %v244 = vadd.f32 %v232, %v236
    %v245 = vadd.f32 %v233, %v236
    %246 = vst [vmem:[%s3] sm:$0xff] %v238
    %247 = vst [vmem:[%s3 + $0x8] sm:$0xff] %v239
    %248 = vst [vmem:[%s3 + $0x10] sm:$0xff] %v240
    %249 = vst [vmem:[%s3 + $0x18] sm:$0xff] %v241
    %250 = vst [vmem:[%s3 + $0x20] sm:$0xff] %v242
    %251 = vst [vmem:[%s3 + $0x28] sm:$0xff] %v243
    %252 = vst [vmem:[%s3 + $0x30] sm:$0xff] %v244
    %253 = vst [vmem:[%s3 + $0x38] sm:$0xff] %v245
  $region21: #{pix2pix_forward.33} parent=0 // pred_fallthru
    _
  // Predicated region
  $region22: #{pix2pix_forward.33} parent=0 // pred_check
    _
  $region23: #{pix2pix_forward.33} parent=0 // pred_check_branch
    %255 = sbr.rel (0) target = $region25
  $region24: #{pix2pix_forward.33} parent=0 // pred_region
    _
  $region25: #{pix2pix_forward.33} parent=0 // pred_fallthru
    _
  // Predicated region
  $region26: #{pix2pix_forward.33} parent=0 // pred_check
    _
  $region27: #{pix2pix_forward.33} parent=0 // pred_check_branch
    %257 = sbr.rel (0) target = $region29
  $region28: #{pix2pix_forward.33} parent=0 // pred_region
    _
  $region29: #{pix2pix_forward.33} parent=0 // pred_fallthru
    _

// kernel: pix2pix_forward.36
$region0: #{pix2pix_forward.36}
  #allocation0 [shape = 'u32[]', space=smem, size = 0x4, offset = 0x4, fixed_abs, tag = 'smem constant byte address 0x4 - core index']
  #allocation1 [shape = 'u32[72,128]{1,0:T(1,128)}', space=vmem, size = 0x9000, scoped, tag = 'internal scratch']
  %s0 = inlined_call_operand.vmem [shape: f32[16,32], index: 0, kind: input, shape index: {}]
  %s1 = inlined_call_operand.vmem [shape: f32[1,32], index: 1, kind: input, shape index: {}]
  %s2 = inlined_call_operand.vmem [shape: f32[1,32], index: 2, kind: input, shape index: {}]
  %s3 = inlined_call_operand.vmem [shape: f32[16,32], index: 3, kind: output, shape index: {}]
  %s4 = sld [smem:[#allocation0]]
  $region22: #{pix2pix_forward.36} parent=0
    _
  %s6 = ssub.s32 1, %s4
  %s7 = scalar_select 0, %s6, %s4
  // Predicated region
  $region2: #{pix2pix_forward.36} parent=0 // pred_check
    _
  $region3: #{pix2pix_forward.36} parent=0 // pred_check_branch
    %9 = sbr.rel (0) target = $region5
  $region4: #{pix2pix_forward.36} parent=0 // pred_region
    _
  $region5: #{pix2pix_forward.36} parent=0 // pred_fallthru
    _
  // Predicated region
  $region6: #{pix2pix_forward.36} parent=0 // pred_check
    _
  $region7: #{pix2pix_forward.36} parent=0 // pred_check_branch
    %11 = sbr.rel (0) target = $region9
  $region8: #{pix2pix_forward.36} parent=0 // pred_region
    _
  $region9: #{pix2pix_forward.36} parent=0 // pred_fallthru
    _
  // Predicated region
  $region10: #{pix2pix_forward.36} parent=0 // pred_check
    _
  $region11: #{pix2pix_forward.36} parent=0 // pred_check_branch
    %13 = sbr.rel (0) target = $region13
  $region12: #{pix2pix_forward.36} parent=0 // pred_region
    _
  $region13: #{pix2pix_forward.36} parent=0 // pred_fallthru
    _
  %v14 = vld [vmem:[%s0] sm:$0xff]
  %v15 = vld [vmem:[%s0 + $0x8] sm:$0xff]
  %vm16 = vcmask 261120
  %v17 = vsel %vm16, %v14, 0.0
  %v18 = vsel %vm16, %v15, 0.0
  %v19 = vadd.f32 %v17, %v18
  %v20 = vrot.slane %v19, 4
  %v21 = vadd.f32 %v19, %v20
  %v22 = vrot.slane %v21, 2
  %v23 = vadd.f32 %v21, %v22
  %v24 = vrot.slane %v23, 1
  %v25 = vadd.f32 %v23, %v24
  %v26 = vrcp.pop 16.0
  %v27 = vmul.f32 16.0, %v26
  %v28 = vsub.f32 1.0, %v27
  %v29 = vmul.f32 %v26, %v28
  %v30 = vadd.f32 %v26, %v29
  %vm31 = vweird.f32 %v26
  %v32 = vsel %vm31, %v26, %v30
  %v33 = vmul.f32 %v25, %v32
  %v34 = vsub.f32 %v14, %v33
  %v35 = vsub.f32 %v15, %v33
  %v36 = vmul.f32 %v34, %v34
  %v37 = vmul.f32 %v35, %v35
  %v38 = vsel %vm16, %v36, 0.0
  %v39 = vsel %vm16, %v37, 0.0
  %v40 = vadd.f32 %v38, %v39
  %v41 = vrot.slane %v40, 4
  %v42 = vadd.f32 %v40, %v41
  %v43 = vrot.slane %v42, 2
  %v44 = vadd.f32 %v42, %v43
  %v45 = vrot.slane %v44, 1
  %v46 = vadd.f32 %v44, %v45
  %v47 = vmul.f32 %v46, %v32
  %v48 = vadd.f32 %v47, 1e-05
  %v49 = vrsqrt.pop %v48
  %v50 = vmul.f32 %v49, %v48
  %v51 = vmul.f32 %v50, %v49
  %v52 = vmul.f32 0.5, %v51
  %v53 = vsub.f32 1.5, %v52
  %v54 = vmul.f32 %v49, %v53
  %vm55 = vweird.f32 %v48
  %vm56 = vweird.f32 %v49
  %vm57 = vmor %vm55, %vm56
  %v58 = vsel %vm57, %v49, %v54
  %v59 = vmul.f32 %v34, %v58
  %v60 = vmul.f32 %v35, %v58
  %v61 = vld [vmem:[%s1] sm:$0x1]
  %v63 = vperm.slane %v61, 0
  %v65 = vmul.f32 %v59, %v63
  %v66 = vmul.f32 %v60, %v63
  %v67 = vld [vmem:[%s2] sm:$0x1]
  %v69 = vperm.slane %v67, 0
  %v71 = vadd.f32 %v65, %v69
  %v72 = vadd.f32 %v66, %v69
  %73 = vst.msk [vmem:[%s3] sm:$0xff] %vm16, %v71
  %74 = vst.msk [vmem:[%s3 + $0x8] sm:$0xff] %vm16, %v72
  // Predicated region
  $region14: #{pix2pix_forward.36} parent=0 // pred_check
    _
  $region15: #{pix2pix_forward.36} parent=0 // pred_check_branch
    %76 = sbr.rel (0) target = $region17
  $region16: #{pix2pix_forward.36} parent=0 // pred_region
    _
  $region17: #{pix2pix_forward.36} parent=0 // pred_fallthru
    _
  // Predicated region
  $region18: #{pix2pix_forward.36} parent=0 // pred_check
    _
  $region19: #{pix2pix_forward.36} parent=0 // pred_check_branch
    %78 = sbr.rel (0) target = $region21
  $region20: #{pix2pix_forward.36} parent=0 // pred_region
    _
  $region21: #{pix2pix_forward.36} parent=0 // pred_fallthru
    _

// kernel: pix2pix_forward.35
$region0: #{pix2pix_forward.35}
  #allocation0 [shape = 'u32[]', space=smem, size = 0x4, offset = 0x4, fixed_abs, tag = 'smem constant byte address 0x4 - core index']
  #allocation1 [shape = 'u32[72,128]{1,0:T(1,128)}', space=vmem, size = 0x9000, scoped, tag = 'internal scratch']
  #allocation2 [shape = 'f32[16,128]{1,0:T(8,128)}', space=vmem, size = 0x2000, scoped, tag = 'scratch operand']
  %s0 = inlined_call_operand.vmem [shape: bf16[16,256], index: 0, kind: input, shape index: {}]
  %s1 = inlined_call_operand.vmem [shape: bf16[256,128], index: 1, kind: input, shape index: {}]
  %s2 = inlined_call_operand.vmem [shape: f32[1,128], index: 2, kind: input, shape index: {}]
  %s3 = inlined_call_operand.vmem [shape: f32[16,128], index: 3, kind: output, shape index: {}]
  %s4 = sld [smem:[#allocation0]]
  $region30: #{pix2pix_forward.35} parent=0
    _
  %s6 = ssub.s32 1, %s4
  %s7 = scalar_select 0, %s6, %s4
  // Predicated region
  $region2: #{pix2pix_forward.35} parent=0 // pred_check
    _
  $region3: #{pix2pix_forward.35} parent=0 // pred_check_branch
    %9 = sbr.rel (0) target = $region5
  $region4: #{pix2pix_forward.35} parent=0 // pred_region
    _
  $region5: #{pix2pix_forward.35} parent=0 // pred_fallthru
    _
  // Predicated region
  $region6: #{pix2pix_forward.35} parent=0 // pred_check
    _
  $region7: #{pix2pix_forward.35} parent=0 // pred_check_branch
    %11 = sbr.rel (0) target = $region9
  $region8: #{pix2pix_forward.35} parent=0 // pred_region
    _
  $region9: #{pix2pix_forward.35} parent=0 // pred_fallthru
    _
  // Predicated region
  $region10: #{pix2pix_forward.35} parent=0 // pred_check
    _
  $region11: #{pix2pix_forward.35} parent=0 // pred_check_branch
    %13 = sbr.rel (0) target = $region13
  $region12: #{pix2pix_forward.35} parent=0 // pred_region
    _
  $region13: #{pix2pix_forward.35} parent=0 // pred_fallthru
    _
  %p14 = scmp.eq.s32.totalorder 0, 0
  // Predicated region
  $region14: #{pix2pix_forward.35} parent=0 // pred_check
    %p15 = pneg %p14
  $region15: #{pix2pix_forward.35} parent=0 // pred_check_branch
    %17 = sbr.rel (%p15) target = $region17
  $region16: #{pix2pix_forward.35} parent=0 // pred_region
    %18 = vst [vmem:[#allocation2] sm:$0xff] 0.0
    %19 = vst [vmem:[#allocation2 + $0x8] sm:$0xff] 0.0
  $region17: #{pix2pix_forward.35} parent=0 // pred_fallthru
    _
  %v20 = vld [vmem:[%s0] sm:$0xff]
  %v21 = vld [vmem:[%s0 + $0x8] sm:$0xff]
  %v22 = vunpack.c.l.bf16 %v20
  %v23 = vunpack.c.h.bf16 %v20
  %v24 = vunpack.c.l.bf16 %v21
  %v25 = vunpack.c.h.bf16 %v21
  %vm26 = vcmp.ge.f32.partialorder %v22, 0.0
  %vm27 = vcmp.ge.f32.partialorder %v23, 0.0
  %vm28 = vcmp.ge.f32.partialorder %v24, 0.0
  %vm29 = vcmp.ge.f32.partialorder %v25, 0.0
  %v30 = vmul.f32 %v22, 0.20019531
  %v31 = vmul.f32 %v23, 0.20019531
  %v32 = vmul.f32 %v24, 0.20019531
  %v33 = vmul.f32 %v25, 0.20019531
  %v34 = vpack.c.bf16 %v31, %v30
  %v35 = vpack.c.bf16 %v33, %v32
  %vm36 = vmpackc.low %vm27, %vm26
  %vm37 = vmpackc.low %vm29, %vm28
  %v38 = vsel %vm36, %v20, %v34
  %v39 = vsel %vm37, %v21, %v35
  %v40 = vld [vmem:[#allocation2] sm:$0xff]
  %v41 = vld [vmem:[#allocation2 + $0x8] sm:$0xff]
  %v42 = vld [vmem:[%s1] sm:$0xf]
  %v43 = vld [vmem:[%s1 + $0x4] sm:$0xf]
  %v44 = vld [vmem:[%s1 + $0x8] sm:$0xf]
  %v45 = vld [vmem:[%s1 + $0xc] sm:$0xf]
  %v46 = vld [vmem:[%s1 + $0x10] sm:$0xf]
  %v47 = vld [vmem:[%s1 + $0x14] sm:$0xf]
  %v48 = vld [vmem:[%s1 + $0x18] sm:$0xf]
  %v49 = vld [vmem:[%s1 + $0x1c] sm:$0xf]
  %v50 = vld [vmem:[%s1 + $0x20] sm:$0xf]
  %v51 = vld [vmem:[%s1 + $0x24] sm:$0xf]
  %v52 = vld [vmem:[%s1 + $0x28] sm:$0xf]
  %v53 = vld [vmem:[%s1 + $0x2c] sm:$0xf]
  %v54 = vld [vmem:[%s1 + $0x30] sm:$0xf]
  %v55 = vld [vmem:[%s1 + $0x34] sm:$0xf]
  %v56 = vld [vmem:[%s1 + $0x38] sm:$0xf]
  %v57 = vld [vmem:[%s1 + $0x3c] sm:$0xf]
  %v58 = vld [vmem:[%s1 + $0x40] sm:$0xf]
  %v59 = vld [vmem:[%s1 + $0x44] sm:$0xf]
  %v60 = vld [vmem:[%s1 + $0x48] sm:$0xf]
  %v61 = vld [vmem:[%s1 + $0x4c] sm:$0xf]
  %v62 = vld [vmem:[%s1 + $0x50] sm:$0xf]
  %v63 = vld [vmem:[%s1 + $0x54] sm:$0xf]
  %v64 = vld [vmem:[%s1 + $0x58] sm:$0xf]
  %v65 = vld [vmem:[%s1 + $0x5c] sm:$0xf]
  %v66 = vld [vmem:[%s1 + $0x60] sm:$0xf]
  %v67 = vld [vmem:[%s1 + $0x64] sm:$0xf]
  %v68 = vld [vmem:[%s1 + $0x68] sm:$0xf]
  %v69 = vld [vmem:[%s1 + $0x6c] sm:$0xf]
  %v70 = vld [vmem:[%s1 + $0x70] sm:$0xf]
  %v71 = vld [vmem:[%s1 + $0x74] sm:$0xf]
  %v72 = vld [vmem:[%s1 + $0x78] sm:$0xf]
  %v73 = vld [vmem:[%s1 + $0x7c] sm:$0xf]
  %v76 = vunpack.c.l.b16 %v38
  %v77 = vunpack.c.h.b16 %v38
  %v78 = vunpack.c.l.b16 %v39
  %v79 = vunpack.c.h.b16 %v39
  %v80 = vpack.c.b16 %v78, %v76
  %v81 = vpack.c.b16 %v79, %v77
  %v116 = vunpack.c.l.b16 %v42
  %v117 = vunpack.c.l.b16 %v43
  %v118 = vunpack.c.l.b16 %v44
  %v119 = vunpack.c.l.b16 %v45
  %v120 = vunpack.c.l.b16 %v46
  %v121 = vunpack.c.l.b16 %v47
  %v122 = vunpack.c.l.b16 %v48
  %v123 = vunpack.c.l.b16 %v49
  %v124 = vunpack.c.l.b16 %v50
  %v125 = vunpack.c.l.b16 %v51
  %v126 = vunpack.c.l.b16 %v52
  %v127 = vunpack.c.l.b16 %v53
  %v128 = vunpack.c.l.b16 %v54
  %v129 = vunpack.c.l.b16 %v55
  %v130 = vunpack.c.l.b16 %v56
  %v131 = vunpack.c.l.b16 %v57
  %v132 = vunpack.c.l.b16 %v58
  %v133 = vunpack.c.l.b16 %v59
  %v134 = vunpack.c.l.b16 %v60
  %v135 = vunpack.c.l.b16 %v61
  %v136 = vunpack.c.l.b16 %v62
  %v137 = vunpack.c.l.b16 %v63
  %v138 = vunpack.c.l.b16 %v64
  %v139 = vunpack.c.l.b16 %v65
  %v140 = vunpack.c.l.b16 %v66
  %v141 = vunpack.c.l.b16 %v67
  %v142 = vunpack.c.l.b16 %v68
  %v143 = vunpack.c.l.b16 %v69
  %v144 = vunpack.c.l.b16 %v70
  %v145 = vunpack.c.l.b16 %v71
  %v146 = vunpack.c.l.b16 %v72
  %v147 = vunpack.c.l.b16 %v73
  %v148 = vpack.c.b16 %v117, %v116
  %v149 = vpack.c.b16 %v119, %v118
  %v150 = vpack.c.b16 %v121, %v120
  %v151 = vpack.c.b16 %v123, %v122
  %v152 = vpack.c.b16 %v125, %v124
  %v153 = vpack.c.b16 %v127, %v126
  %v154 = vpack.c.b16 %v129, %v128
  %v155 = vpack.c.b16 %v131, %v130
  %v156 = vpack.c.b16 %v133, %v132
  %v157 = vpack.c.b16 %v135, %v134
  %v158 = vpack.c.b16 %v137, %v136
  %v159 = vpack.c.b16 %v139, %v138
  %v160 = vpack.c.b16 %v141, %v140
  %v161 = vpack.c.b16 %v143, %v142
  %v162 = vpack.c.b16 %v145, %v144
  %v163 = vpack.c.b16 %v147, %v146
  %180 = vmatpush.bf16.msra.mxu0 %v155
  %181 = vmatpush.bf16.msra.mxu0 %v154
  %182 = vmatpush.bf16.msra.mxu0 %v153
  %183 = vmatpush.bf16.msra.mxu0 %v152
  %184 = vmatpush.bf16.msra.mxu0 %v151
  %185 = vmatpush.bf16.msra.mxu0 %v150
  %186 = vmatpush.bf16.msra.mxu0 %v149
  %187 = vmatpush.bf16.msra.mxu0 %v148
  %188 = vmatmul.bf16.gmra.mxu0 %v80
  %v189 = vpop.f32.mrf.mxu0
  %v190 = vadd.f32 0.0, %v189
  %v191 = vpop.f32.mrf.mxu0
  %v192 = vadd.f32 0.0, %v191
  %193 = vdwg.mxu0
  %194 = vmatpush.bf16.msra.mxu0 %v163
  %195 = vmatpush.bf16.msra.mxu0 %v162
  %196 = vmatpush.bf16.msra.mxu0 %v161
  %197 = vmatpush.bf16.msra.mxu0 %v160
  %198 = vmatpush.bf16.msra.mxu0 %v159
  %199 = vmatpush.bf16.msra.mxu0 %v158
  %200 = vmatpush.bf16.msra.mxu0 %v157
  %201 = vmatpush.bf16.msra.mxu0 %v156
  %202 = vmatmul.bf16.gmra.mxu0 %v81
  %v203 = vpop.f32.mrf.mxu0
  %v204 = vadd.f32 %v190, %v203
  %v205 = vpop.f32.mrf.mxu0
  %v206 = vadd.f32 %v192, %v205
  %207 = vdwg.mxu0
  %v208 = vadd.f32 %v40, %v204
  %v209 = vadd.f32 %v41, %v206
  %210 = vst [vmem:[#allocation2] sm:$0xff] %v208
  %211 = vst [vmem:[#allocation2 + $0x8] sm:$0xff] %v209
  // Predicated region
  $region18: #{pix2pix_forward.35} parent=0 // pred_check
    %p212 = pneg %p14
  $region19: #{pix2pix_forward.35} parent=0 // pred_check_branch
    %214 = sbr.rel (%p212) target = $region21
  $region20: #{pix2pix_forward.35} parent=0 // pred_region
    %v215 = vld [vmem:[#allocation2] sm:$0xff]
    %v216 = vld [vmem:[#allocation2 + $0x8] sm:$0xff]
    %v217 = vld [vmem:[%s2] sm:$0x1]
    %v219 = vperm.slane %v217, 0
    %v221 = vadd.f32 %v215, %v219
    %v222 = vadd.f32 %v216, %v219
    %223 = vst [vmem:[%s3] sm:$0xff] %v221
    %224 = vst [vmem:[%s3 + $0x8] sm:$0xff] %v222
  $region21: #{pix2pix_forward.35} parent=0 // pred_fallthru
    _
  // Predicated region
  $region22: #{pix2pix_forward.35} parent=0 // pred_check
    _
  $region23: #{pix2pix_forward.35} parent=0 // pred_check_branch
    %226 = sbr.rel (0) target = $region25
  $region24: #{pix2pix_forward.35} parent=0 // pred_region
    _
  $region25: #{pix2pix_forward.35} parent=0 // pred_fallthru
    _
  // Predicated region
  $region26: #{pix2pix_forward.35} parent=0 // pred_check
    _
  $region27: #{pix2pix_forward.35} parent=0 // pred_check_branch
    %228 = sbr.rel (0) target = $region29
  $region28: #{pix2pix_forward.35} parent=0 // pred_region
    _
  $region29: #{pix2pix_forward.35} parent=0 // pred_fallthru
    _

// kernel: pix2pix_forward.38
$region0: #{pix2pix_forward.38}
  #allocation0 [shape = 'u32[]', space=smem, size = 0x4, offset = 0x4, fixed_abs, tag = 'smem constant byte address 0x4 - core index']
  #allocation1 [shape = 'u32[72,128]{1,0:T(1,128)}', space=vmem, size = 0x9000, scoped, tag = 'internal scratch']
  %s0 = inlined_call_operand.vmem [shape: f32[4,64], index: 0, kind: input, shape index: {}]
  %s1 = inlined_call_operand.vmem [shape: f32[1,64], index: 1, kind: input, shape index: {}]
  %s2 = inlined_call_operand.vmem [shape: f32[1,64], index: 2, kind: input, shape index: {}]
  %s3 = inlined_call_operand.vmem [shape: f32[4,64], index: 3, kind: output, shape index: {}]
  %s4 = sld [smem:[#allocation0]]
  $region22: #{pix2pix_forward.38} parent=0
    _
  %s6 = ssub.s32 1, %s4
  %s7 = scalar_select 0, %s6, %s4
  // Predicated region
  $region2: #{pix2pix_forward.38} parent=0 // pred_check
    _
  $region3: #{pix2pix_forward.38} parent=0 // pred_check_branch
    %9 = sbr.rel (0) target = $region5
  $region4: #{pix2pix_forward.38} parent=0 // pred_region
    _
  $region5: #{pix2pix_forward.38} parent=0 // pred_fallthru
    _
  // Predicated region
  $region6: #{pix2pix_forward.38} parent=0 // pred_check
    _
  $region7: #{pix2pix_forward.38} parent=0 // pred_check_branch
    %11 = sbr.rel (0) target = $region9
  $region8: #{pix2pix_forward.38} parent=0 // pred_region
    _
  $region9: #{pix2pix_forward.38} parent=0 // pred_fallthru
    _
  // Predicated region
  $region10: #{pix2pix_forward.38} parent=0 // pred_check
    _
  $region11: #{pix2pix_forward.38} parent=0 // pred_check_branch
    %13 = sbr.rel (0) target = $region13
  $region12: #{pix2pix_forward.38} parent=0 // pred_region
    _
  $region13: #{pix2pix_forward.38} parent=0 // pred_fallthru
    _
  %v14 = vld [vmem:[%s0] sm:$0xf]
  %vm15 = vcmask 519168
  %v16 = vsel %vm15, %v14, 0.0
  %v17 = vrot.slane %v16, 4
  %v18 = vadd.f32 %v16, %v17
  %v19 = vrot.slane %v18, 2
  %v20 = vadd.f32 %v18, %v19
  %v21 = vrot.slane %v20, 1
  %v22 = vadd.f32 %v20, %v21
  %v23 = vrcp.pop 4.0
  %v24 = vmul.f32 4.0, %v23
  %v25 = vsub.f32 1.0, %v24
  %v26 = vmul.f32 %v23, %v25
  %v27 = vadd.f32 %v23, %v26
  %vm28 = vweird.f32 %v23
  %v29 = vsel %vm28, %v23, %v27
  %v30 = vmul.f32 %v22, %v29
  %v31 = vsub.f32 %v14, %v30
  %v32 = vmul.f32 %v31, %v31
  %v33 = vsel %vm15, %v32, 0.0
  %v34 = vrot.slane %v33, 4
  %v35 = vadd.f32 %v33, %v34
  %v36 = vrot.slane %v35, 2
  %v37 = vadd.f32 %v35, %v36
  %v38 = vrot.slane %v37, 1
  %v39 = vadd.f32 %v37, %v38
  %v40 = vmul.f32 %v39, %v29
  %v41 = vadd.f32 %v40, 1e-05
  %v42 = vrsqrt.pop %v41
  %v43 = vmul.f32 %v42, %v41
  %v44 = vmul.f32 %v43, %v42
  %v45 = vmul.f32 0.5, %v44
  %v46 = vsub.f32 1.5, %v45
  %v47 = vmul.f32 %v42, %v46
  %vm48 = vweird.f32 %v41
  %vm49 = vweird.f32 %v42
  %vm50 = vmor %vm48, %vm49
  %v51 = vsel %vm50, %v42, %v47
  %v52 = vmul.f32 %v31, %v51
  %v53 = vld [vmem:[%s1] sm:$0x1]
  %v55 = vperm.slane %v53, 0
  %v57 = vmul.f32 %v52, %v55
  %v58 = vld [vmem:[%s2] sm:$0x1]
  %v60 = vperm.slane %v58, 0
  %v62 = vadd.f32 %v57, %v60
  %63 = vst.msk [vmem:[%s3] sm:$0xf] %vm15, %v62
  // Predicated region
  $region14: #{pix2pix_forward.38} parent=0 // pred_check
    _
  $region15: #{pix2pix_forward.38} parent=0 // pred_check_branch
    %65 = sbr.rel (0) target = $region17
  $region16: #{pix2pix_forward.38} parent=0 // pred_region
    _
  $region17: #{pix2pix_forward.38} parent=0 // pred_fallthru
    _
  // Predicated region
  $region18: #{pix2pix_forward.38} parent=0 // pred_check
    _
  $region19: #{pix2pix_forward.38} parent=0 // pred_check_branch
    %67 = sbr.rel (0) target = $region21
  $region20: #{pix2pix_forward.38} parent=0 // pred_region
    _
  $region21: #{pix2pix_forward.38} parent=0 // pred_fallthru
    _

// kernel: pix2pix_forward.37
$region0: #{pix2pix_forward.37}
  #allocation0 [shape = 'u32[]', space=smem, size = 0x4, offset = 0x4, fixed_abs, tag = 'smem constant byte address 0x4 - core index']
  #allocation1 [shape = 'u32[72,128]{1,0:T(1,128)}', space=vmem, size = 0x9000, scoped, tag = 'internal scratch']
  #allocation2 [shape = 'f32[16,128]{1,0:T(8,128)}', space=vmem, size = 0x2000, scoped, tag = 'scratch operand']
  %s0 = inlined_call_operand.vmem [shape: bf16[16,512], index: 0, kind: input, shape index: {}]
  %s1 = inlined_call_operand.vmem [shape: bf16[512,128], index: 1, kind: input, shape index: {}]
  %s2 = inlined_call_operand.vmem [shape: f32[1,128], index: 2, kind: input, shape index: {}]
  %s3 = inlined_call_operand.vmem [shape: f32[16,128], index: 3, kind: output, shape index: {}]
  %s4 = sld [smem:[#allocation0]]
  $region30: #{pix2pix_forward.37} parent=0
    _
  %s6 = ssub.s32 1, %s4
  %s7 = scalar_select 0, %s6, %s4
  // Predicated region
  $region2: #{pix2pix_forward.37} parent=0 // pred_check
    _
  $region3: #{pix2pix_forward.37} parent=0 // pred_check_branch
    %9 = sbr.rel (0) target = $region5
  $region4: #{pix2pix_forward.37} parent=0 // pred_region
    _
  $region5: #{pix2pix_forward.37} parent=0 // pred_fallthru
    _
  // Predicated region
  $region6: #{pix2pix_forward.37} parent=0 // pred_check
    _
  $region7: #{pix2pix_forward.37} parent=0 // pred_check_branch
    %11 = sbr.rel (0) target = $region9
  $region8: #{pix2pix_forward.37} parent=0 // pred_region
    _
  $region9: #{pix2pix_forward.37} parent=0 // pred_fallthru
    _
  // Predicated region
  $region10: #{pix2pix_forward.37} parent=0 // pred_check
    _
  $region11: #{pix2pix_forward.37} parent=0 // pred_check_branch
    %13 = sbr.rel (0) target = $region13
  $region12: #{pix2pix_forward.37} parent=0 // pred_region
    _
  $region13: #{pix2pix_forward.37} parent=0 // pred_fallthru
    _
  %p14 = scmp.eq.s32.totalorder 0, 0
  // Predicated region
  $region14: #{pix2pix_forward.37} parent=0 // pred_check
    %p15 = pneg %p14
  $region15: #{pix2pix_forward.37} parent=0 // pred_check_branch
    %17 = sbr.rel (%p15) target = $region17
  $region16: #{pix2pix_forward.37} parent=0 // pred_region
    %18 = vst [vmem:[#allocation2] sm:$0xff] 0.0
    %19 = vst [vmem:[#allocation2 + $0x8] sm:$0xff] 0.0
  $region17: #{pix2pix_forward.37} parent=0 // pred_fallthru
    _
  %v20 = vld [vmem:[%s0] sm:$0xff]
  %v21 = vld [vmem:[%s0 + $0x8] sm:$0xff]
  %v22 = vld [vmem:[%s0 + $0x10] sm:$0xff]
  %v23 = vld [vmem:[%s0 + $0x18] sm:$0xff]
  %v24 = vunpack.c.l.bf16 %v20
  %v25 = vunpack.c.h.bf16 %v20
  %v26 = vunpack.c.l.bf16 %v21
  %v27 = vunpack.c.h.bf16 %v21
  %v28 = vunpack.c.l.bf16 %v22
  %v29 = vunpack.c.h.bf16 %v22
  %v30 = vunpack.c.l.bf16 %v23
  %v31 = vunpack.c.h.bf16 %v23
  %vm32 = vcmp.ge.f32.partialorder %v24, 0.0
  %vm33 = vcmp.ge.f32.partialorder %v25, 0.0
  %vm34 = vcmp.ge.f32.partialorder %v26, 0.0
  %vm35 = vcmp.ge.f32.partialorder %v27, 0.0
  %vm36 = vcmp.ge.f32.partialorder %v28, 0.0
  %vm37 = vcmp.ge.f32.partialorder %v29, 0.0
  %vm38 = vcmp.ge.f32.partialorder %v30, 0.0
  %vm39 = vcmp.ge.f32.partialorder %v31, 0.0
  %v40 = vmul.f32 %v24, 0.20019531
  %v41 = vmul.f32 %v25, 0.20019531
  %v42 = vmul.f32 %v26, 0.20019531
  %v43 = vmul.f32 %v27, 0.20019531
  %v44 = vmul.f32 %v28, 0.20019531
  %v45 = vmul.f32 %v29, 0.20019531
  %v46 = vmul.f32 %v30, 0.20019531
  %v47 = vmul.f32 %v31, 0.20019531
  %v48 = vpack.c.bf16 %v41, %v40
  %v49 = vpack.c.bf16 %v43, %v42
  %v50 = vpack.c.bf16 %v45, %v44
  %v51 = vpack.c.bf16 %v47, %v46
  %vm52 = vmpackc.low %vm33, %vm32
  %vm53 = vmpackc.low %vm35, %vm34
  %vm54 = vmpackc.low %vm37, %vm36
  %vm55 = vmpackc.low %vm39, %vm38
  %v56 = vsel %vm52, %v20, %v48
  %v57 = vsel %vm53, %v21, %v49
  %v58 = vsel %vm54, %v22, %v50
  %v59 = vsel %vm55, %v23, %v51
  %v60 = vld [vmem:[#allocation2] sm:$0xff]
  %v61 = vld [vmem:[#allocation2 + $0x8] sm:$0xff]
  %v62 = vld [vmem:[%s1] sm:$0xf]
  %v63 = vld [vmem:[%s1 + $0x4] sm:$0xf]
  %v64 = vld [vmem:[%s1 + $0x8] sm:$0xf]
  %v65 = vld [vmem:[%s1 + $0xc] sm:$0xf]
  %v66 = vld [vmem:[%s1 + $0x10] sm:$0xf]
  %v67 = vld [vmem:[%s1 + $0x14] sm:$0xf]
  %v68 = vld [vmem:[%s1 + $0x18] sm:$0xf]
  %v69 = vld [vmem:[%s1 + $0x1c] sm:$0xf]
  %v70 = vld [vmem:[%s1 + $0x20] sm:$0xf]
  %v71 = vld [vmem:[%s1 + $0x24] sm:$0xf]
  %v72 = vld [vmem:[%s1 + $0x28] sm:$0xf]
  %v73 = vld [vmem:[%s1 + $0x2c] sm:$0xf]
  %v74 = vld [vmem:[%s1 + $0x30] sm:$0xf]
  %v75 = vld [vmem:[%s1 + $0x34] sm:$0xf]
  %v76 = vld [vmem:[%s1 + $0x38] sm:$0xf]
  %v77 = vld [vmem:[%s1 + $0x3c] sm:$0xf]
  %v78 = vld [vmem:[%s1 + $0x40] sm:$0xf]
  %v79 = vld [vmem:[%s1 + $0x44] sm:$0xf]
  %v80 = vld [vmem:[%s1 + $0x48] sm:$0xf]
  %v81 = vld [vmem:[%s1 + $0x4c] sm:$0xf]
  %v82 = vld [vmem:[%s1 + $0x50] sm:$0xf]
  %v83 = vld [vmem:[%s1 + $0x54] sm:$0xf]
  %v84 = vld [vmem:[%s1 + $0x58] sm:$0xf]
  %v85 = vld [vmem:[%s1 + $0x5c] sm:$0xf]
  %v86 = vld [vmem:[%s1 + $0x60] sm:$0xf]
  %v87 = vld [vmem:[%s1 + $0x64] sm:$0xf]
  %v88 = vld [vmem:[%s1 + $0x68] sm:$0xf]
  %v89 = vld [vmem:[%s1 + $0x6c] sm:$0xf]
  %v90 = vld [vmem:[%s1 + $0x70] sm:$0xf]
  %v91 = vld [vmem:[%s1 + $0x74] sm:$0xf]
  %v92 = vld [vmem:[%s1 + $0x78] sm:$0xf]
  %v93 = vld [vmem:[%s1 + $0x7c] sm:$0xf]
  %v94 = vld [vmem:[%s1 + $0x80] sm:$0xf]
  %v95 = vld [vmem:[%s1 + $0x84] sm:$0xf]
  %v96 = vld [vmem:[%s1 + $0x88] sm:$0xf]
  %v97 = vld [vmem:[%s1 + $0x8c] sm:$0xf]
  %v98 = vld [vmem:[%s1 + $0x90] sm:$0xf]
  %v99 = vld [vmem:[%s1 + $0x94] sm:$0xf]
  %v100 = vld [vmem:[%s1 + $0x98] sm:$0xf]
  %v101 = vld [vmem:[%s1 + $0x9c] sm:$0xf]
  %v102 = vld [vmem:[%s1 + $0xa0] sm:$0xf]
  %v103 = vld [vmem:[%s1 + $0xa4] sm:$0xf]
  %v104 = vld [vmem:[%s1 + $0xa8] sm:$0xf]
  %v105 = vld [vmem:[%s1 + $0xac] sm:$0xf]
  %v106 = vld [vmem:[%s1 + $0xb0] sm:$0xf]
  %v107 = vld [vmem:[%s1 + $0xb4] sm:$0xf]
  %v108 = vld [vmem:[%s1 + $0xb8] sm:$0xf]
  %v109 = vld [vmem:[%s1 + $0xbc] sm:$0xf]
  %v110 = vld [vmem:[%s1 + $0xc0] sm:$0xf]
  %v111 = vld [vmem:[%s1 + $0xc4] sm:$0xf]
  %v112 = vld [vmem:[%s1 + $0xc8] sm:$0xf]
  %v113 = vld [vmem:[%s1 + $0xcc] sm:$0xf]
  %v114 = vld [vmem:[%s1 + $0xd0] sm:$0xf]
  %v115 = vld [vmem:[%s1 + $0xd4] sm:$0xf]
  %v116 = vld [vmem:[%s1 + $0xd8] sm:$0xf]
  %v117 = vld [vmem:[%s1 + $0xdc] sm:$0xf]
  %v118 = vld [vmem:[%s1 + $0xe0] sm:$0xf]
  %v119 = vld [vmem:[%s1 + $0xe4] sm:$0xf]
  %v120 = vld [vmem:[%s1 + $0xe8] sm:$0xf]
  %v121 = vld [vmem:[%s1 + $0xec] sm:$0xf]
  %v122 = vld [vmem:[%s1 + $0xf0] sm:$0xf]
  %v123 = vld [vmem:[%s1 + $0xf4] sm:$0xf]
  %v124 = vld [vmem:[%s1 + $0xf8] sm:$0xf]
  %v125 = vld [vmem:[%s1 + $0xfc] sm:$0xf]
  %v130 = vunpack.c.l.b16 %v56
  %v131 = vunpack.c.h.b16 %v56
  %v132 = vunpack.c.l.b16 %v57
  %v133 = vunpack.c.h.b16 %v57
  %v134 = vunpack.c.l.b16 %v58
  %v135 = vunpack.c.h.b16 %v58
  %v136 = vunpack.c.l.b16 %v59
  %v137 = vunpack.c.h.b16 %v59
  %v138 = vpack.c.b16 %v134, %v130
  %v139 = vpack.c.b16 %v135, %v131
  %v140 = vpack.c.b16 %v136, %v132
  %v141 = vpack.c.b16 %v137, %v133
  %v210 = vunpack.c.l.b16 %v62
  %v211 = vunpack.c.l.b16 %v63
  %v212 = vunpack.c.l.b16 %v64
  %v213 = vunpack.c.l.b16 %v65
  %v214 = vunpack.c.l.b16 %v66
  %v215 = vunpack.c.l.b16 %v67
  %v216 = vunpack.c.l.b16 %v68
  %v217 = vunpack.c.l.b16 %v69
  %v218 = vunpack.c.l.b16 %v70
  %v219 = vunpack.c.l.b16 %v71
  %v220 = vunpack.c.l.b16 %v72
  %v221 = vunpack.c.l.b16 %v73
  %v222 = vunpack.c.l.b16 %v74
  %v223 = vunpack.c.l.b16 %v75
  %v224 = vunpack.c.l.b16 %v76
  %v225 = vunpack.c.l.b16 %v77
  %v226 = vunpack.c.l.b16 %v78
  %v227 = vunpack.c.l.b16 %v79
  %v228 = vunpack.c.l.b16 %v80
  %v229 = vunpack.c.l.b16 %v81
  %v230 = vunpack.c.l.b16 %v82
  %v231 = vunpack.c.l.b16 %v83
  %v232 = vunpack.c.l.b16 %v84
  %v233 = vunpack.c.l.b16 %v85
  %v234 = vunpack.c.l.b16 %v86
  %v235 = vunpack.c.l.b16 %v87
  %v236 = vunpack.c.l.b16 %v88
  %v237 = vunpack.c.l.b16 %v89
  %v238 = vunpack.c.l.b16 %v90
  %v239 = vunpack.c.l.b16 %v91
  %v240 = vunpack.c.l.b16 %v92
  %v241 = vunpack.c.l.b16 %v93
  %v242 = vunpack.c.l.b16 %v94
  %v243 = vunpack.c.l.b16 %v95
  %v244 = vunpack.c.l.b16 %v96
  %v245 = vunpack.c.l.b16 %v97
  %v246 = vunpack.c.l.b16 %v98
  %v247 = vunpack.c.l.b16 %v99
  %v248 = vunpack.c.l.b16 %v100
  %v249 = vunpack.c.l.b16 %v101
  %v250 = vunpack.c.l.b16 %v102
  %v251 = vunpack.c.l.b16 %v103
  %v252 = vunpack.c.l.b16 %v104
  %v253 = vunpack.c.l.b16 %v105
  %v254 = vunpack.c.l.b16 %v106
  %v255 = vunpack.c.l.b16 %v107
  %v256 = vunpack.c.l.b16 %v108
  %v257 = vunpack.c.l.b16 %v109
  %v258 = vunpack.c.l.b16 %v110
  %v259 = vunpack.c.l.b16 %v111
  %v260 = vunpack.c.l.b16 %v112
  %v261 = vunpack.c.l.b16 %v113
  %v262 = vunpack.c.l.b16 %v114
  %v263 = vunpack.c.l.b16 %v115
  %v264 = vunpack.c.l.b16 %v116
  %v265 = vunpack.c.l.b16 %v117
  %v266 = vunpack.c.l.b16 %v118
  %v267 = vunpack.c.l.b16 %v119
  %v268 = vunpack.c.l.b16 %v120
  %v269 = vunpack.c.l.b16 %v121
  %v270 = vunpack.c.l.b16 %v122
  %v271 = vunpack.c.l.b16 %v123
  %v272 = vunpack.c.l.b16 %v124
  %v273 = vunpack.c.l.b16 %v125
  %v274 = vpack.c.b16 %v211, %v210
  %v275 = vpack.c.b16 %v213, %v212
  %v276 = vpack.c.b16 %v215, %v214
  %v277 = vpack.c.b16 %v217, %v216
  %v278 = vpack.c.b16 %v219, %v218
  %v279 = vpack.c.b16 %v221, %v220
  %v280 = vpack.c.b16 %v223, %v222
  %v281 = vpack.c.b16 %v225, %v224
  %v282 = vpack.c.b16 %v227, %v226
  %v283 = vpack.c.b16 %v229, %v228
  %v284 = vpack.c.b16 %v231, %v230
  %v285 = vpack.c.b16 %v233, %v232
  %v286 = vpack.c.b16 %v235, %v234
  %v287 = vpack.c.b16 %v237, %v236
  %v288 = vpack.c.b16 %v239, %v238
  %v289 = vpack.c.b16 %v241, %v240
  %v290 = vpack.c.b16 %v243, %v242
  %v291 = vpack.c.b16 %v245, %v244
  %v292 = vpack.c.b16 %v247, %v246
  %v293 = vpack.c.b16 %v249, %v248
  %v294 = vpack.c.b16 %v251, %v250
  %v295 = vpack.c.b16 %v253, %v252
  %v296 = vpack.c.b16 %v255, %v254
  %v297 = vpack.c.b16 %v257, %v256
  %v298 = vpack.c.b16 %v259, %v258
  %v299 = vpack.c.b16 %v261, %v260
  %v300 = vpack.c.b16 %v263, %v262
  %v301 = vpack.c.b16 %v265, %v264
  %v302 = vpack.c.b16 %v267, %v266
  %v303 = vpack.c.b16 %v269, %v268
  %v304 = vpack.c.b16 %v271, %v270
  %v305 = vpack.c.b16 %v273, %v272
  %338 = vmatpush.bf16.msra.mxu0 %v281
  %339 = vmatpush.bf16.msra.mxu0 %v280
  %340 = vmatpush.bf16.msra.mxu0 %v279
  %341 = vmatpush.bf16.msra.mxu0 %v278
  %342 = vmatpush.bf16.msra.mxu0 %v277
  %343 = vmatpush.bf16.msra.mxu0 %v276
  %344 = vmatpush.bf16.msra.mxu0 %v275
  %345 = vmatpush.bf16.msra.mxu0 %v274
  %346 = vmatmul.bf16.gmra.mxu0 %v138
  %v347 = vpop.f32.mrf.mxu0
  %v348 = vadd.f32 0.0, %v347
  %v349 = vpop.f32.mrf.mxu0
  %v350 = vadd.f32 0.0, %v349
  %351 = vdwg.mxu0
  %352 = vmatpush.bf16.msra.mxu0 %v289
  %353 = vmatpush.bf16.msra.mxu0 %v288
  %354 = vmatpush.bf16.msra.mxu0 %v287
  %355 = vmatpush.bf16.msra.mxu0 %v286
  %356 = vmatpush.bf16.msra.mxu0 %v285
  %357 = vmatpush.bf16.msra.mxu0 %v284
  %358 = vmatpush.bf16.msra.mxu0 %v283
  %359 = vmatpush.bf16.msra.mxu0 %v282
  %360 = vmatmul.bf16.gmra.mxu0 %v139
  %v361 = vpop.f32.mrf.mxu0
  %v362 = vadd.f32 %v348, %v361
  %v363 = vpop.f32.mrf.mxu0
  %v364 = vadd.f32 %v350, %v363
  %365 = vdwg.mxu0
  %366 = vmatpush.bf16.msra.mxu0 %v297
  %367 = vmatpush.bf16.msra.mxu0 %v296
  %368 = vmatpush.bf16.msra.mxu0 %v295
  %369 = vmatpush.bf16.msra.mxu0 %v294
  %370 = vmatpush.bf16.msra.mxu0 %v293
  %371 = vmatpush.bf16.msra.mxu0 %v292
  %372 = vmatpush.bf16.msra.mxu0 %v291
  %373 = vmatpush.bf16.msra.mxu0 %v290
  %374 = vmatmul.bf16.gmra.mxu0 %v140
  %v375 = vpop.f32.mrf.mxu0
  %v376 = vadd.f32 %v362, %v375
  %v377 = vpop.f32.mrf.mxu0
  %v378 = vadd.f32 %v364, %v377
  %379 = vdwg.mxu0
  %380 = vmatpush.bf16.msra.mxu0 %v305
  %381 = vmatpush.bf16.msra.mxu0 %v304
  %382 = vmatpush.bf16.msra.mxu0 %v303
  %383 = vmatpush.bf16.msra.mxu0 %v302
  %384 = vmatpush.bf16.msra.mxu0 %v301
  %385 = vmatpush.bf16.msra.mxu0 %v300
  %386 = vmatpush.bf16.msra.mxu0 %v299
  %387 = vmatpush.bf16.msra.mxu0 %v298
  %388 = vmatmul.bf16.gmra.mxu0 %v141
  %v389 = vpop.f32.mrf.mxu0
  %v390 = vadd.f32 %v376, %v389
  %v391 = vpop.f32.mrf.mxu0
  %v392 = vadd.f32 %v378, %v391
  %393 = vdwg.mxu0
  %v394 = vadd.f32 %v60, %v390
  %v395 = vadd.f32 %v61, %v392
  %396 = vst [vmem:[#allocation2] sm:$0xff] %v394
  %397 = vst [vmem:[#allocation2 + $0x8] sm:$0xff] %v395
  // Predicated region
  $region18: #{pix2pix_forward.37} parent=0 // pred_check
    %p398 = pneg %p14
  $region19: #{pix2pix_forward.37} parent=0 // pred_check_branch
    %400 = sbr.rel (%p398) target = $region21
  $region20: #{pix2pix_forward.37} parent=0 // pred_region
    %v401 = vld [vmem:[#allocation2] sm:$0xff]
    %v402 = vld [vmem:[#allocation2 + $0x8] sm:$0xff]
    %v403 = vld [vmem:[%s2] sm:$0x1]
    %v405 = vperm.slane %v403, 0
    %v407 = vadd.f32 %v401, %v405
    %v408 = vadd.f32 %v402, %v405
    %409 = vst [vmem:[%s3] sm:$0xff] %v407
    %410 = vst [vmem:[%s3 + $0x8] sm:$0xff] %v408
  $region21: #{pix2pix_forward.37} parent=0 // pred_fallthru
    _
  // Predicated region
  $region22: #{pix2pix_forward.37} parent=0 // pred_check
    _
  $region23: #{pix2pix_forward.37} parent=0 // pred_check_branch
    %412 = sbr.rel (0) target = $region25
  $region24: #{pix2pix_forward.37} parent=0 // pred_region
    _
  $region25: #{pix2pix_forward.37} parent=0 // pred_fallthru
    _
  // Predicated region
  $region26: #{pix2pix_forward.37} parent=0 // pred_check
    _
  $region27: #{pix2pix_forward.37} parent=0 // pred_check_branch
    %414 = sbr.rel (0) target = $region29
  $region28: #{pix2pix_forward.37} parent=0 // pred_region
    _
  $region29: #{pix2pix_forward.37} parent=0 // pred_fallthru
    _

// kernel: pix2pix_forward.39
$region0: #{pix2pix_forward.39}
  #allocation0 [shape = 'u32[]', space=smem, size = 0x4, offset = 0x4, fixed_abs, tag = 'smem constant byte address 0x4 - core index']
  #allocation1 [shape = 'u32[72,128]{1,0:T(1,128)}', space=vmem, size = 0x9000, scoped, tag = 'internal scratch']
  #allocation2 [shape = 'f32[16,128]{1,0:T(8,128)}', space=vmem, size = 0x2000, scoped, tag = 'scratch operand']
  %s0 = inlined_call_operand.vmem [shape: bf16[16,1024], index: 0, kind: input, shape index: {}]
  %s1 = inlined_call_operand.vmem [shape: bf16[1024,128], index: 1, kind: input, shape index: {}]
  %s2 = inlined_call_operand.vmem [shape: f32[1,128], index: 2, kind: input, shape index: {}]
  %s3 = inlined_call_operand.vmem [shape: f32[16,128], index: 3, kind: output, shape index: {}]
  %s4 = sld [smem:[#allocation0]]
  $region76: #{pix2pix_forward.39} parent=0
    _
  %s6 = ssub.s32 1, %s4
  %s7 = scalar_select 0, %s6, %s4
  $region1: #{pix2pix_forward.39} parent=0
    #allocation3 [shape = 'u8[32768]{0}', space=vmem, size = 0x8000, scoped, tag = 'input window, operand 0']
    loop: start=0, step=1, limit=4
    $region2: #{pix2pix_forward.39} parent=1 // loop_pre_header
      _
    $region3: #{pix2pix_forward.39} parent=1 // loop_header
      %s9 = sphi 0, %s13
      %p10 = scmp.ge.s32.totalorder %s9, 4
      %s16 = sphi 0, %s35
      %s17 = sphi 0, %s31
      %s18 = sphi 0, %s27
      %s19 = sphi 0, %s16
      %s20 = sphi 0, %s17
      %s21 = sphi 0, %s18
      %s22 = sphi 0, %s19
      %s23 = sphi 0, %s20
      %s24 = sphi 0, %s21
      %s40 = sphi 0, %s42
      %s43 = sphi 0, %s40
      %s44 = sphi 0, %s43
      %s60 = sphi 0, %s44
      %s68 = sphi 0, %s70
      %s71 = sphi 0, %s68
      %s72 = sphi 0, %s71
      %s88 = sphi 0, %s72
      %s94 = sphi 0, %s96
      %s97 = sphi 0, %s94
      %s98 = sphi 0, %s97
      %s114 = sphi 0, %s98
      %s122 = sphi 0, %s124
      %s125 = sphi 0, %s122
      %s126 = sphi 0, %s125
      %s142 = sphi 0, %s126
    $region4: #{pix2pix_forward.39} parent=1 // loop_header_branch
      %12 = sbr.rel (%p10) target = $region8
    $region5: #{pix2pix_forward.39} parent=1 // loop_body
      %s14 = ssub.s32 %s9, 1
      %s15 = ssub.s32 %s9, 2
      %s25 = sadd.s32 1, %s18
      %p26 = scmp.ge.s32.totalorder %s25, 2
      %s27 = scalar_select %p26, 0, %s25
      %s28 = sadd.s32 1, %s17
      %s29 = scalar_select %p26, %s28, %s17
      %p30 = scmp.ge.s32.totalorder %s29, 1
      %s31 = scalar_select %p30, 0, %s29
      %s32 = sadd.s32 1, %s16
      %s33 = scalar_select %p30, %s32, %s16
      %p34 = scmp.ge.s32.totalorder %s33, 1
      %s35 = scalar_select %p34, 0, %s33
      %s36 = ssub.s32 %s16, %s35
      %s37 = ssub.s32 %s18, %s27
      %s38 = sor.u32 %s36, %s37
      %p39 = scmp.eq.s32.totalorder %s38, 0
      %s41 = sadd.s32 %s40, 1
      %s42 = scalar_select %p39, %s40, %s41
      %p45 = pneg %p39
      %p46 = scmp.eq.s32.totalorder %s9, 1
      %p47 = por %p45, %p46
      %p48 = scmp.ne.s32.totalorder %s40, %s43
      %p49 = scmp.eq.s32.totalorder %s9, 0
      %p50 = por %p48, %p49
      %p51 = scmp.ne.s32.totalorder %s40, %s43
      %p52 = scmp.eq.s32.totalorder %s14, 1
      %p53 = por %p51, %p52
      %p54 = scmp.ne.s32.totalorder %s43, %s44
      %p55 = scmp.eq.s32.totalorder %s14, 0
      %p56 = por %p54, %p55
      %p57 = scmp.ne.s32.totalorder %s43, %s44
      %p58 = scmp.eq.s32.totalorder %s15, 1
      %p59 = por %p57, %p58
      %p61 = scmp.ne.s32.totalorder %s44, %s60
      %p62 = scmp.eq.s32.totalorder %s15, 0
      %p63 = por %p61, %p62
      %s64 = ssub.s32 %s18, %s27
      %s65 = ssub.s32 %s17, %s31
      %s66 = sor.u32 %s64, %s65
      %p67 = scmp.eq.s32.totalorder %s66, 0
      %s69 = sadd.s32 %s68, 1
      %s70 = scalar_select %p67, %s68, %s69
      %p73 = pneg %p67
      %p74 = scmp.eq.s32.totalorder %s9, 1
      %p75 = por %p73, %p74
      %p76 = scmp.ne.s32.totalorder %s68, %s71
      %p77 = scmp.eq.s32.totalorder %s9, 0
      %p78 = por %p76, %p77
      %p79 = scmp.ne.s32.totalorder %s68, %s71
      %p80 = scmp.eq.s32.totalorder %s14, 1
      %p81 = por %p79, %p80
      %p82 = scmp.ne.s32.totalorder %s71, %s72
      %p83 = scmp.eq.s32.totalorder %s14, 0
      %p84 = por %p82, %p83
      %p85 = scmp.ne.s32.totalorder %s71, %s72
      %p86 = scmp.eq.s32.totalorder %s15, 1
      %p87 = por %p85, %p86
      %p89 = scmp.ne.s32.totalorder %s72, %s88
      %p90 = scmp.eq.s32.totalorder %s15, 0
      %p91 = por %p89, %p90
      %s92 = ssub.s32 %s17, %s31
      %p93 = scmp.eq.s32.totalorder %s92, 0
      %s95 = sadd.s32 %s94, 1
      %s96 = scalar_select %p93, %s94, %s95
      %p99 = pneg %p93
      %p100 = scmp.eq.s32.totalorder %s9, 1
      %p101 = por %p99, %p100
      %p102 = scmp.ne.s32.totalorder %s94, %s97
      %p103 = scmp.eq.s32.totalorder %s9, 0
      %p104 = por %p102, %p103
      %p105 = scmp.ne.s32.totalorder %s94, %s97
      %p106 = scmp.eq.s32.totalorder %s14, 1
      %p107 = por %p105, %p106
      %p108 = scmp.ne.s32.totalorder %s97, %s98
      %p109 = scmp.eq.s32.totalorder %s14, 0
      %p110 = por %p108, %p109
      %p111 = scmp.ne.s32.totalorder %s97, %s98
      %p112 = scmp.eq.s32.totalorder %s15, 1
      %p113 = por %p111, %p112
      %p115 = scmp.ne.s32.totalorder %s98, %s114
      %p116 = scmp.eq.s32.totalorder %s15, 0
      %p117 = por %p115, %p116
      %s118 = ssub.s32 %s16, %s35
      %s119 = ssub.s32 %s17, %s31
      %s120 = sor.u32 %s118, %s119
      %p121 = scmp.eq.s32.totalorder %s120, 0
      %s123 = sadd.s32 %s122, 1
      %s124 = scalar_select %p121, %s122, %s123
      %p127 = pneg %p121
      %p128 = scmp.eq.s32.totalorder %s9, 1
      %p129 = por %p127, %p128
      %p130 = scmp.ne.s32.totalorder %s122, %s125
      %p131 = scmp.eq.s32.totalorder %s9, 0
      %p132 = por %p130, %p131
      %p133 = scmp.ne.s32.totalorder %s122, %s125
      %p134 = scmp.eq.s32.totalorder %s14, 1
      %p135 = por %p133, %p134
      %p136 = scmp.ne.s32.totalorder %s125, %s126
      %p137 = scmp.eq.s32.totalorder %s14, 0
      %p138 = por %p136, %p137
      %p139 = scmp.ne.s32.totalorder %s125, %s126
      %p140 = scmp.eq.s32.totalorder %s15, 1
      %p141 = por %p139, %p140
      %p143 = scmp.ne.s32.totalorder %s126, %s142
      %p144 = scmp.eq.s32.totalorder %s15, 0
      %p145 = por %p143, %p144
      %p146 = scmp.le.s32.totalorder 1, %s9
      %p147 = scmp.lt.s32.totalorder %s9, 3
      %p148 = pnand %p146, %p147
      %p149 = pneg %p148
      // Predicated region
      $region9: #{pix2pix_forward.39} parent=5 // pred_check
        _
      $region10: #{pix2pix_forward.39} parent=5 // pred_check_branch
        %151 = sbr.rel (%p148) target = $region12
      $region11: #{pix2pix_forward.39} parent=5 // pred_region
        %s152 = ssub.s32 %s9, 1
        // Predicated region
        $region13: #{pix2pix_forward.39} parent=11 // pred_check
          %p153 = pneg %p110
        $region14: #{pix2pix_forward.39} parent=11 // pred_check_branch
          %155 = sbr.rel (%p153) target = $region16
        $region15: #{pix2pix_forward.39} parent=11 // pred_region
          %p156 = scmp.lt.s32.totalorder %s20, 0
          %s157 = scalar_select %p156, %s20, 0
          %s158 = scalar_lea.vmem %s2, %s157
        $region16: #{pix2pix_forward.39} parent=11 // pred_fallthru
          _
      $region12: #{pix2pix_forward.39} parent=5 // pred_fallthru
        _
      %p159 = scmp.lt.s32.totalorder %s9, 2
      // Predicated region
      $region17: #{pix2pix_forward.39} parent=5 // pred_check
        %p160 = pneg %p159
      $region18: #{pix2pix_forward.39} parent=5 // pred_check_branch
        %162 = sbr.rel (%p160) target = $region20
      $region19: #{pix2pix_forward.39} parent=5 // pred_region
        // Predicated region
        $region21: #{pix2pix_forward.39} parent=19 // pred_check
          %p163 = pneg %p50
        $region22: #{pix2pix_forward.39} parent=19 // pred_check_branch
          %165 = sbr.rel (%p163) target = $region24
        $region23: #{pix2pix_forward.39} parent=19 // pred_region
          %s166 = sand.u32 %s40, 1
          %s167 = sand.u32 %s40, 1
          %s168 = smul.addr %s167, 32
          %s169 = scalar_lea.vmem [#allocation3], %s168
          %s170 = smul.u32 2, %s16
          %s171 = smul.u32 4, %s18
          %s172 = smul.addr %s170, 8
          %s173 = sadd.s32 %s171, %s172
          %s174 = smul.addr %s173, 4
          %s175 = scalar_lea.vmem %s0, %s174
          // Predicated region
          $region25: #{pix2pix_forward.39} parent=23 // pred_check
            _
          $region26: #{pix2pix_forward.39} parent=23 // pred_check_branch
            %177 = sbr.rel (0) target = $region28
          $region27: #{pix2pix_forward.39} parent=23 // pred_region
            // Predicated region
            $region29: #{pix2pix_forward.39} parent=27 // pred_check
              _
            $region30: #{pix2pix_forward.39} parent=27 // pred_check_branch
              %179 = sbr.rel (0) target = $region32
            $region31: #{pix2pix_forward.39} parent=27 // pred_region
              loop: start=0, step=1, limit=1
              $region33: #{pix2pix_forward.39} parent=31 // loop_pre_header
                _
              $region34: #{pix2pix_forward.39} parent=31 // loop_header
                %s181 = sphi 0, %s185
                %p182 = scmp.ge.s32.totalorder %s181, 1
                %s186 = sphi %s175, %s175
                %s187 = sphi %s169, %s169
              $region35: #{pix2pix_forward.39} parent=31 // loop_header_branch
                %184 = sbr.rel (%p182) target = $region39
              $region36: #{pix2pix_forward.39} parent=31 // loop_body
                %v188 = vld [vmem:[%s186] sm:$0xff]
                %189 = vst [vmem:[%s187] sm:$0xff] %v188
                %v190 = vld [vmem:[%s186 + $0x8] sm:$0xff]
                %191 = vst [vmem:[%s187 + $0x8] sm:$0xff] %v190
                %v192 = vld [vmem:[%s186 + $0x20] sm:$0xff]
                %193 = vst [vmem:[%s187 + $0x10] sm:$0xff] %v192
                %v194 = vld [vmem:[%s186 + $0x28] sm:$0xff]
                %195 = vst [vmem:[%s187 + $0x18] sm:$0xff] %v194
              $region37: #{pix2pix_forward.39} parent=31 // loop_footer
                %s185 = sadd.s32 1, %s181
              $region38: #{pix2pix_forward.39} parent=31 // loop_footer_branch
                %180 = sbr.rel target = $region34
              $region39: #{pix2pix_forward.39} parent=31 // loop_exit
                _
            $region32: #{pix2pix_forward.39} parent=27 // pred_fallthru
              _
            // Predicated region
            $region40: #{pix2pix_forward.39} parent=27 // pred_check
              _
            $region41: #{pix2pix_forward.39} parent=27 // pred_check_branch
              %197 = sbr.rel target = $region43
            $region42: #{pix2pix_forward.39} parent=27 // pred_region
              _
            $region43: #{pix2pix_forward.39} parent=27 // pred_fallthru
              _
          $region28: #{pix2pix_forward.39} parent=23 // pred_fallthru
            _
          %198 = vnop
        $region24: #{pix2pix_forward.39} parent=19 // pred_fallthru
          _
        // Predicated region
        $region44: #{pix2pix_forward.39} parent=19 // pred_check
          %p199 = pneg %p78
        $region45: #{pix2pix_forward.39} parent=19 // pred_check_branch
          %201 = sbr.rel (%p199) target = $region47
        $region46: #{pix2pix_forward.39} parent=19 // pred_region
          %s202 = smul.u32 64, %s18
          %p203 = scmp.lt.s32.totalorder %s202, 127
          %s204 = scalar_select %p203, %s202, 127
          %p205 = scmp.lt.s32.totalorder %s17, 0
          %s206 = scalar_select %p205, %s17, 0
          %s207 = sadd.s32 %s206, %s204
          %s208 = smul.addr %s207, 4
          %s209 = scalar_lea.vmem %s1, %s208
          %s210 = smul.u32 64, %s18
        $region47: #{pix2pix_forward.39} parent=19 // pred_fallthru
          _
      $region20: #{pix2pix_forward.39} parent=5 // pred_fallthru
        _
      %p211 = scmp.le.s32.totalorder 1, %s9
      %p212 = scmp.lt.s32.totalorder %s9, 3
      %p213 = pnand %p211, %p212
      %p214 = pneg %p213
      // Predicated region
      $region48: #{pix2pix_forward.39} parent=5 // pred_check
        _
      $region49: #{pix2pix_forward.39} parent=5 // pred_check_branch
        %216 = sbr.rel (%p213) target = $region51
      $region50: #{pix2pix_forward.39} parent=5 // pred_region
        %s217 = ssub.s32 %s9, 1
        %s218 = sand.u32 %s43, 1
        %s219 = sand.u32 %s43, 1
        %s220 = smul.addr %s219, 32
        %s221 = scalar_lea.vmem [#allocation3], %s220
        // Predicated region
        $region52: #{pix2pix_forward.39} parent=50 // pred_check
          %p222 = pneg %p56
        $region53: #{pix2pix_forward.39} parent=50 // pred_check_branch
          %224 = sbr.rel (%p222) target = $region55
        $region54: #{pix2pix_forward.39} parent=50 // pred_region
          _
        $region55: #{pix2pix_forward.39} parent=50 // pred_fallthru
          _
        %s225 = sand.u32 %s43, 1
        %s226 = sand.u32 %s43, 1
        %s227 = smul.addr %s226, 32
        %s228 = scalar_lea.vmem [#allocation3], %s227
        %p229 = pneg %p56
        %p230 = pneg %p53
        %s231 = smul.u32 64, %s21
        %p232 = scmp.lt.s32.totalorder %s231, 127
        %s233 = scalar_select %p232, %s231, 127
        %p234 = scmp.lt.s32.totalorder %s20, 0
        %s235 = scalar_select %p234, %s20, 0
        %s236 = sadd.s32 %s235, %s233
        %s237 = smul.addr %s236, 4
        %s238 = scalar_lea.vmem %s1, %s237
        %p239 = pneg %p84
        %p240 = pneg %p81
        %p241 = scmp.lt.s32.totalorder %s20, 0
        %s242 = scalar_select %p241, %s20, 0
        %s243 = scalar_lea.vmem %s2, %s242
        %p244 = pneg %p110
        %p245 = pneg %p107
        %p246 = pneg %p138
        %p247 = pneg %p135
        %s248 = smul.u32 2, %s19
        %p249 = scmp.lt.s32.totalorder %s248, 1
        %s250 = scalar_select %p249, %s248, 1
        %p251 = scmp.lt.s32.totalorder %s20, 0
        %s252 = scalar_select %p251, %s20, 0
        %s253 = sadd.s32 %s252, %s250
        %s254 = smul.addr %s253, 8
        %s255 = scalar_lea.vmem %s3, %s254
        %s256 = smul.u32 2, %s19
        %s257 = smul.u32 4, %s21
        %s258 = smul.u32 64, %s21
        %p259 = scmp.lt.s32.totalorder %s258, 127
        %s260 = scalar_select %p259, %s258, 127
        %p261 = scmp.lt.s32.totalorder %s20, 0
        %s262 = scalar_select %p261, %s20, 0
        %s263 = sadd.s32 %s262, %s260
        %s264 = smul.addr %s263, 4
        %s265 = scalar_lea.vmem %s1, %s264
        %s266 = smul.u32 64, %s21
        %p267 = scmp.lt.s32.totalorder %s20, 0
        %s268 = scalar_select %p267, %s20, 0
        %s269 = scalar_lea.vmem %s2, %s268
        %s270 = smul.u32 2, %s19
        %p271 = scmp.lt.s32.totalorder %s270, 1
        %s272 = scalar_select %p271, %s270, 1
        %p273 = scmp.lt.s32.totalorder %s20, 0
        %s274 = scalar_select %p273, %s20, 0
        %s275 = sadd.s32 %s274, %s272
        %s276 = smul.addr %s275, 8
        %s277 = scalar_lea.vmem %s3, %s276
        %s278 = smul.u32 2, %s19
        %p279 = scmp.eq.s32.totalorder %s21, 0
        // Predicated region
        $region56: #{pix2pix_forward.39} parent=50 // pred_check
          %p280 = pneg %p279
        $region57: #{pix2pix_forward.39} parent=50 // pred_check_branch
          %282 = sbr.rel (%p280) target = $region59
        $region58: #{pix2pix_forward.39} parent=50 // pred_region
          %283 = vst [vmem:[#allocation2] sm:$0xff] 0.0
          %284 = vst [vmem:[#allocation2 + $0x8] sm:$0xff] 0.0
        $region59: #{pix2pix_forward.39} parent=50 // pred_fallthru
          _
        %v285 = vld [vmem:[%s221] sm:$0xff]
        %v286 = vld [vmem:[%s221 + $0x8] sm:$0xff]
        %v287 = vld [vmem:[%s221 + $0x10] sm:$0xff]
        %v288 = vld [vmem:[%s221 + $0x18] sm:$0xff]
        %v289 = vunpack.c.l.bf16 %v285
        %v290 = vunpack.c.h.bf16 %v285
        %v291 = vunpack.c.l.bf16 %v286
        %v292 = vunpack.c.h.bf16 %v286
        %v293 = vunpack.c.l.bf16 %v287
        %v294 = vunpack.c.h.bf16 %v287
        %v295 = vunpack.c.l.bf16 %v288
        %v296 = vunpack.c.h.bf16 %v288
        %vm297 = vcmp.ge.f32.partialorder %v289, 0.0
        %vm298 = vcmp.ge.f32.partialorder %v290, 0.0
        %vm299 = vcmp.ge.f32.partialorder %v291, 0.0
        %vm300 = vcmp.ge.f32.partialorder %v292, 0.0
        %vm301 = vcmp.ge.f32.partialorder %v293, 0.0
        %vm302 = vcmp.ge.f32.partialorder %v294, 0.0
        %vm303 = vcmp.ge.f32.partialorder %v295, 0.0
        %vm304 = vcmp.ge.f32.partialorder %v296, 0.0
        %v305 = vmul.f32 %v289, 0.20019531
        %v306 = vmul.f32 %v290, 0.20019531
        %v307 = vmul.f32 %v291, 0.20019531
        %v308 = vmul.f32 %v292, 0.20019531
        %v309 = vmul.f32 %v293, 0.20019531
        %v310 = vmul.f32 %v294, 0.20019531
        %v311 = vmul.f32 %v295, 0.20019531
        %v312 = vmul.f32 %v296, 0.20019531
        %v313 = vpack.c.bf16 %v306, %v305
        %v314 = vpack.c.bf16 %v308, %v307
        %v315 = vpack.c.bf16 %v310, %v309
        %v316 = vpack.c.bf16 %v312, %v311
        %vm317 = vmpackc.low %vm298, %vm297
        %vm318 = vmpackc.low %vm300, %vm299
        %vm319 = vmpackc.low %vm302, %vm301
        %vm320 = vmpackc.low %vm304, %vm303
        %v321 = vsel %vm317, %v285, %v313
        %v322 = vsel %vm318, %v286, %v314
        %v323 = vsel %vm319, %v287, %v315
        %v324 = vsel %vm320, %v288, %v316
        %v325 = vld [vmem:[#allocation2] sm:$0xff]
        %v326 = vld [vmem:[#allocation2 + $0x8] sm:$0xff]
        %v327 = vld [vmem:[%s265] sm:$0xf]
        %v328 = vld [vmem:[%s265 + $0x4] sm:$0xf]
        %v329 = vld [vmem:[%s265 + $0x8] sm:$0xf]
        %v330 = vld [vmem:[%s265 + $0xc] sm:$0xf]
        %v331 = vld [vmem:[%s265 + $0x10] sm:$0xf]
        %v332 = vld [vmem:[%s265 + $0x14] sm:$0xf]
        %v333 = vld [vmem:[%s265 + $0x18] sm:$0xf]
        %v334 = vld [vmem:[%s265 + $0x1c] sm:$0xf]
        %v335 = vld [vmem:[%s265 + $0x20] sm:$0xf]
        %v336 = vld [vmem:[%s265 + $0x24] sm:$0xf]
        %v337 = vld [vmem:[%s265 + $0x28] sm:$0xf]
        %v338 = vld [vmem:[%s265 + $0x2c] sm:$0xf]
        %v339 = vld [vmem:[%s265 + $0x30] sm:$0xf]
        %v340 = vld [vmem:[%s265 + $0x34] sm:$0xf]
        %v341 = vld [vmem:[%s265 + $0x38] sm:$0xf]
        %v342 = vld [vmem:[%s265 + $0x3c] sm:$0xf]
        %v343 = vld [vmem:[%s265 + $0x40] sm:$0xf]
        %v344 = vld [vmem:[%s265 + $0x44] sm:$0xf]
        %v345 = vld [vmem:[%s265 + $0x48] sm:$0xf]
        %v346 = vld [vmem:[%s265 + $0x4c] sm:$0xf]
        %v347 = vld [vmem:[%s265 + $0x50] sm:$0xf]
        %v348 = vld [vmem:[%s265 + $0x54] sm:$0xf]
        %v349 = vld [vmem:[%s265 + $0x58] sm:$0xf]
        %v350 = vld [vmem:[%s265 + $0x5c] sm:$0xf]
        %v351 = vld [vmem:[%s265 + $0x60] sm:$0xf]
        %v352 = vld [vmem:[%s265 + $0x64] sm:$0xf]
        %v353 = vld [vmem:[%s265 + $0x68] sm:$0xf]
        %v354 = vld [vmem:[%s265 + $0x6c] sm:$0xf]
        %v355 = vld [vmem:[%s265 + $0x70] sm:$0xf]
        %v356 = vld [vmem:[%s265 + $0x74] sm:$0xf]
        %v357 = vld [vmem:[%s265 + $0x78] sm:$0xf]
        %v358 = vld [vmem:[%s265 + $0x7c] sm:$0xf]
        %v359 = vld [vmem:[%s265 + $0x80] sm:$0xf]
        %v360 = vld [vmem:[%s265 + $0x84] sm:$0xf]
        %v361 = vld [vmem:[%s265 + $0x88] sm:$0xf]
        %v362 = vld [vmem:[%s265 + $0x8c] sm:$0xf]
        %v363 = vld [vmem:[%s265 + $0x90] sm:$0xf]
        %v364 = vld [vmem:[%s265 + $0x94] sm:$0xf]
        %v365 = vld [vmem:[%s265 + $0x98] sm:$0xf]
        %v366 = vld [vmem:[%s265 + $0x9c] sm:$0xf]
        %v367 = vld [vmem:[%s265 + $0xa0] sm:$0xf]
        %v368 = vld [vmem:[%s265 + $0xa4] sm:$0xf]
        %v369 = vld [vmem:[%s265 + $0xa8] sm:$0xf]
        %v370 = vld [vmem:[%s265 + $0xac] sm:$0xf]
        %v371 = vld [vmem:[%s265 + $0xb0] sm:$0xf]
        %v372 = vld [vmem:[%s265 + $0xb4] sm:$0xf]
        %v373 = vld [vmem:[%s265 + $0xb8] sm:$0xf]
        %v374 = vld [vmem:[%s265 + $0xbc] sm:$0xf]
        %v375 = vld [vmem:[%s265 + $0xc0] sm:$0xf]
        %v376 = vld [vmem:[%s265 + $0xc4] sm:$0xf]
        %v377 = vld [vmem:[%s265 + $0xc8] sm:$0xf]
        %v378 = vld [vmem:[%s265 + $0xcc] sm:$0xf]
        %v379 = vld [vmem:[%s265 + $0xd0] sm:$0xf]
        %v380 = vld [vmem:[%s265 + $0xd4] sm:$0xf]
        %v381 = vld [vmem:[%s265 + $0xd8] sm:$0xf]
        %v382 = vld [vmem:[%s265 + $0xdc] sm:$0xf]
        %v383 = vld [vmem:[%s265 + $0xe0] sm:$0xf]
        %v384 = vld [vmem:[%s265 + $0xe4] sm:$0xf]
        %v385 = vld [vmem:[%s265 + $0xe8] sm:$0xf]
        %v386 = vld [vmem:[%s265 + $0xec] sm:$0xf]
        %v387 = vld [vmem:[%s265 + $0xf0] sm:$0xf]
        %v388 = vld [vmem:[%s265 + $0xf4] sm:$0xf]
        %v389 = vld [vmem:[%s265 + $0xf8] sm:$0xf]
        %v390 = vld [vmem:[%s265 + $0xfc] sm:$0xf]
        %v395 = vunpack.c.l.b16 %v321
        %v396 = vunpack.c.h.b16 %v321
        %v397 = vunpack.c.l.b16 %v322
        %v398 = vunpack.c.h.b16 %v322
        %v399 = vunpack.c.l.b16 %v323
        %v400 = vunpack.c.h.b16 %v323
        %v401 = vunpack.c.l.b16 %v324
        %v402 = vunpack.c.h.b16 %v324
        %v403 = vpack.c.b16 %v399, %v395
        %v404 = vpack.c.b16 %v400, %v396
        %v405 = vpack.c.b16 %v401, %v397
        %v406 = vpack.c.b16 %v402, %v398
        %v475 = vunpack.c.l.b16 %v327
        %v476 = vunpack.c.l.b16 %v328
        %v477 = vunpack.c.l.b16 %v329
        %v478 = vunpack.c.l.b16 %v330
        %v479 = vunpack.c.l.b16 %v331
        %v480 = vunpack.c.l.b16 %v332
        %v481 = vunpack.c.l.b16 %v333
        %v482 = vunpack.c.l.b16 %v334
        %v483 = vunpack.c.l.b16 %v335
        %v484 = vunpack.c.l.b16 %v336
        %v485 = vunpack.c.l.b16 %v337
        %v486 = vunpack.c.l.b16 %v338
        %v487 = vunpack.c.l.b16 %v339
        %v488 = vunpack.c.l.b16 %v340
        %v489 = vunpack.c.l.b16 %v341
        %v490 = vunpack.c.l.b16 %v342
        %v491 = vunpack.c.l.b16 %v343
        %v492 = vunpack.c.l.b16 %v344
        %v493 = vunpack.c.l.b16 %v345
        %v494 = vunpack.c.l.b16 %v346
        %v495 = vunpack.c.l.b16 %v347
        %v496 = vunpack.c.l.b16 %v348
        %v497 = vunpack.c.l.b16 %v349
        %v498 = vunpack.c.l.b16 %v350
        %v499 = vunpack.c.l.b16 %v351
        %v500 = vunpack.c.l.b16 %v352
        %v501 = vunpack.c.l.b16 %v353
        %v502 = vunpack.c.l.b16 %v354
        %v503 = vunpack.c.l.b16 %v355
        %v504 = vunpack.c.l.b16 %v356
        %v505 = vunpack.c.l.b16 %v357
        %v506 = vunpack.c.l.b16 %v358
        %v507 = vunpack.c.l.b16 %v359
        %v508 = vunpack.c.l.b16 %v360
        %v509 = vunpack.c.l.b16 %v361
        %v510 = vunpack.c.l.b16 %v362
        %v511 = vunpack.c.l.b16 %v363
        %v512 = vunpack.c.l.b16 %v364
        %v513 = vunpack.c.l.b16 %v365
        %v514 = vunpack.c.l.b16 %v366
        %v515 = vunpack.c.l.b16 %v367
        %v516 = vunpack.c.l.b16 %v368
        %v517 = vunpack.c.l.b16 %v369
        %v518 = vunpack.c.l.b16 %v370
        %v519 = vunpack.c.l.b16 %v371
        %v520 = vunpack.c.l.b16 %v372
        %v521 = vunpack.c.l.b16 %v373
        %v522 = vunpack.c.l.b16 %v374
        %v523 = vunpack.c.l.b16 %v375
        %v524 = vunpack.c.l.b16 %v376
        %v525 = vunpack.c.l.b16 %v377
        %v526 = vunpack.c.l.b16 %v378
        %v527 = vunpack.c.l.b16 %v379
        %v528 = vunpack.c.l.b16 %v380
        %v529 = vunpack.c.l.b16 %v381
        %v530 = vunpack.c.l.b16 %v382
        %v531 = vunpack.c.l.b16 %v383
        %v532 = vunpack.c.l.b16 %v384
        %v533 = vunpack.c.l.b16 %v385
        %v534 = vunpack.c.l.b16 %v386
        %v535 = vunpack.c.l.b16 %v387
        %v536 = vunpack.c.l.b16 %v388
        %v537 = vunpack.c.l.b16 %v389
        %v538 = vunpack.c.l.b16 %v390
        %v539 = vpack.c.b16 %v476, %v475
        %v540 = vpack.c.b16 %v478, %v477
        %v541 = vpack.c.b16 %v480, %v479
        %v542 = vpack.c.b16 %v482, %v481
        %v543 = vpack.c.b16 %v484, %v483
        %v544 = vpack.c.b16 %v486, %v485
        %v545 = vpack.c.b16 %v488, %v487
        %v546 = vpack.c.b16 %v490, %v489
        %v547 = vpack.c.b16 %v492, %v491
        %v548 = vpack.c.b16 %v494, %v493
        %v549 = vpack.c.b16 %v496, %v495
        %v550 = vpack.c.b16 %v498, %v497
        %v551 = vpack.c.b16 %v500, %v499
        %v552 = vpack.c.b16 %v502, %v501
        %v553 = vpack.c.b16 %v504, %v503
        %v554 = vpack.c.b16 %v506, %v505
        %v555 = vpack.c.b16 %v508, %v507
        %v556 = vpack.c.b16 %v510, %v509
        %v557 = vpack.c.b16 %v512, %v511
        %v558 = vpack.c.b16 %v514, %v513
        %v559 = vpack.c.b16 %v516, %v515
        %v560 = vpack.c.b16 %v518, %v517
        %v561 = vpack.c.b16 %v520, %v519
        %v562 = vpack.c.b16 %v522, %v521
        %v563 = vpack.c.b16 %v524, %v523
        %v564 = vpack.c.b16 %v526, %v525
        %v565 = vpack.c.b16 %v528, %v527
        %v566 = vpack.c.b16 %v530, %v529
        %v567 = vpack.c.b16 %v532, %v531
        %v568 = vpack.c.b16 %v534, %v533
        %v569 = vpack.c.b16 %v536, %v535
        %v570 = vpack.c.b16 %v538, %v537
        %603 = vmatpush.bf16.msra.mxu0 %v546
        %604 = vmatpush.bf16.msra.mxu0 %v545
        %605 = vmatpush.bf16.msra.mxu0 %v544
        %606 = vmatpush.bf16.msra.mxu0 %v543
        %607 = vmatpush.bf16.msra.mxu0 %v542
        %608 = vmatpush.bf16.msra.mxu0 %v541
        %609 = vmatpush.bf16.msra.mxu0 %v540
        %610 = vmatpush.bf16.msra.mxu0 %v539
        %611 = vmatmul.bf16.gmra.mxu0 %v403
        %v612 = vpop.f32.mrf.mxu0
        %v613 = vadd.f32 0.0, %v612
        %v614 = vpop.f32.mrf.mxu0
        %v615 = vadd.f32 0.0, %v614
        %616 = vdwg.mxu0
        %617 = vmatpush.bf16.msra.mxu0 %v554
        %618 = vmatpush.bf16.msra.mxu0 %v553
        %619 = vmatpush.bf16.msra.mxu0 %v552
        %620 = vmatpush.bf16.msra.mxu0 %v551
        %621 = vmatpush.bf16.msra.mxu0 %v550
        %622 = vmatpush.bf16.msra.mxu0 %v549
        %623 = vmatpush.bf16.msra.mxu0 %v548
        %624 = vmatpush.bf16.msra.mxu0 %v547
        %625 = vmatmul.bf16.gmra.mxu0 %v404
        %v626 = vpop.f32.mrf.mxu0
        %v627 = vadd.f32 %v613, %v626
        %v628 = vpop.f32.mrf.mxu0
        %v629 = vadd.f32 %v615, %v628
        %630 = vdwg.mxu0
        %631 = vmatpush.bf16.msra.mxu0 %v562
        %632 = vmatpush.bf16.msra.mxu0 %v561
        %633 = vmatpush.bf16.msra.mxu0 %v560
        %634 = vmatpush.bf16.msra.mxu0 %v559
        %635 = vmatpush.bf16.msra.mxu0 %v558
        %636 = vmatpush.bf16.msra.mxu0 %v557
        %637 = vmatpush.bf16.msra.mxu0 %v556
        %638 = vmatpush.bf16.msra.mxu0 %v555
        %639 = vmatmul.bf16.gmra.mxu0 %v405
        %v640 = vpop.f32.mrf.mxu0
        %v641 = vadd.f32 %v627, %v640
        %v642 = vpop.f32.mrf.mxu0
        %v643 = vadd.f32 %v629, %v642
        %644 = vdwg.mxu0
        %645 = vmatpush.bf16.msra.mxu0 %v570
        %646 = vmatpush.bf16.msra.mxu0 %v569
        %647 = vmatpush.bf16.msra.mxu0 %v568
        %648 = vmatpush.bf16.msra.mxu0 %v567
        %649 = vmatpush.bf16.msra.mxu0 %v566
        %650 = vmatpush.bf16.msra.mxu0 %v565
        %651 = vmatpush.bf16.msra.mxu0 %v564
        %652 = vmatpush.bf16.msra.mxu0 %v563
        %653 = vmatmul.bf16.gmra.mxu0 %v406
        %v654 = vpop.f32.mrf.mxu0
        %v655 = vadd.f32 %v641, %v654
        %v656 = vpop.f32.mrf.mxu0
        %v657 = vadd.f32 %v643, %v656
        %658 = vdwg.mxu0
        %v659 = vadd.f32 %v325, %v655
        %v660 = vadd.f32 %v326, %v657
        %661 = vst [vmem:[#allocation2] sm:$0xff] %v659
        %662 = vst [vmem:[#allocation2 + $0x8] sm:$0xff] %v660
        %p663 = scmp.eq.s32.totalorder %s21, 1
        // Predicated region
        $region60: #{pix2pix_forward.39} parent=50 // pred_check
          %p664 = pneg %p663
        $region61: #{pix2pix_forward.39} parent=50 // pred_check_branch
          %666 = sbr.rel (%p664) target = $region63
        $region62: #{pix2pix_forward.39} parent=50 // pred_region
          %v667 = vld [vmem:[#allocation2] sm:$0xff]
          %v668 = vld [vmem:[#allocation2 + $0x8] sm:$0xff]
          %v669 = vld [vmem:[%s269] sm:$0x1]
          %v671 = vperm.slane %v669, 0
          %v673 = vadd.f32 %v667, %v671
          %v674 = vadd.f32 %v668, %v671
          %675 = vst [vmem:[%s277] sm:$0xff] %v673
          %676 = vst [vmem:[%s277 + $0x8] sm:$0xff] %v674
        $region63: #{pix2pix_forward.39} parent=50 // pred_fallthru
          _
        %s677 = smul.u32 2, %s19
        %p678 = scmp.lt.s32.totalorder %s677, 1
        %s679 = scalar_select %p678, %s677, 1
        %p680 = scmp.lt.s32.totalorder %s20, 0
        %s681 = scalar_select %p680, %s20, 0
        %s682 = sadd.s32 %s681, %s679
        %s683 = smul.addr %s682, 8
        %s684 = scalar_lea.vmem %s3, %s683
        // Predicated region
        $region64: #{pix2pix_forward.39} parent=50 // pred_check
          %p685 = pneg %p135
        $region65: #{pix2pix_forward.39} parent=50 // pred_check_branch
          %687 = sbr.rel (%p685) target = $region67
        $region66: #{pix2pix_forward.39} parent=50 // pred_region
          %s688 = smul.u32 2, %s19
        $region67: #{pix2pix_forward.39} parent=50 // pred_fallthru
          _
        // Predicated region
        $region68: #{pix2pix_forward.39} parent=50 // pred_check
          %p689 = pneg %p135
        $region69: #{pix2pix_forward.39} parent=50 // pred_check_branch
          %691 = sbr.rel (%p689) target = $region71
        $region70: #{pix2pix_forward.39} parent=50 // pred_region
          %s692 = smul.u32 2, %s19
          %p693 = scmp.lt.s32.totalorder %s692, 1
          %s694 = scalar_select %p693, %s692, 1
          %p695 = scmp.lt.s32.totalorder %s20, 0
          %s696 = scalar_select %p695, %s20, 0
          %s697 = sadd.s32 %s696, %s694
          %s698 = smul.addr %s697, 8
          %s699 = scalar_lea.vmem %s3, %s698
        $region71: #{pix2pix_forward.39} parent=50 // pred_fallthru
          _
      $region51: #{pix2pix_forward.39} parent=5 // pred_fallthru
        _
      %p700 = scmp.le.s32.totalorder 2, %s9
      // Predicated region
      $region72: #{pix2pix_forward.39} parent=5 // pred_check
        %p701 = pneg %p700
      $region73: #{pix2pix_forward.39} parent=5 // pred_check_branch
        %703 = sbr.rel (%p701) target = $region75
      $region74: #{pix2pix_forward.39} parent=5 // pred_region
        %s704 = ssub.s32 %s9, 2
      $region75: #{pix2pix_forward.39} parent=5 // pred_fallthru
        _
    $region6: #{pix2pix_forward.39} parent=1 // loop_footer
      %s13 = sadd.s32 1, %s9
    $region7: #{pix2pix_forward.39} parent=1 // loop_footer_branch
      %8 = sbr.rel target = $region3
    $region8: #{pix2pix_forward.39} parent=1 // loop_exit
      _

// kernel: pix2pix_forward.40
$region0: #{pix2pix_forward.40}
  #allocation0 [shape = 'u32[]', space=smem, size = 0x4, offset = 0x4, fixed_abs, tag = 'smem constant byte address 0x4 - core index']
  #allocation1 [shape = 'u32[72,128]{1,0:T(1,128)}', space=vmem, size = 0x9000, scoped, tag = 'internal scratch']
  #allocation2 [shape = 'f32[16,128]{1,0:T(8,128)}', space=vmem, size = 0x2000, scoped, tag = 'scratch operand']
  %s0 = inlined_call_operand.vmem [shape: bf16[16,256], index: 0, kind: input, shape index: {}]
  %s1 = inlined_call_operand.vmem [shape: bf16[256,128], index: 1, kind: input, shape index: {}]
  %s2 = inlined_call_operand.vmem [shape: f32[1,128], index: 2, kind: input, shape index: {}]
  %s3 = inlined_call_operand.vmem [shape: f32[16,128], index: 3, kind: output, shape index: {}]
  %s4 = sld [smem:[#allocation0]]
  $region30: #{pix2pix_forward.40} parent=0
    _
  %s6 = ssub.s32 1, %s4
  %s7 = scalar_select 0, %s6, %s4
  // Predicated region
  $region2: #{pix2pix_forward.40} parent=0 // pred_check
    _
  $region3: #{pix2pix_forward.40} parent=0 // pred_check_branch
    %9 = sbr.rel (0) target = $region5
  $region4: #{pix2pix_forward.40} parent=0 // pred_region
    _
  $region5: #{pix2pix_forward.40} parent=0 // pred_fallthru
    _
  // Predicated region
  $region6: #{pix2pix_forward.40} parent=0 // pred_check
    _
  $region7: #{pix2pix_forward.40} parent=0 // pred_check_branch
    %11 = sbr.rel (0) target = $region9
  $region8: #{pix2pix_forward.40} parent=0 // pred_region
    _
  $region9: #{pix2pix_forward.40} parent=0 // pred_fallthru
    _
  // Predicated region
  $region10: #{pix2pix_forward.40} parent=0 // pred_check
    _
  $region11: #{pix2pix_forward.40} parent=0 // pred_check_branch
    %13 = sbr.rel (0) target = $region13
  $region12: #{pix2pix_forward.40} parent=0 // pred_region
    _
  $region13: #{pix2pix_forward.40} parent=0 // pred_fallthru
    _
  %p14 = scmp.eq.s32.totalorder 0, 0
  // Predicated region
  $region14: #{pix2pix_forward.40} parent=0 // pred_check
    %p15 = pneg %p14
  $region15: #{pix2pix_forward.40} parent=0 // pred_check_branch
    %17 = sbr.rel (%p15) target = $region17
  $region16: #{pix2pix_forward.40} parent=0 // pred_region
    %18 = vst [vmem:[#allocation2] sm:$0xff] 0.0
    %19 = vst [vmem:[#allocation2 + $0x8] sm:$0xff] 0.0
  $region17: #{pix2pix_forward.40} parent=0 // pred_fallthru
    _
  %v20 = vld [vmem:[%s0] sm:$0xff]
  %v21 = vld [vmem:[%s0 + $0x8] sm:$0xff]
  %v22 = vunpack.c.l.bf16 %v20
  %v23 = vunpack.c.h.bf16 %v20
  %v24 = vunpack.c.l.bf16 %v21
  %v25 = vunpack.c.h.bf16 %v21
  %v26 = vmax.f32 %v22, 0.0
  %v27 = vmax.f32 %v23, 0.0
  %v28 = vmax.f32 %v24, 0.0
  %v29 = vmax.f32 %v25, 0.0
  %v30 = vpack.c.bf16 %v28, %v26
  %v31 = vpack.c.bf16 %v29, %v27
  %v32 = vld [vmem:[#allocation2] sm:$0xff]
  %v33 = vld [vmem:[#allocation2 + $0x8] sm:$0xff]
  %v34 = vld [vmem:[%s1] sm:$0xf]
  %v35 = vld [vmem:[%s1 + $0x4] sm:$0xf]
  %v36 = vld [vmem:[%s1 + $0x8] sm:$0xf]
  %v37 = vld [vmem:[%s1 + $0xc] sm:$0xf]
  %v38 = vld [vmem:[%s1 + $0x10] sm:$0xf]
  %v39 = vld [vmem:[%s1 + $0x14] sm:$0xf]
  %v40 = vld [vmem:[%s1 + $0x18] sm:$0xf]
  %v41 = vld [vmem:[%s1 + $0x1c] sm:$0xf]
  %v42 = vld [vmem:[%s1 + $0x20] sm:$0xf]
  %v43 = vld [vmem:[%s1 + $0x24] sm:$0xf]
  %v44 = vld [vmem:[%s1 + $0x28] sm:$0xf]
  %v45 = vld [vmem:[%s1 + $0x2c] sm:$0xf]
  %v46 = vld [vmem:[%s1 + $0x30] sm:$0xf]
  %v47 = vld [vmem:[%s1 + $0x34] sm:$0xf]
  %v48 = vld [vmem:[%s1 + $0x38] sm:$0xf]
  %v49 = vld [vmem:[%s1 + $0x3c] sm:$0xf]
  %v50 = vld [vmem:[%s1 + $0x40] sm:$0xf]
  %v51 = vld [vmem:[%s1 + $0x44] sm:$0xf]
  %v52 = vld [vmem:[%s1 + $0x48] sm:$0xf]
  %v53 = vld [vmem:[%s1 + $0x4c] sm:$0xf]
  %v54 = vld [vmem:[%s1 + $0x50] sm:$0xf]
  %v55 = vld [vmem:[%s1 + $0x54] sm:$0xf]
  %v56 = vld [vmem:[%s1 + $0x58] sm:$0xf]
  %v57 = vld [vmem:[%s1 + $0x5c] sm:$0xf]
  %v58 = vld [vmem:[%s1 + $0x60] sm:$0xf]
  %v59 = vld [vmem:[%s1 + $0x64] sm:$0xf]
  %v60 = vld [vmem:[%s1 + $0x68] sm:$0xf]
  %v61 = vld [vmem:[%s1 + $0x6c] sm:$0xf]
  %v62 = vld [vmem:[%s1 + $0x70] sm:$0xf]
  %v63 = vld [vmem:[%s1 + $0x74] sm:$0xf]
  %v64 = vld [vmem:[%s1 + $0x78] sm:$0xf]
  %v65 = vld [vmem:[%s1 + $0x7c] sm:$0xf]
  %v98 = vunpack.c.l.b16 %v34
  %v99 = vunpack.c.l.b16 %v35
  %v100 = vunpack.c.l.b16 %v36
  %v101 = vunpack.c.l.b16 %v37
  %v102 = vunpack.c.l.b16 %v38
  %v103 = vunpack.c.l.b16 %v39
  %v104 = vunpack.c.l.b16 %v40
  %v105 = vunpack.c.l.b16 %v41
  %v106 = vunpack.c.l.b16 %v42
  %v107 = vunpack.c.l.b16 %v43
  %v108 = vunpack.c.l.b16 %v44
  %v109 = vunpack.c.l.b16 %v45
  %v110 = vunpack.c.l.b16 %v46
  %v111 = vunpack.c.l.b16 %v47
  %v112 = vunpack.c.l.b16 %v48
  %v113 = vunpack.c.l.b16 %v49
  %v114 = vunpack.c.l.b16 %v50
  %v115 = vunpack.c.l.b16 %v51
  %v116 = vunpack.c.l.b16 %v52
  %v117 = vunpack.c.l.b16 %v53
  %v118 = vunpack.c.l.b16 %v54
  %v119 = vunpack.c.l.b16 %v55
  %v120 = vunpack.c.l.b16 %v56
  %v121 = vunpack.c.l.b16 %v57
  %v122 = vunpack.c.l.b16 %v58
  %v123 = vunpack.c.l.b16 %v59
  %v124 = vunpack.c.l.b16 %v60
  %v125 = vunpack.c.l.b16 %v61
  %v126 = vunpack.c.l.b16 %v62
  %v127 = vunpack.c.l.b16 %v63
  %v128 = vunpack.c.l.b16 %v64
  %v129 = vunpack.c.l.b16 %v65
  %v130 = vpack.c.b16 %v99, %v98
  %v131 = vpack.c.b16 %v101, %v100
  %v132 = vpack.c.b16 %v103, %v102
  %v133 = vpack.c.b16 %v105, %v104
  %v134 = vpack.c.b16 %v107, %v106
  %v135 = vpack.c.b16 %v109, %v108
  %v136 = vpack.c.b16 %v111, %v110
  %v137 = vpack.c.b16 %v113, %v112
  %v138 = vpack.c.b16 %v115, %v114
  %v139 = vpack.c.b16 %v117, %v116
  %v140 = vpack.c.b16 %v119, %v118
  %v141 = vpack.c.b16 %v121, %v120
  %v142 = vpack.c.b16 %v123, %v122
  %v143 = vpack.c.b16 %v125, %v124
  %v144 = vpack.c.b16 %v127, %v126
  %v145 = vpack.c.b16 %v129, %v128
  %162 = vmatpush.bf16.msra.mxu0 %v137
  %163 = vmatpush.bf16.msra.mxu0 %v136
  %164 = vmatpush.bf16.msra.mxu0 %v135
  %165 = vmatpush.bf16.msra.mxu0 %v134
  %166 = vmatpush.bf16.msra.mxu0 %v133
  %167 = vmatpush.bf16.msra.mxu0 %v132
  %168 = vmatpush.bf16.msra.mxu0 %v131
  %169 = vmatpush.bf16.msra.mxu0 %v130
  %170 = vmatmul.bf16.gmra.mxu0 %v30
  %v171 = vpop.f32.mrf.mxu0
  %v172 = vadd.f32 0.0, %v171
  %v173 = vpop.f32.mrf.mxu0
  %v174 = vadd.f32 0.0, %v173
  %175 = vdwg.mxu0
  %176 = vmatpush.bf16.msra.mxu0 %v145
  %177 = vmatpush.bf16.msra.mxu0 %v144
  %178 = vmatpush.bf16.msra.mxu0 %v143
  %179 = vmatpush.bf16.msra.mxu0 %v142
  %180 = vmatpush.bf16.msra.mxu0 %v141
  %181 = vmatpush.bf16.msra.mxu0 %v140
  %182 = vmatpush.bf16.msra.mxu0 %v139
  %183 = vmatpush.bf16.msra.mxu0 %v138
  %184 = vmatmul.bf16.gmra.mxu0 %v31
  %v185 = vpop.f32.mrf.mxu0
  %v186 = vadd.f32 %v172, %v185
  %v187 = vpop.f32.mrf.mxu0
  %v188 = vadd.f32 %v174, %v187
  %189 = vdwg.mxu0
  %v190 = vadd.f32 %v32, %v186
  %v191 = vadd.f32 %v33, %v188
  %192 = vst [vmem:[#allocation2] sm:$0xff] %v190
  %193 = vst [vmem:[#allocation2 + $0x8] sm:$0xff] %v191
  // Predicated region
  $region18: #{pix2pix_forward.40} parent=0 // pred_check
    %p194 = pneg %p14
  $region19: #{pix2pix_forward.40} parent=0 // pred_check_branch
    %196 = sbr.rel (%p194) target = $region21
  $region20: #{pix2pix_forward.40} parent=0 // pred_region
    %v197 = vld [vmem:[#allocation2] sm:$0xff]
    %v198 = vld [vmem:[#allocation2 + $0x8] sm:$0xff]
    %v199 = vld [vmem:[%s2] sm:$0x1]
    %v201 = vperm.slane %v199, 0
    %v203 = vadd.f32 %v197, %v201
    %v204 = vadd.f32 %v198, %v201
    %205 = vst [vmem:[%s3] sm:$0xff] %v203
    %206 = vst [vmem:[%s3 + $0x8] sm:$0xff] %v204
  $region21: #{pix2pix_forward.40} parent=0 // pred_fallthru
    _
  // Predicated region
  $region22: #{pix2pix_forward.40} parent=0 // pred_check
    _
  $region23: #{pix2pix_forward.40} parent=0 // pred_check_branch
    %208 = sbr.rel (0) target = $region25
  $region24: #{pix2pix_forward.40} parent=0 // pred_region
    _
  $region25: #{pix2pix_forward.40} parent=0 // pred_fallthru
    _
  // Predicated region
  $region26: #{pix2pix_forward.40} parent=0 // pred_check
    _
  $region27: #{pix2pix_forward.40} parent=0 // pred_check_branch
    %210 = sbr.rel (0) target = $region29
  $region28: #{pix2pix_forward.40} parent=0 // pred_region
    _
  $region29: #{pix2pix_forward.40} parent=0 // pred_fallthru
    _

// kernel: pix2pix_forward.45
$region0: #{pix2pix_forward.45}
  #allocation0 [shape = 'u32[]', space=smem, size = 0x4, offset = 0x4, fixed_abs, tag = 'smem constant byte address 0x4 - core index']
  #allocation1 [shape = 'u32[72,128]{1,0:T(1,128)}', space=vmem, size = 0x9000, scoped, tag = 'internal scratch']
  #allocation2 [shape = 'f32[16,128]{1,0:T(8,128)}', space=vmem, size = 0x2000, scoped, tag = 'scratch operand']
  %s0 = inlined_call_operand.vmem [shape: bf16[16,512], index: 0, kind: input, shape index: {}]
  %s1 = inlined_call_operand.vmem [shape: bf16[512,128], index: 1, kind: input, shape index: {}]
  %s2 = inlined_call_operand.vmem [shape: f32[1,128], index: 2, kind: input, shape index: {}]
  %s3 = inlined_call_operand.vmem [shape: f32[16,128], index: 3, kind: output, shape index: {}]
  %s4 = sld [smem:[#allocation0]]
  $region30: #{pix2pix_forward.45} parent=0
    _
  %s6 = ssub.s32 1, %s4
  %s7 = scalar_select 0, %s6, %s4
  // Predicated region
  $region2: #{pix2pix_forward.45} parent=0 // pred_check
    _
  $region3: #{pix2pix_forward.45} parent=0 // pred_check_branch
    %9 = sbr.rel (0) target = $region5
  $region4: #{pix2pix_forward.45} parent=0 // pred_region
    _
  $region5: #{pix2pix_forward.45} parent=0 // pred_fallthru
    _
  // Predicated region
  $region6: #{pix2pix_forward.45} parent=0 // pred_check
    _
  $region7: #{pix2pix_forward.45} parent=0 // pred_check_branch
    %11 = sbr.rel (0) target = $region9
  $region8: #{pix2pix_forward.45} parent=0 // pred_region
    _
  $region9: #{pix2pix_forward.45} parent=0 // pred_fallthru
    _
  // Predicated region
  $region10: #{pix2pix_forward.45} parent=0 // pred_check
    _
  $region11: #{pix2pix_forward.45} parent=0 // pred_check_branch
    %13 = sbr.rel (0) target = $region13
  $region12: #{pix2pix_forward.45} parent=0 // pred_region
    _
  $region13: #{pix2pix_forward.45} parent=0 // pred_fallthru
    _
  %p14 = scmp.eq.s32.totalorder 0, 0
  // Predicated region
  $region14: #{pix2pix_forward.45} parent=0 // pred_check
    %p15 = pneg %p14
  $region15: #{pix2pix_forward.45} parent=0 // pred_check_branch
    %17 = sbr.rel (%p15) target = $region17
  $region16: #{pix2pix_forward.45} parent=0 // pred_region
    %18 = vst [vmem:[#allocation2] sm:$0xff] 0.0
    %19 = vst [vmem:[#allocation2 + $0x8] sm:$0xff] 0.0
  $region17: #{pix2pix_forward.45} parent=0 // pred_fallthru
    _
  %v20 = vld [vmem:[%s0] sm:$0xff]
  %v21 = vld [vmem:[%s0 + $0x8] sm:$0xff]
  %v22 = vld [vmem:[%s0 + $0x10] sm:$0xff]
  %v23 = vld [vmem:[%s0 + $0x18] sm:$0xff]
  %v24 = vunpack.c.l.bf16 %v20
  %v25 = vunpack.c.h.bf16 %v20
  %v26 = vunpack.c.l.bf16 %v21
  %v27 = vunpack.c.h.bf16 %v21
  %v28 = vunpack.c.l.bf16 %v22
  %v29 = vunpack.c.h.bf16 %v22
  %v30 = vunpack.c.l.bf16 %v23
  %v31 = vunpack.c.h.bf16 %v23
  %v32 = vmax.f32 %v24, 0.0
  %v33 = vmax.f32 %v25, 0.0
  %v34 = vmax.f32 %v26, 0.0
  %v35 = vmax.f32 %v27, 0.0
  %v36 = vmax.f32 %v28, 0.0
  %v37 = vmax.f32 %v29, 0.0
  %v38 = vmax.f32 %v30, 0.0
  %v39 = vmax.f32 %v31, 0.0
  %v40 = vpack.c.bf16 %v36, %v32
  %v41 = vpack.c.bf16 %v37, %v33
  %v42 = vpack.c.bf16 %v38, %v34
  %v43 = vpack.c.bf16 %v39, %v35
  %v44 = vld [vmem:[#allocation2] sm:$0xff]
  %v45 = vld [vmem:[#allocation2 + $0x8] sm:$0xff]
  %v46 = vld [vmem:[%s1] sm:$0xf]
  %v47 = vld [vmem:[%s1 + $0x4] sm:$0xf]
  %v48 = vld [vmem:[%s1 + $0x8] sm:$0xf]
  %v49 = vld [vmem:[%s1 + $0xc] sm:$0xf]
  %v50 = vld [vmem:[%s1 + $0x10] sm:$0xf]
  %v51 = vld [vmem:[%s1 + $0x14] sm:$0xf]
  %v52 = vld [vmem:[%s1 + $0x18] sm:$0xf]
  %v53 = vld [vmem:[%s1 + $0x1c] sm:$0xf]
  %v54 = vld [vmem:[%s1 + $0x20] sm:$0xf]
  %v55 = vld [vmem:[%s1 + $0x24] sm:$0xf]
  %v56 = vld [vmem:[%s1 + $0x28] sm:$0xf]
  %v57 = vld [vmem:[%s1 + $0x2c] sm:$0xf]
  %v58 = vld [vmem:[%s1 + $0x30] sm:$0xf]
  %v59 = vld [vmem:[%s1 + $0x34] sm:$0xf]
  %v60 = vld [vmem:[%s1 + $0x38] sm:$0xf]
  %v61 = vld [vmem:[%s1 + $0x3c] sm:$0xf]
  %v62 = vld [vmem:[%s1 + $0x40] sm:$0xf]
  %v63 = vld [vmem:[%s1 + $0x44] sm:$0xf]
  %v64 = vld [vmem:[%s1 + $0x48] sm:$0xf]
  %v65 = vld [vmem:[%s1 + $0x4c] sm:$0xf]
  %v66 = vld [vmem:[%s1 + $0x50] sm:$0xf]
  %v67 = vld [vmem:[%s1 + $0x54] sm:$0xf]
  %v68 = vld [vmem:[%s1 + $0x58] sm:$0xf]
  %v69 = vld [vmem:[%s1 + $0x5c] sm:$0xf]
  %v70 = vld [vmem:[%s1 + $0x60] sm:$0xf]
  %v71 = vld [vmem:[%s1 + $0x64] sm:$0xf]
  %v72 = vld [vmem:[%s1 + $0x68] sm:$0xf]
  %v73 = vld [vmem:[%s1 + $0x6c] sm:$0xf]
  %v74 = vld [vmem:[%s1 + $0x70] sm:$0xf]
  %v75 = vld [vmem:[%s1 + $0x74] sm:$0xf]
  %v76 = vld [vmem:[%s1 + $0x78] sm:$0xf]
  %v77 = vld [vmem:[%s1 + $0x7c] sm:$0xf]
  %v78 = vld [vmem:[%s1 + $0x80] sm:$0xf]
  %v79 = vld [vmem:[%s1 + $0x84] sm:$0xf]
  %v80 = vld [vmem:[%s1 + $0x88] sm:$0xf]
  %v81 = vld [vmem:[%s1 + $0x8c] sm:$0xf]
  %v82 = vld [vmem:[%s1 + $0x90] sm:$0xf]
  %v83 = vld [vmem:[%s1 + $0x94] sm:$0xf]
  %v84 = vld [vmem:[%s1 + $0x98] sm:$0xf]
  %v85 = vld [vmem:[%s1 + $0x9c] sm:$0xf]
  %v86 = vld [vmem:[%s1 + $0xa0] sm:$0xf]
  %v87 = vld [vmem:[%s1 + $0xa4] sm:$0xf]
  %v88 = vld [vmem:[%s1 + $0xa8] sm:$0xf]
  %v89 = vld [vmem:[%s1 + $0xac] sm:$0xf]
  %v90 = vld [vmem:[%s1 + $0xb0] sm:$0xf]
  %v91 = vld [vmem:[%s1 + $0xb4] sm:$0xf]
  %v92 = vld [vmem:[%s1 + $0xb8] sm:$0xf]
  %v93 = vld [vmem:[%s1 + $0xbc] sm:$0xf]
  %v94 = vld [vmem:[%s1 + $0xc0] sm:$0xf]
  %v95 = vld [vmem:[%s1 + $0xc4] sm:$0xf]
  %v96 = vld [vmem:[%s1 + $0xc8] sm:$0xf]
  %v97 = vld [vmem:[%s1 + $0xcc] sm:$0xf]
  %v98 = vld [vmem:[%s1 + $0xd0] sm:$0xf]
  %v99 = vld [vmem:[%s1 + $0xd4] sm:$0xf]
  %v100 = vld [vmem:[%s1 + $0xd8] sm:$0xf]
  %v101 = vld [vmem:[%s1 + $0xdc] sm:$0xf]
  %v102 = vld [vmem:[%s1 + $0xe0] sm:$0xf]
  %v103 = vld [vmem:[%s1 + $0xe4] sm:$0xf]
  %v104 = vld [vmem:[%s1 + $0xe8] sm:$0xf]
  %v105 = vld [vmem:[%s1 + $0xec] sm:$0xf]
  %v106 = vld [vmem:[%s1 + $0xf0] sm:$0xf]
  %v107 = vld [vmem:[%s1 + $0xf4] sm:$0xf]
  %v108 = vld [vmem:[%s1 + $0xf8] sm:$0xf]
  %v109 = vld [vmem:[%s1 + $0xfc] sm:$0xf]
  %v174 = vunpack.c.l.b16 %v46
  %v175 = vunpack.c.l.b16 %v47
  %v176 = vunpack.c.l.b16 %v48
  %v177 = vunpack.c.l.b16 %v49
  %v178 = vunpack.c.l.b16 %v50
  %v179 = vunpack.c.l.b16 %v51
  %v180 = vunpack.c.l.b16 %v52
  %v181 = vunpack.c.l.b16 %v53
  %v182 = vunpack.c.l.b16 %v54
  %v183 = vunpack.c.l.b16 %v55
  %v184 = vunpack.c.l.b16 %v56
  %v185 = vunpack.c.l.b16 %v57
  %v186 = vunpack.c.l.b16 %v58
  %v187 = vunpack.c.l.b16 %v59
  %v188 = vunpack.c.l.b16 %v60
  %v189 = vunpack.c.l.b16 %v61
  %v190 = vunpack.c.l.b16 %v62
  %v191 = vunpack.c.l.b16 %v63
  %v192 = vunpack.c.l.b16 %v64
  %v193 = vunpack.c.l.b16 %v65
  %v194 = vunpack.c.l.b16 %v66
  %v195 = vunpack.c.l.b16 %v67
  %v196 = vunpack.c.l.b16 %v68
  %v197 = vunpack.c.l.b16 %v69
  %v198 = vunpack.c.l.b16 %v70
  %v199 = vunpack.c.l.b16 %v71
  %v200 = vunpack.c.l.b16 %v72
  %v201 = vunpack.c.l.b16 %v73
  %v202 = vunpack.c.l.b16 %v74
  %v203 = vunpack.c.l.b16 %v75
  %v204 = vunpack.c.l.b16 %v76
  %v205 = vunpack.c.l.b16 %v77
  %v206 = vunpack.c.l.b16 %v78
  %v207 = vunpack.c.l.b16 %v79
  %v208 = vunpack.c.l.b16 %v80
  %v209 = vunpack.c.l.b16 %v81
  %v210 = vunpack.c.l.b16 %v82
  %v211 = vunpack.c.l.b16 %v83
  %v212 = vunpack.c.l.b16 %v84
  %v213 = vunpack.c.l.b16 %v85
  %v214 = vunpack.c.l.b16 %v86
  %v215 = vunpack.c.l.b16 %v87
  %v216 = vunpack.c.l.b16 %v88
  %v217 = vunpack.c.l.b16 %v89
  %v218 = vunpack.c.l.b16 %v90
  %v219 = vunpack.c.l.b16 %v91
  %v220 = vunpack.c.l.b16 %v92
  %v221 = vunpack.c.l.b16 %v93
  %v222 = vunpack.c.l.b16 %v94
  %v223 = vunpack.c.l.b16 %v95
  %v224 = vunpack.c.l.b16 %v96
  %v225 = vunpack.c.l.b16 %v97
  %v226 = vunpack.c.l.b16 %v98
  %v227 = vunpack.c.l.b16 %v99
  %v228 = vunpack.c.l.b16 %v100
  %v229 = vunpack.c.l.b16 %v101
  %v230 = vunpack.c.l.b16 %v102
  %v231 = vunpack.c.l.b16 %v103
  %v232 = vunpack.c.l.b16 %v104
  %v233 = vunpack.c.l.b16 %v105
  %v234 = vunpack.c.l.b16 %v106
  %v235 = vunpack.c.l.b16 %v107
  %v236 = vunpack.c.l.b16 %v108
  %v237 = vunpack.c.l.b16 %v109
  %v238 = vpack.c.b16 %v175, %v174
  %v239 = vpack.c.b16 %v177, %v176
  %v240 = vpack.c.b16 %v179, %v178
  %v241 = vpack.c.b16 %v181, %v180
  %v242 = vpack.c.b16 %v183, %v182
  %v243 = vpack.c.b16 %v185, %v184
  %v244 = vpack.c.b16 %v187, %v186
  %v245 = vpack.c.b16 %v189, %v188
  %v246 = vpack.c.b16 %v191, %v190
  %v247 = vpack.c.b16 %v193, %v192
  %v248 = vpack.c.b16 %v195, %v194
  %v249 = vpack.c.b16 %v197, %v196
  %v250 = vpack.c.b16 %v199, %v198
  %v251 = vpack.c.b16 %v201, %v200
  %v252 = vpack.c.b16 %v203, %v202
  %v253 = vpack.c.b16 %v205, %v204
  %v254 = vpack.c.b16 %v207, %v206
  %v255 = vpack.c.b16 %v209, %v208
  %v256 = vpack.c.b16 %v211, %v210
  %v257 = vpack.c.b16 %v213, %v212
  %v258 = vpack.c.b16 %v215, %v214
  %v259 = vpack.c.b16 %v217, %v216
  %v260 = vpack.c.b16 %v219, %v218
  %v261 = vpack.c.b16 %v221, %v220
  %v262 = vpack.c.b16 %v223, %v222
  %v263 = vpack.c.b16 %v225, %v224
  %v264 = vpack.c.b16 %v227, %v226
  %v265 = vpack.c.b16 %v229, %v228
  %v266 = vpack.c.b16 %v231, %v230
  %v267 = vpack.c.b16 %v233, %v232
  %v268 = vpack.c.b16 %v235, %v234
  %v269 = vpack.c.b16 %v237, %v236
  %302 = vmatpush.bf16.msra.mxu0 %v245
  %303 = vmatpush.bf16.msra.mxu0 %v244
  %304 = vmatpush.bf16.msra.mxu0 %v243
  %305 = vmatpush.bf16.msra.mxu0 %v242
  %306 = vmatpush.bf16.msra.mxu0 %v241
  %307 = vmatpush.bf16.msra.mxu0 %v240
  %308 = vmatpush.bf16.msra.mxu0 %v239
  %309 = vmatpush.bf16.msra.mxu0 %v238
  %310 = vmatmul.bf16.gmra.mxu0 %v40
  %v311 = vpop.f32.mrf.mxu0
  %v312 = vadd.f32 0.0, %v311
  %v313 = vpop.f32.mrf.mxu0
  %v314 = vadd.f32 0.0, %v313
  %315 = vdwg.mxu0
  %316 = vmatpush.bf16.msra.mxu0 %v253
  %317 = vmatpush.bf16.msra.mxu0 %v252
  %318 = vmatpush.bf16.msra.mxu0 %v251
  %319 = vmatpush.bf16.msra.mxu0 %v250
  %320 = vmatpush.bf16.msra.mxu0 %v249
  %321 = vmatpush.bf16.msra.mxu0 %v248
  %322 = vmatpush.bf16.msra.mxu0 %v247
  %323 = vmatpush.bf16.msra.mxu0 %v246
  %324 = vmatmul.bf16.gmra.mxu0 %v41
  %v325 = vpop.f32.mrf.mxu0
  %v326 = vadd.f32 %v312, %v325
  %v327 = vpop.f32.mrf.mxu0
  %v328 = vadd.f32 %v314, %v327
  %329 = vdwg.mxu0
  %330 = vmatpush.bf16.msra.mxu0 %v261
  %331 = vmatpush.bf16.msra.mxu0 %v260
  %332 = vmatpush.bf16.msra.mxu0 %v259
  %333 = vmatpush.bf16.msra.mxu0 %v258
  %334 = vmatpush.bf16.msra.mxu0 %v257
  %335 = vmatpush.bf16.msra.mxu0 %v256
  %336 = vmatpush.bf16.msra.mxu0 %v255
  %337 = vmatpush.bf16.msra.mxu0 %v254
  %338 = vmatmul.bf16.gmra.mxu0 %v42
  %v339 = vpop.f32.mrf.mxu0
  %v340 = vadd.f32 %v326, %v339
  %v341 = vpop.f32.mrf.mxu0
  %v342 = vadd.f32 %v328, %v341
  %343 = vdwg.mxu0
  %344 = vmatpush.bf16.msra.mxu0 %v269
  %345 = vmatpush.bf16.msra.mxu0 %v268
  %346 = vmatpush.bf16.msra.mxu0 %v267
  %347 = vmatpush.bf16.msra.mxu0 %v266
  %348 = vmatpush.bf16.msra.mxu0 %v265
  %349 = vmatpush.bf16.msra.mxu0 %v264
  %350 = vmatpush.bf16.msra.mxu0 %v263
  %351 = vmatpush.bf16.msra.mxu0 %v262
  %352 = vmatmul.bf16.gmra.mxu0 %v43
  %v353 = vpop.f32.mrf.mxu0
  %v354 = vadd.f32 %v340, %v353
  %v355 = vpop.f32.mrf.mxu0
  %v356 = vadd.f32 %v342, %v355
  %357 = vdwg.mxu0
  %v358 = vadd.f32 %v44, %v354
  %v359 = vadd.f32 %v45, %v356
  %360 = vst [vmem:[#allocation2] sm:$0xff] %v358
  %361 = vst [vmem:[#allocation2 + $0x8] sm:$0xff] %v359
  // Predicated region
  $region18: #{pix2pix_forward.45} parent=0 // pred_check
    %p362 = pneg %p14
  $region19: #{pix2pix_forward.45} parent=0 // pred_check_branch
    %364 = sbr.rel (%p362) target = $region21
  $region20: #{pix2pix_forward.45} parent=0 // pred_region
    %v365 = vld [vmem:[#allocation2] sm:$0xff]
    %v366 = vld [vmem:[#allocation2 + $0x8] sm:$0xff]
    %v367 = vld [vmem:[%s2] sm:$0x1]
    %v369 = vperm.slane %v367, 0
    %v371 = vadd.f32 %v365, %v369
    %v372 = vadd.f32 %v366, %v369
    %373 = vst [vmem:[%s3] sm:$0xff] %v371
    %374 = vst [vmem:[%s3 + $0x8] sm:$0xff] %v372
  $region21: #{pix2pix_forward.45} parent=0 // pred_fallthru
    _
  // Predicated region
  $region22: #{pix2pix_forward.45} parent=0 // pred_check
    _
  $region23: #{pix2pix_forward.45} parent=0 // pred_check_branch
    %376 = sbr.rel (0) target = $region25
  $region24: #{pix2pix_forward.45} parent=0 // pred_region
    _
  $region25: #{pix2pix_forward.45} parent=0 // pred_fallthru
    _
  // Predicated region
  $region26: #{pix2pix_forward.45} parent=0 // pred_check
    _
  $region27: #{pix2pix_forward.45} parent=0 // pred_check_branch
    %378 = sbr.rel (0) target = $region29
  $region28: #{pix2pix_forward.45} parent=0 // pred_region
    _
  $region29: #{pix2pix_forward.45} parent=0 // pred_fallthru
    _

// kernel: pix2pix_forward.55
$region0: #{pix2pix_forward.55}
  #allocation0 [shape = 'u32[]', space=smem, size = 0x4, offset = 0x4, fixed_abs, tag = 'smem constant byte address 0x4 - core index']
  #allocation1 [shape = 'u32[72,128]{1,0:T(1,128)}', space=vmem, size = 0x9000, scoped, tag = 'internal scratch']
  #allocation2 [shape = 'f32[64,128]{1,0:T(8,128)}', space=vmem, size = 0x8000, scoped, tag = 'scratch operand']
  %s0 = inlined_call_operand.vmem [shape: bf16[64,128], index: 0, kind: input, shape index: {}]
  %s1 = inlined_call_operand.vmem [shape: bf16[128,128], index: 1, kind: input, shape index: {}]
  %s2 = inlined_call_operand.vmem [shape: f32[1,128], index: 2, kind: input, shape index: {}]
  %s3 = inlined_call_operand.vmem [shape: f32[64,128], index: 3, kind: output, shape index: {}]
  %s4 = sld [smem:[#allocation0]]
  $region30: #{pix2pix_forward.55} parent=0
    _
  %s6 = ssub.s32 1, %s4
  %s7 = scalar_select 0, %s6, %s4
  // Predicated region
  $region2: #{pix2pix_forward.55} parent=0 // pred_check
    _
  $region3: #{pix2pix_forward.55} parent=0 // pred_check_branch
    %9 = sbr.rel (0) target = $region5
  $region4: #{pix2pix_forward.55} parent=0 // pred_region
    _
  $region5: #{pix2pix_forward.55} parent=0 // pred_fallthru
    _
  // Predicated region
  $region6: #{pix2pix_forward.55} parent=0 // pred_check
    _
  $region7: #{pix2pix_forward.55} parent=0 // pred_check_branch
    %11 = sbr.rel (0) target = $region9
  $region8: #{pix2pix_forward.55} parent=0 // pred_region
    _
  $region9: #{pix2pix_forward.55} parent=0 // pred_fallthru
    _
  // Predicated region
  $region10: #{pix2pix_forward.55} parent=0 // pred_check
    _
  $region11: #{pix2pix_forward.55} parent=0 // pred_check_branch
    %13 = sbr.rel (0) target = $region13
  $region12: #{pix2pix_forward.55} parent=0 // pred_region
    _
  $region13: #{pix2pix_forward.55} parent=0 // pred_fallthru
    _
  %p14 = scmp.eq.s32.totalorder 0, 0
  // Predicated region
  $region14: #{pix2pix_forward.55} parent=0 // pred_check
    %p15 = pneg %p14
  $region15: #{pix2pix_forward.55} parent=0 // pred_check_branch
    %17 = sbr.rel (%p15) target = $region17
  $region16: #{pix2pix_forward.55} parent=0 // pred_region
    %18 = vst [vmem:[#allocation2] sm:$0xff] 0.0
    %19 = vst [vmem:[#allocation2 + $0x8] sm:$0xff] 0.0
    %20 = vst [vmem:[#allocation2 + $0x10] sm:$0xff] 0.0
    %21 = vst [vmem:[#allocation2 + $0x18] sm:$0xff] 0.0
    %22 = vst [vmem:[#allocation2 + $0x20] sm:$0xff] 0.0
    %23 = vst [vmem:[#allocation2 + $0x28] sm:$0xff] 0.0
    %24 = vst [vmem:[#allocation2 + $0x30] sm:$0xff] 0.0
    %25 = vst [vmem:[#allocation2 + $0x38] sm:$0xff] 0.0
  $region17: #{pix2pix_forward.55} parent=0 // pred_fallthru
    _
  %v26 = vld [vmem:[%s0] sm:$0xf]
  %v27 = vld [vmem:[%s0 + $0x4] sm:$0xf]
  %v28 = vld [vmem:[%s0 + $0x8] sm:$0xf]
  %v29 = vld [vmem:[%s0 + $0xc] sm:$0xf]
  %v30 = vld [vmem:[%s0 + $0x10] sm:$0xf]
  %v31 = vld [vmem:[%s0 + $0x14] sm:$0xf]
  %v32 = vld [vmem:[%s0 + $0x18] sm:$0xf]
  %v33 = vld [vmem:[%s0 + $0x1c] sm:$0xf]
  %v34 = vunpack.c.l.bf16 %v26
  %v35 = vunpack.c.l.bf16 %v27
  %v36 = vunpack.c.l.bf16 %v28
  %v37 = vunpack.c.l.bf16 %v29
  %v38 = vunpack.c.l.bf16 %v30
  %v39 = vunpack.c.l.bf16 %v31
  %v40 = vunpack.c.l.bf16 %v32
  %v41 = vunpack.c.l.bf16 %v33
  %v42 = vmax.f32 %v34, 0.0
  %v43 = vmax.f32 %v35, 0.0
  %v44 = vmax.f32 %v36, 0.0
  %v45 = vmax.f32 %v37, 0.0
  %v46 = vmax.f32 %v38, 0.0
  %v47 = vmax.f32 %v39, 0.0
  %v48 = vmax.f32 %v40, 0.0
  %v49 = vmax.f32 %v41, 0.0
  %v50 = vpack.c.bf16 %v43, %v42
  %v51 = vpack.c.bf16 %v45, %v44
  %v52 = vpack.c.bf16 %v47, %v46
  %v53 = vpack.c.bf16 %v49, %v48
  %v54 = vld [vmem:[#allocation2] sm:$0xff]
  %v55 = vld [vmem:[#allocation2 + $0x8] sm:$0xff]
  %v56 = vld [vmem:[#allocation2 + $0x10] sm:$0xff]
  %v57 = vld [vmem:[#allocation2 + $0x18] sm:$0xff]
  %v58 = vld [vmem:[#allocation2 + $0x20] sm:$0xff]
  %v59 = vld [vmem:[#allocation2 + $0x28] sm:$0xff]
  %v60 = vld [vmem:[#allocation2 + $0x30] sm:$0xff]
  %v61 = vld [vmem:[#allocation2 + $0x38] sm:$0xff]
  %v62 = vld [vmem:[%s1] sm:$0xf]
  %v63 = vld [vmem:[%s1 + $0x4] sm:$0xf]
  %v64 = vld [vmem:[%s1 + $0x8] sm:$0xf]
  %v65 = vld [vmem:[%s1 + $0xc] sm:$0xf]
  %v66 = vld [vmem:[%s1 + $0x10] sm:$0xf]
  %v67 = vld [vmem:[%s1 + $0x14] sm:$0xf]
  %v68 = vld [vmem:[%s1 + $0x18] sm:$0xf]
  %v69 = vld [vmem:[%s1 + $0x1c] sm:$0xf]
  %v70 = vld [vmem:[%s1 + $0x20] sm:$0xf]
  %v71 = vld [vmem:[%s1 + $0x24] sm:$0xf]
  %v72 = vld [vmem:[%s1 + $0x28] sm:$0xf]
  %v73 = vld [vmem:[%s1 + $0x2c] sm:$0xf]
  %v74 = vld [vmem:[%s1 + $0x30] sm:$0xf]
  %v75 = vld [vmem:[%s1 + $0x34] sm:$0xf]
  %v76 = vld [vmem:[%s1 + $0x38] sm:$0xf]
  %v77 = vld [vmem:[%s1 + $0x3c] sm:$0xf]
  %v94 = vunpack.c.l.b16 %v62
  %v95 = vunpack.c.l.b16 %v63
  %v96 = vunpack.c.l.b16 %v64
  %v97 = vunpack.c.l.b16 %v65
  %v98 = vunpack.c.l.b16 %v66
  %v99 = vunpack.c.l.b16 %v67
  %v100 = vunpack.c.l.b16 %v68
  %v101 = vunpack.c.l.b16 %v69
  %v102 = vunpack.c.l.b16 %v70
  %v103 = vunpack.c.l.b16 %v71
  %v104 = vunpack.c.l.b16 %v72
  %v105 = vunpack.c.l.b16 %v73
  %v106 = vunpack.c.l.b16 %v74
  %v107 = vunpack.c.l.b16 %v75
  %v108 = vunpack.c.l.b16 %v76
  %v109 = vunpack.c.l.b16 %v77
  %v110 = vpack.c.b16 %v95, %v94
  %v111 = vpack.c.b16 %v97, %v96
  %v112 = vpack.c.b16 %v99, %v98
  %v113 = vpack.c.b16 %v101, %v100
  %v114 = vpack.c.b16 %v103, %v102
  %v115 = vpack.c.b16 %v105, %v104
  %v116 = vpack.c.b16 %v107, %v106
  %v117 = vpack.c.b16 %v109, %v108
  %126 = vmatpush.bf16.msra.mxu0 %v117
  %127 = vmatpush.bf16.msra.mxu0 %v116
  %128 = vmatpush.bf16.msra.mxu0 %v115
  %129 = vmatpush.bf16.msra.mxu0 %v114
  %130 = vmatpush.bf16.msra.mxu0 %v113
  %131 = vmatpush.bf16.msra.mxu0 %v112
  %132 = vmatpush.bf16.msra.mxu0 %v111
  %133 = vmatpush.bf16.msra.mxu0 %v110
  %134 = vmatmul.bf16.gmra.mxu0 %v50
  %v135 = vpop.f32.mrf.mxu0
  %v136 = vadd.f32 0.0, %v135
  %v137 = vpop.f32.mrf.mxu0
  %v138 = vadd.f32 0.0, %v137
  %139 = vmatmul.bf16.gmra.mxu0 %v51
  %v140 = vpop.f32.mrf.mxu0
  %v141 = vadd.f32 0.0, %v140
  %v142 = vpop.f32.mrf.mxu0
  %v143 = vadd.f32 0.0, %v142
  %144 = vmatmul.bf16.gmra.mxu0 %v52
  %v145 = vpop.f32.mrf.mxu0
  %v146 = vadd.f32 0.0, %v145
  %v147 = vpop.f32.mrf.mxu0
  %v148 = vadd.f32 0.0, %v147
  %149 = vmatmul.bf16.gmra.mxu0 %v53
  %v150 = vpop.f32.mrf.mxu0
  %v151 = vadd.f32 0.0, %v150
  %v152 = vpop.f32.mrf.mxu0
  %v153 = vadd.f32 0.0, %v152
  %154 = vdwg.mxu0
  %v155 = vadd.f32 %v54, %v136
  %v156 = vadd.f32 %v55, %v138
  %v157 = vadd.f32 %v56, %v141
  %v158 = vadd.f32 %v57, %v143
  %v159 = vadd.f32 %v58, %v146
  %v160 = vadd.f32 %v59, %v148
  %v161 = vadd.f32 %v60, %v151
  %v162 = vadd.f32 %v61, %v153
  %163 = vst [vmem:[#allocation2] sm:$0xff] %v155
  %164 = vst [vmem:[#allocation2 + $0x8] sm:$0xff] %v156
  %165 = vst [vmem:[#allocation2 + $0x10] sm:$0xff] %v157
  %166 = vst [vmem:[#allocation2 + $0x18] sm:$0xff] %v158
  %167 = vst [vmem:[#allocation2 + $0x20] sm:$0xff] %v159
  %168 = vst [vmem:[#allocation2 + $0x28] sm:$0xff] %v160
  %169 = vst [vmem:[#allocation2 + $0x30] sm:$0xff] %v161
  %170 = vst [vmem:[#allocation2 + $0x38] sm:$0xff] %v162
  // Predicated region
  $region18: #{pix2pix_forward.55} parent=0 // pred_check
    %p171 = pneg %p14
  $region19: #{pix2pix_forward.55} parent=0 // pred_check_branch
    %173 = sbr.rel (%p171) target = $region21
  $region20: #{pix2pix_forward.55} parent=0 // pred_region
    %v174 = vld [vmem:[#allocation2] sm:$0xff]
    %v175 = vld [vmem:[#allocation2 + $0x8] sm:$0xff]
    %v176 = vld [vmem:[#allocation2 + $0x10] sm:$0xff]
    %v177 = vld [vmem:[#allocation2 + $0x18] sm:$0xff]
    %v178 = vld [vmem:[#allocation2 + $0x20] sm:$0xff]
    %v179 = vld [vmem:[#allocation2 + $0x28] sm:$0xff]
    %v180 = vld [vmem:[#allocation2 + $0x30] sm:$0xff]
    %v181 = vld [vmem:[#allocation2 + $0x38] sm:$0xff]
    %v182 = vld [vmem:[%s2] sm:$0x1]
    %v184 = vperm.slane %v182, 0
    %v186 = vadd.f32 %v174, %v184
    %v187 = vadd.f32 %v175, %v184
    %v188 = vadd.f32 %v176, %v184
    %v189 = vadd.f32 %v177, %v184
    %v190 = vadd.f32 %v178, %v184
    %v191 = vadd.f32 %v179, %v184
    %v192 = vadd.f32 %v180, %v184
    %v193 = vadd.f32 %v181, %v184
    %194 = vst [vmem:[%s3] sm:$0xff] %v186
    %195 = vst [vmem:[%s3 + $0x8] sm:$0xff] %v187
    %196 = vst [vmem:[%s3 + $0x10] sm:$0xff] %v188
    %197 = vst [vmem:[%s3 + $0x18] sm:$0xff] %v189
    %198 = vst [vmem:[%s3 + $0x20] sm:$0xff] %v190
    %199 = vst [vmem:[%s3 + $0x28] sm:$0xff] %v191
    %200 = vst [vmem:[%s3 + $0x30] sm:$0xff] %v192
    %201 = vst [vmem:[%s3 + $0x38] sm:$0xff] %v193
  $region21: #{pix2pix_forward.55} parent=0 // pred_fallthru
    _
  // Predicated region
  $region22: #{pix2pix_forward.55} parent=0 // pred_check
    _
  $region23: #{pix2pix_forward.55} parent=0 // pred_check_branch
    %203 = sbr.rel (0) target = $region25
  $region24: #{pix2pix_forward.55} parent=0 // pred_region
    _
  $region25: #{pix2pix_forward.55} parent=0 // pred_fallthru
    _
  // Predicated region
  $region26: #{pix2pix_forward.55} parent=0 // pred_check
    _
  $region27: #{pix2pix_forward.55} parent=0 // pred_check_branch
    %205 = sbr.rel (0) target = $region29
  $region28: #{pix2pix_forward.55} parent=0 // pred_region
    _
  $region29: #{pix2pix_forward.55} parent=0 // pred_fallthru
    _

// kernel: pix2pix_forward.59
$region0: #{pix2pix_forward.59}
  #allocation0 [shape = 'u32[]', space=smem, size = 0x4, offset = 0x4, fixed_abs, tag = 'smem constant byte address 0x4 - core index']
  #allocation1 [shape = 'u32[72,128]{1,0:T(1,128)}', space=vmem, size = 0x9000, scoped, tag = 'internal scratch']
  %s0 = inlined_call_operand.vmem [shape: f32[256,8], index: 0, kind: input, shape index: {}]
  %s1 = inlined_call_operand.vmem [shape: f32[1,8], index: 1, kind: input, shape index: {}]
  %s2 = inlined_call_operand.vmem [shape: f32[1,8], index: 2, kind: input, shape index: {}]
  %s3 = inlined_call_operand.vmem [shape: f32[256,8], index: 3, kind: output, shape index: {}]
  %s4 = sld [smem:[#allocation0]]
  $region22: #{pix2pix_forward.59} parent=0
    _
  %s6 = ssub.s32 1, %s4
  %s7 = scalar_select 0, %s6, %s4
  // Predicated region
  $region2: #{pix2pix_forward.59} parent=0 // pred_check
    _
  $region3: #{pix2pix_forward.59} parent=0 // pred_check_branch
    %9 = sbr.rel (0) target = $region5
  $region4: #{pix2pix_forward.59} parent=0 // pred_region
    _
  $region5: #{pix2pix_forward.59} parent=0 // pred_fallthru
    _
  // Predicated region
  $region6: #{pix2pix_forward.59} parent=0 // pred_check
    _
  $region7: #{pix2pix_forward.59} parent=0 // pred_check_branch
    %11 = sbr.rel (0) target = $region9
  $region8: #{pix2pix_forward.59} parent=0 // pred_region
    _
  $region9: #{pix2pix_forward.59} parent=0 // pred_fallthru
    _
  // Predicated region
  $region10: #{pix2pix_forward.59} parent=0 // pred_check
    _
  $region11: #{pix2pix_forward.59} parent=0 // pred_check_branch
    %13 = sbr.rel (0) target = $region13
  $region12: #{pix2pix_forward.59} parent=0 // pred_region
    _
  $region13: #{pix2pix_forward.59} parent=0 // pred_fallthru
    _
  %v14 = vld [vmem:[%s0] sm:$0xff]
  %v15 = vld [vmem:[%s0 + $0x8] sm:$0xff]
  %v16 = vld [vmem:[%s0 + $0x10] sm:$0xff]
  %v17 = vld [vmem:[%s0 + $0x18] sm:$0xff]
  %v18 = vld [vmem:[%s0 + $0x20] sm:$0xff]
  %v19 = vld [vmem:[%s0 + $0x28] sm:$0xff]
  %v20 = vld [vmem:[%s0 + $0x30] sm:$0xff]
  %v21 = vld [vmem:[%s0 + $0x38] sm:$0xff]
  %v22 = vld [vmem:[%s0 + $0x40] sm:$0xff]
  %v23 = vld [vmem:[%s0 + $0x48] sm:$0xff]
  %v24 = vld [vmem:[%s0 + $0x50] sm:$0xff]
  %v25 = vld [vmem:[%s0 + $0x58] sm:$0xff]
  %v26 = vld [vmem:[%s0 + $0x60] sm:$0xff]
  %v27 = vld [vmem:[%s0 + $0x68] sm:$0xff]
  %v28 = vld [vmem:[%s0 + $0x70] sm:$0xff]
  %v29 = vld [vmem:[%s0 + $0x78] sm:$0xff]
  %v30 = vld [vmem:[%s0 + $0x80] sm:$0xff]
  %v31 = vld [vmem:[%s0 + $0x88] sm:$0xff]
  %v32 = vld [vmem:[%s0 + $0x90] sm:$0xff]
  %v33 = vld [vmem:[%s0 + $0x98] sm:$0xff]
  %v34 = vld [vmem:[%s0 + $0xa0] sm:$0xff]
  %v35 = vld [vmem:[%s0 + $0xa8] sm:$0xff]
  %v36 = vld [vmem:[%s0 + $0xb0] sm:$0xff]
  %v37 = vld [vmem:[%s0 + $0xb8] sm:$0xff]
  %v38 = vld [vmem:[%s0 + $0xc0] sm:$0xff]
  %v39 = vld [vmem:[%s0 + $0xc8] sm:$0xff]
  %v40 = vld [vmem:[%s0 + $0xd0] sm:$0xff]
  %v41 = vld [vmem:[%s0 + $0xd8] sm:$0xff]
  %v42 = vld [vmem:[%s0 + $0xe0] sm:$0xff]
  %v43 = vld [vmem:[%s0 + $0xe8] sm:$0xff]
  %v44 = vld [vmem:[%s0 + $0xf0] sm:$0xff]
  %v45 = vld [vmem:[%s0 + $0xf8] sm:$0xff]
  %vm46 = vcmask 64512
  %v47 = vsel %vm46, %v14, 0.0
  %v48 = vsel %vm46, %v15, 0.0
  %v49 = vadd.f32 %v47, %v48
  %v50 = vsel %vm46, %v16, 0.0
  %v51 = vadd.f32 %v49, %v50
  %v52 = vsel %vm46, %v17, 0.0
  %v53 = vadd.f32 %v51, %v52
  %v54 = vsel %vm46, %v18, 0.0
  %v55 = vadd.f32 %v53, %v54
  %v56 = vsel %vm46, %v19, 0.0
  %v57 = vadd.f32 %v55, %v56
  %v58 = vsel %vm46, %v20, 0.0
  %v59 = vadd.f32 %v57, %v58
  %v60 = vsel %vm46, %v21, 0.0
  %v61 = vadd.f32 %v59, %v60
  %v62 = vsel %vm46, %v22, 0.0
  %v63 = vadd.f32 %v61, %v62
  %v64 = vsel %vm46, %v23, 0.0
  %v65 = vadd.f32 %v63, %v64
  %v66 = vsel %vm46, %v24, 0.0
  %v67 = vadd.f32 %v65, %v66
  %v68 = vsel %vm46, %v25, 0.0
  %v69 = vadd.f32 %v67, %v68
  %v70 = vsel %vm46, %v26, 0.0
  %v71 = vadd.f32 %v69, %v70
  %v72 = vsel %vm46, %v27, 0.0
  %v73 = vadd.f32 %v71, %v72
  %v74 = vsel %vm46, %v28, 0.0
  %v75 = vadd.f32 %v73, %v74
  %v76 = vsel %vm46, %v29, 0.0
  %v77 = vadd.f32 %v75, %v76
  %v78 = vsel %vm46, %v30, 0.0
  %v79 = vadd.f32 %v77, %v78
  %v80 = vsel %vm46, %v31, 0.0
  %v81 = vadd.f32 %v79, %v80
  %v82 = vsel %vm46, %v32, 0.0
  %v83 = vadd.f32 %v81, %v82
  %v84 = vsel %vm46, %v33, 0.0
  %v85 = vadd.f32 %v83, %v84
  %v86 = vsel %vm46, %v34, 0.0
  %v87 = vadd.f32 %v85, %v86
  %v88 = vsel %vm46, %v35, 0.0
  %v89 = vadd.f32 %v87, %v88
  %v90 = vsel %vm46, %v36, 0.0
  %v91 = vadd.f32 %v89, %v90
  %v92 = vsel %vm46, %v37, 0.0
  %v93 = vadd.f32 %v91, %v92
  %v94 = vsel %vm46, %v38, 0.0
  %v95 = vadd.f32 %v93, %v94
  %v96 = vsel %vm46, %v39, 0.0
  %v97 = vadd.f32 %v95, %v96
  %v98 = vsel %vm46, %v40, 0.0
  %v99 = vadd.f32 %v97, %v98
  %v100 = vsel %vm46, %v41, 0.0
  %v101 = vadd.f32 %v99, %v100
  %v102 = vsel %vm46, %v42, 0.0
  %v103 = vadd.f32 %v101, %v102
  %v104 = vsel %vm46, %v43, 0.0
  %v105 = vadd.f32 %v103, %v104
  %v106 = vsel %vm46, %v44, 0.0
  %v107 = vadd.f32 %v105, %v106
  %v108 = vsel %vm46, %v45, 0.0
  %v109 = vadd.f32 %v107, %v108
  %v110 = vrot.slane %v109, 4
  %v111 = vadd.f32 %v109, %v110
  %v112 = vrot.slane %v111, 2
  %v113 = vadd.f32 %v111, %v112
  %v114 = vrot.slane %v113, 1
  %v115 = vadd.f32 %v113, %v114
  %v116 = vrcp.pop 256.0
  %v117 = vmul.f32 256.0, %v116
  %v118 = vsub.f32 1.0, %v117
  %v119 = vmul.f32 %v116, %v118
  %v120 = vadd.f32 %v116, %v119
  %vm121 = vweird.f32 %v116
  %v122 = vsel %vm121, %v116, %v120
  %v123 = vmul.f32 %v115, %v122
  %v124 = vsub.f32 %v14, %v123
  %v125 = vsub.f32 %v15, %v123
  %v126 = vsub.f32 %v16, %v123
  %v127 = vsub.f32 %v17, %v123
  %v128 = vsub.f32 %v18, %v123
  %v129 = vsub.f32 %v19, %v123
  %v130 = vsub.f32 %v20, %v123
  %v131 = vsub.f32 %v21, %v123
  %v132 = vsub.f32 %v22, %v123
  %v133 = vsub.f32 %v23, %v123
  %v134 = vsub.f32 %v24, %v123
  %v135 = vsub.f32 %v25, %v123
  %v136 = vsub.f32 %v26, %v123
  %v137 = vsub.f32 %v27, %v123
  %v138 = vsub.f32 %v28, %v123
  %v139 = vsub.f32 %v29, %v123
  %v140 = vsub.f32 %v30, %v123
  %v141 = vsub.f32 %v31, %v123
  %v142 = vsub.f32 %v32, %v123
  %v143 = vsub.f32 %v33, %v123
  %v144 = vsub.f32 %v34, %v123
  %v145 = vsub.f32 %v35, %v123
  %v146 = vsub.f32 %v36, %v123
  %v147 = vsub.f32 %v37, %v123
  %v148 = vsub.f32 %v38, %v123
  %v149 = vsub.f32 %v39, %v123
  %v150 = vsub.f32 %v40, %v123
  %v151 = vsub.f32 %v41, %v123
  %v152 = vsub.f32 %v42, %v123
  %v153 = vsub.f32 %v43, %v123
  %v154 = vsub.f32 %v44, %v123
  %v155 = vsub.f32 %v45, %v123
  %v156 = vmul.f32 %v124, %v124
  %v157 = vmul.f32 %v125, %v125
  %v158 = vmul.f32 %v126, %v126
  %v159 = vmul.f32 %v127, %v127
  %v160 = vmul.f32 %v128, %v128
  %v161 = vmul.f32 %v129, %v129
  %v162 = vmul.f32 %v130, %v130
  %v163 = vmul.f32 %v131, %v131
  %v164 = vmul.f32 %v132, %v132
  %v165 = vmul.f32 %v133, %v133
  %v166 = vmul.f32 %v134, %v134
  %v167 = vmul.f32 %v135, %v135
  %v168 = vmul.f32 %v136, %v136
  %v169 = vmul.f32 %v137, %v137
  %v170 = vmul.f32 %v138, %v138
  %v171 = vmul.f32 %v139, %v139
  %v172 = vmul.f32 %v140, %v140
  %v173 = vmul.f32 %v141, %v141
  %v174 = vmul.f32 %v142, %v142
  %v175 = vmul.f32 %v143, %v143
  %v176 = vmul.f32 %v144, %v144
  %v177 = vmul.f32 %v145, %v145
  %v178 = vmul.f32 %v146, %v146
  %v179 = vmul.f32 %v147, %v147
  %v180 = vmul.f32 %v148, %v148
  %v181 = vmul.f32 %v149, %v149
  %v182 = vmul.f32 %v150, %v150
  %v183 = vmul.f32 %v151, %v151
  %v184 = vmul.f32 %v152, %v152
  %v185 = vmul.f32 %v153, %v153
  %v186 = vmul.f32 %v154, %v154
  %v187 = vmul.f32 %v155, %v155
  %v188 = vsel %vm46, %v156, 0.0
  %v189 = vsel %vm46, %v157, 0.0
  %v190 = vadd.f32 %v188, %v189
  %v191 = vsel %vm46, %v158, 0.0
  %v192 = vadd.f32 %v190, %v191
  %v193 = vsel %vm46, %v159, 0.0
  %v194 = vadd.f32 %v192, %v193
  %v195 = vsel %vm46, %v160, 0.0
  %v196 = vadd.f32 %v194, %v195
  %v197 = vsel %vm46, %v161, 0.0
  %v198 = vadd.f32 %v196, %v197
  %v199 = vsel %vm46, %v162, 0.0
  %v200 = vadd.f32 %v198, %v199
  %v201 = vsel %vm46, %v163, 0.0
  %v202 = vadd.f32 %v200, %v201
  %v203 = vsel %vm46, %v164, 0.0
  %v204 = vadd.f32 %v202, %v203
  %v205 = vsel %vm46, %v165, 0.0
  %v206 = vadd.f32 %v204, %v205
  %v207 = vsel %vm46, %v166, 0.0
  %v208 = vadd.f32 %v206, %v207
  %v209 = vsel %vm46, %v167, 0.0
  %v210 = vadd.f32 %v208, %v209
  %v211 = vsel %vm46, %v168, 0.0
  %v212 = vadd.f32 %v210, %v211
  %v213 = vsel %vm46, %v169, 0.0
  %v214 = vadd.f32 %v212, %v213
  %v215 = vsel %vm46, %v170, 0.0
  %v216 = vadd.f32 %v214, %v215
  %v217 = vsel %vm46, %v171, 0.0
  %v218 = vadd.f32 %v216, %v217
  %v219 = vsel %vm46, %v172, 0.0
  %v220 = vadd.f32 %v218, %v219
  %v221 = vsel %vm46, %v173, 0.0
  %v222 = vadd.f32 %v220, %v221
  %v223 = vsel %vm46, %v174, 0.0
  %v224 = vadd.f32 %v222, %v223
  %v225 = vsel %vm46, %v175, 0.0
  %v226 = vadd.f32 %v224, %v225
  %v227 = vsel %vm46, %v176, 0.0
  %v228 = vadd.f32 %v226, %v227
  %v229 = vsel %vm46, %v177, 0.0
  %v230 = vadd.f32 %v228, %v229
  %v231 = vsel %vm46, %v178, 0.0
  %v232 = vadd.f32 %v230, %v231
  %v233 = vsel %vm46, %v179, 0.0
  %v234 = vadd.f32 %v232, %v233
  %v235 = vsel %vm46, %v180, 0.0
  %v236 = vadd.f32 %v234, %v235
  %v237 = vsel %vm46, %v181, 0.0
  %v238 = vadd.f32 %v236, %v237
  %v239 = vsel %vm46, %v182, 0.0
  %v240 = vadd.f32 %v238, %v239
  %v241 = vsel %vm46, %v183, 0.0
  %v242 = vadd.f32 %v240, %v241
  %v243 = vsel %vm46, %v184, 0.0
  %v244 = vadd.f32 %v242, %v243
  %v245 = vsel %vm46, %v185, 0.0
  %v246 = vadd.f32 %v244, %v245
  %v247 = vsel %vm46, %v186, 0.0
  %v248 = vadd.f32 %v246, %v247
  %v249 = vsel %vm46, %v187, 0.0
  %v250 = vadd.f32 %v248, %v249
  %v251 = vrot.slane %v250, 4
  %v252 = vadd.f32 %v250, %v251
  %v253 = vrot.slane %v252, 2
  %v254 = vadd.f32 %v252, %v253
  %v255 = vrot.slane %v254, 1
  %v256 = vadd.f32 %v254, %v255
  %v257 = vmul.f32 %v256, %v122
  %v258 = vadd.f32 %v257, 1e-05
  %v259 = vrsqrt.pop %v258
  %v260 = vmul.f32 %v259, %v258
  %v261 = vmul.f32 %v260, %v259
  %v262 = vmul.f32 0.5, %v261
  %v263 = vsub.f32 1.5, %v262
  %v264 = vmul.f32 %v259, %v263
  %vm265 = vweird.f32 %v258
  %vm266 = vweird.f32 %v259
  %vm267 = vmor %vm265, %vm266
  %v268 = vsel %vm267, %v259, %v264
  %v269 = vmul.f32 %v124, %v268
  %v270 = vmul.f32 %v125, %v268
  %v271 = vmul.f32 %v126, %v268
  %v272 = vmul.f32 %v127, %v268
  %v273 = vmul.f32 %v128, %v268
  %v274 = vmul.f32 %v129, %v268
  %v275 = vmul.f32 %v130, %v268
  %v276 = vmul.f32 %v131, %v268
  %v277 = vmul.f32 %v132, %v268
  %v278 = vmul.f32 %v133, %v268
  %v279 = vmul.f32 %v134, %v268
  %v280 = vmul.f32 %v135, %v268
  %v281 = vmul.f32 %v136, %v268
  %v282 = vmul.f32 %v137, %v268
  %v283 = vmul.f32 %v138, %v268
  %v284 = vmul.f32 %v139, %v268
  %v285 = vmul.f32 %v140, %v268
  %v286 = vmul.f32 %v141, %v268
  %v287 = vmul.f32 %v142, %v268
  %v288 = vmul.f32 %v143, %v268
  %v289 = vmul.f32 %v144, %v268
  %v290 = vmul.f32 %v145, %v268
  %v291 = vmul.f32 %v146, %v268
  %v292 = vmul.f32 %v147, %v268
  %v293 = vmul.f32 %v148, %v268
  %v294 = vmul.f32 %v149, %v268
  %v295 = vmul.f32 %v150, %v268
  %v296 = vmul.f32 %v151, %v268
  %v297 = vmul.f32 %v152, %v268
  %v298 = vmul.f32 %v153, %v268
  %v299 = vmul.f32 %v154, %v268
  %v300 = vmul.f32 %v155, %v268
  %v301 = vld [vmem:[%s1] sm:$0x1]
  %v303 = vperm.slane %v301, 0
  %v305 = vmul.f32 %v269, %v303
  %v306 = vmul.f32 %v270, %v303
  %v307 = vmul.f32 %v271, %v303
  %v308 = vmul.f32 %v272, %v303
  %v309 = vmul.f32 %v273, %v303
  %v310 = vmul.f32 %v274, %v303
  %v311 = vmul.f32 %v275, %v303
  %v312 = vmul.f32 %v276, %v303
  %v313 = vmul.f32 %v277, %v303
  %v314 = vmul.f32 %v278, %v303
  %v315 = vmul.f32 %v279, %v303
  %v316 = vmul.f32 %v280, %v303
  %v317 = vmul.f32 %v281, %v303
  %v318 = vmul.f32 %v282, %v303
  %v319 = vmul.f32 %v283, %v303
  %v320 = vmul.f32 %v284, %v303
  %v321 = vmul.f32 %v285, %v303
  %v322 = vmul.f32 %v286, %v303
  %v323 = vmul.f32 %v287, %v303
  %v324 = vmul.f32 %v288, %v303
  %v325 = vmul.f32 %v289, %v303
  %v326 = vmul.f32 %v290, %v303
  %v327 = vmul.f32 %v291, %v303
  %v328 = vmul.f32 %v292, %v303
  %v329 = vmul.f32 %v293, %v303
  %v330 = vmul.f32 %v294, %v303
  %v331 = vmul.f32 %v295, %v303
  %v332 = vmul.f32 %v296, %v303
  %v333 = vmul.f32 %v297, %v303
  %v334 = vmul.f32 %v298, %v303
  %v335 = vmul.f32 %v299, %v303
  %v336 = vmul.f32 %v300, %v303
  %v337 = vld [vmem:[%s2] sm:$0x1]
  %v339 = vperm.slane %v337, 0
  %v341 = vadd.f32 %v305, %v339
  %v342 = vadd.f32 %v306, %v339
  %v343 = vadd.f32 %v307, %v339
  %v344 = vadd.f32 %v308, %v339
  %v345 = vadd.f32 %v309, %v339
  %v346 = vadd.f32 %v310, %v339
  %v347 = vadd.f32 %v311, %v339
  %v348 = vadd.f32 %v312, %v339
  %v349 = vadd.f32 %v313, %v339
  %v350 = vadd.f32 %v314, %v339
  %v351 = vadd.f32 %v315, %v339
  %v352 = vadd.f32 %v316, %v339
  %v353 = vadd.f32 %v317, %v339
  %v354 = vadd.f32 %v318, %v339
  %v355 = vadd.f32 %v319, %v339
  %v356 = vadd.f32 %v320, %v339
  %v357 = vadd.f32 %v321, %v339
  %v358 = vadd.f32 %v322, %v339
  %v359 = vadd.f32 %v323, %v339
  %v360 = vadd.f32 %v324, %v339
  %v361 = vadd.f32 %v325, %v339
  %v362 = vadd.f32 %v326, %v339
  %v363 = vadd.f32 %v327, %v339
  %v364 = vadd.f32 %v328, %v339
  %v365 = vadd.f32 %v329, %v339
  %v366 = vadd.f32 %v330, %v339
  %v367 = vadd.f32 %v331, %v339
  %v368 = vadd.f32 %v332, %v339
  %v369 = vadd.f32 %v333, %v339
  %v370 = vadd.f32 %v334, %v339
  %v371 = vadd.f32 %v335, %v339
  %v372 = vadd.f32 %v336, %v339
  %373 = vst.msk [vmem:[%s3] sm:$0xff] %vm46, %v341
  %374 = vst.msk [vmem:[%s3 + $0x8] sm:$0xff] %vm46, %v342
  %375 = vst.msk [vmem:[%s3 + $0x10] sm:$0xff] %vm46, %v343
  %376 = vst.msk [vmem:[%s3 + $0x18] sm:$0xff] %vm46, %v344
  %377 = vst.msk [vmem:[%s3 + $0x20] sm:$0xff] %vm46, %v345
  %378 = vst.msk [vmem:[%s3 + $0x28] sm:$0xff] %vm46, %v346
  %379 = vst.msk [vmem:[%s3 + $0x30] sm:$0xff] %vm46, %v347
  %380 = vst.msk [vmem:[%s3 + $0x38] sm:$0xff] %vm46, %v348
  %381 = vst.msk [vmem:[%s3 + $0x40] sm:$0xff] %vm46, %v349
  %382 = vst.msk [vmem:[%s3 + $0x48] sm:$0xff] %vm46, %v350
  %383 = vst.msk [vmem:[%s3 + $0x50] sm:$0xff] %vm46, %v351
  %384 = vst.msk [vmem:[%s3 + $0x58] sm:$0xff] %vm46, %v352
  %385 = vst.msk [vmem:[%s3 + $0x60] sm:$0xff] %vm46, %v353
  %386 = vst.msk [vmem:[%s3 + $0x68] sm:$0xff] %vm46, %v354
  %387 = vst.msk [vmem:[%s3 + $0x70] sm:$0xff] %vm46, %v355
  %388 = vst.msk [vmem:[%s3 + $0x78] sm:$0xff] %vm46, %v356
  %389 = vst.msk [vmem:[%s3 + $0x80] sm:$0xff] %vm46, %v357
  %390 = vst.msk [vmem:[%s3 + $0x88] sm:$0xff] %vm46, %v358
  %391 = vst.msk [vmem:[%s3 + $0x90] sm:$0xff] %vm46, %v359
  %392 = vst.msk [vmem:[%s3 + $0x98] sm:$0xff] %vm46, %v360
  %393 = vst.msk [vmem:[%s3 + $0xa0] sm:$0xff] %vm46, %v361
  %394 = vst.msk [vmem:[%s3 + $0xa8] sm:$0xff] %vm46, %v362
  %395 = vst.msk [vmem:[%s3 + $0xb0] sm:$0xff] %vm46, %v363
  %396 = vst.msk [vmem:[%s3 + $0xb8] sm:$0xff] %vm46, %v364
  %397 = vst.msk [vmem:[%s3 + $0xc0] sm:$0xff] %vm46, %v365
  %398 = vst.msk [vmem:[%s3 + $0xc8] sm:$0xff] %vm46, %v366
  %399 = vst.msk [vmem:[%s3 + $0xd0] sm:$0xff] %vm46, %v367
  %400 = vst.msk [vmem:[%s3 + $0xd8] sm:$0xff] %vm46, %v368
  %401 = vst.msk [vmem:[%s3 + $0xe0] sm:$0xff] %vm46, %v369
  %402 = vst.msk [vmem:[%s3 + $0xe8] sm:$0xff] %vm46, %v370
  %403 = vst.msk [vmem:[%s3 + $0xf0] sm:$0xff] %vm46, %v371
  %404 = vst.msk [vmem:[%s3 + $0xf8] sm:$0xff] %vm46, %v372
  // Predicated region
  $region14: #{pix2pix_forward.59} parent=0 // pred_check
    _
  $region15: #{pix2pix_forward.59} parent=0 // pred_check_branch
    %406 = sbr.rel (0) target = $region17
  $region16: #{pix2pix_forward.59} parent=0 // pred_region
    _
  $region17: #{pix2pix_forward.59} parent=0 // pred_fallthru
    _
  // Predicated region
  $region18: #{pix2pix_forward.59} parent=0 // pred_check
    _
  $region19: #{pix2pix_forward.59} parent=0 // pred_check_branch
    %408 = sbr.rel (0) target = $region21
  $region20: #{pix2pix_forward.59} parent=0 // pred_region
    _
  $region21: #{pix2pix_forward.59} parent=0 // pred_fallthru
    _

// kernel: pix2pix_forward.60
$region0: #{pix2pix_forward.60}
  #allocation0 [shape = 'u32[]', space=smem, size = 0x4, offset = 0x4, fixed_abs, tag = 'smem constant byte address 0x4 - core index']
  #allocation1 [shape = 'u32[72,128]{1,0:T(1,128)}', space=vmem, size = 0x9000, scoped, tag = 'internal scratch']
  #allocation2 [shape = 'f32[256,128]{1,0:T(8,128)}', space=vmem, size = 0x20000, scoped, tag = 'scratch operand']
  %s0 = inlined_call_operand.vmem [shape: bf16[256,128], index: 0, kind: input, shape index: {}]
  %s1 = inlined_call_operand.vmem [shape: bf16[128,128], index: 1, kind: input, shape index: {}]
  %s2 = inlined_call_operand.vmem [shape: f32[1,128], index: 2, kind: input, shape index: {}]
  %s3 = inlined_call_operand.vmem [shape: f32[256,128], index: 3, kind: output, shape index: {}]
  %s4 = sld [smem:[#allocation0]]
  $region30: #{pix2pix_forward.60} parent=0
    _
  %s6 = ssub.s32 1, %s4
  %s7 = scalar_select 0, %s6, %s4
  // Predicated region
  $region2: #{pix2pix_forward.60} parent=0 // pred_check
    _
  $region3: #{pix2pix_forward.60} parent=0 // pred_check_branch
    %9 = sbr.rel (0) target = $region5
  $region4: #{pix2pix_forward.60} parent=0 // pred_region
    _
  $region5: #{pix2pix_forward.60} parent=0 // pred_fallthru
    _
  // Predicated region
  $region6: #{pix2pix_forward.60} parent=0 // pred_check
    _
  $region7: #{pix2pix_forward.60} parent=0 // pred_check_branch
    %11 = sbr.rel (0) target = $region9
  $region8: #{pix2pix_forward.60} parent=0 // pred_region
    _
  $region9: #{pix2pix_forward.60} parent=0 // pred_fallthru
    _
  // Predicated region
  $region10: #{pix2pix_forward.60} parent=0 // pred_check
    _
  $region11: #{pix2pix_forward.60} parent=0 // pred_check_branch
    %13 = sbr.rel (0) target = $region13
  $region12: #{pix2pix_forward.60} parent=0 // pred_region
    _
  $region13: #{pix2pix_forward.60} parent=0 // pred_fallthru
    _
  %p14 = scmp.eq.s32.totalorder 0, 0
  // Predicated region
  $region14: #{pix2pix_forward.60} parent=0 // pred_check
    %p15 = pneg %p14
  $region15: #{pix2pix_forward.60} parent=0 // pred_check_branch
    %17 = sbr.rel (%p15) target = $region17
  $region16: #{pix2pix_forward.60} parent=0 // pred_region
    %18 = vst [vmem:[#allocation2] sm:$0xff] 0.0
    %19 = vst [vmem:[#allocation2 + $0x8] sm:$0xff] 0.0
    %20 = vst [vmem:[#allocation2 + $0x10] sm:$0xff] 0.0
    %21 = vst [vmem:[#allocation2 + $0x18] sm:$0xff] 0.0
    %22 = vst [vmem:[#allocation2 + $0x20] sm:$0xff] 0.0
    %23 = vst [vmem:[#allocation2 + $0x28] sm:$0xff] 0.0
    %24 = vst [vmem:[#allocation2 + $0x30] sm:$0xff] 0.0
    %25 = vst [vmem:[#allocation2 + $0x38] sm:$0xff] 0.0
    %26 = vst [vmem:[#allocation2 + $0x40] sm:$0xff] 0.0
    %27 = vst [vmem:[#allocation2 + $0x48] sm:$0xff] 0.0
    %28 = vst [vmem:[#allocation2 + $0x50] sm:$0xff] 0.0
    %29 = vst [vmem:[#allocation2 + $0x58] sm:$0xff] 0.0
    %30 = vst [vmem:[#allocation2 + $0x60] sm:$0xff] 0.0
    %31 = vst [vmem:[#allocation2 + $0x68] sm:$0xff] 0.0
    %32 = vst [vmem:[#allocation2 + $0x70] sm:$0xff] 0.0
    %33 = vst [vmem:[#allocation2 + $0x78] sm:$0xff] 0.0
    %34 = vst [vmem:[#allocation2 + $0x80] sm:$0xff] 0.0
    %35 = vst [vmem:[#allocation2 + $0x88] sm:$0xff] 0.0
    %36 = vst [vmem:[#allocation2 + $0x90] sm:$0xff] 0.0
    %37 = vst [vmem:[#allocation2 + $0x98] sm:$0xff] 0.0
    %38 = vst [vmem:[#allocation2 + $0xa0] sm:$0xff] 0.0
    %39 = vst [vmem:[#allocation2 + $0xa8] sm:$0xff] 0.0
    %40 = vst [vmem:[#allocation2 + $0xb0] sm:$0xff] 0.0
    %41 = vst [vmem:[#allocation2 + $0xb8] sm:$0xff] 0.0
    %42 = vst [vmem:[#allocation2 + $0xc0] sm:$0xff] 0.0
    %43 = vst [vmem:[#allocation2 + $0xc8] sm:$0xff] 0.0
    %44 = vst [vmem:[#allocation2 + $0xd0] sm:$0xff] 0.0
    %45 = vst [vmem:[#allocation2 + $0xd8] sm:$0xff] 0.0
    %46 = vst [vmem:[#allocation2 + $0xe0] sm:$0xff] 0.0
    %47 = vst [vmem:[#allocation2 + $0xe8] sm:$0xff] 0.0
    %48 = vst [vmem:[#allocation2 + $0xf0] sm:$0xff] 0.0
    %49 = vst [vmem:[#allocation2 + $0xf8] sm:$0xff] 0.0
  $region17: #{pix2pix_forward.60} parent=0 // pred_fallthru
    _
  %v50 = vld [vmem:[%s0] sm:$0xf]
  %v51 = vld [vmem:[%s0 + $0x4] sm:$0xf]
  %v52 = vld [vmem:[%s0 + $0x8] sm:$0xf]
  %v53 = vld [vmem:[%s0 + $0xc] sm:$0xf]
  %v54 = vld [vmem:[%s0 + $0x10] sm:$0xf]
  %v55 = vld [vmem:[%s0 + $0x14] sm:$0xf]
  %v56 = vld [vmem:[%s0 + $0x18] sm:$0xf]
  %v57 = vld [vmem:[%s0 + $0x1c] sm:$0xf]
  %v58 = vld [vmem:[%s0 + $0x20] sm:$0xf]
  %v59 = vld [vmem:[%s0 + $0x24] sm:$0xf]
  %v60 = vld [vmem:[%s0 + $0x28] sm:$0xf]
  %v61 = vld [vmem:[%s0 + $0x2c] sm:$0xf]
  %v62 = vld [vmem:[%s0 + $0x30] sm:$0xf]
  %v63 = vld [vmem:[%s0 + $0x34] sm:$0xf]
  %v64 = vld [vmem:[%s0 + $0x38] sm:$0xf]
  %v65 = vld [vmem:[%s0 + $0x3c] sm:$0xf]
  %v66 = vld [vmem:[%s0 + $0x40] sm:$0xf]
  %v67 = vld [vmem:[%s0 + $0x44] sm:$0xf]
  %v68 = vld [vmem:[%s0 + $0x48] sm:$0xf]
  %v69 = vld [vmem:[%s0 + $0x4c] sm:$0xf]
  %v70 = vld [vmem:[%s0 + $0x50] sm:$0xf]
  %v71 = vld [vmem:[%s0 + $0x54] sm:$0xf]
  %v72 = vld [vmem:[%s0 + $0x58] sm:$0xf]
  %v73 = vld [vmem:[%s0 + $0x5c] sm:$0xf]
  %v74 = vld [vmem:[%s0 + $0x60] sm:$0xf]
  %v75 = vld [vmem:[%s0 + $0x64] sm:$0xf]
  %v76 = vld [vmem:[%s0 + $0x68] sm:$0xf]
  %v77 = vld [vmem:[%s0 + $0x6c] sm:$0xf]
  %v78 = vld [vmem:[%s0 + $0x70] sm:$0xf]
  %v79 = vld [vmem:[%s0 + $0x74] sm:$0xf]
  %v80 = vld [vmem:[%s0 + $0x78] sm:$0xf]
  %v81 = vld [vmem:[%s0 + $0x7c] sm:$0xf]
  %v82 = vunpack.c.l.bf16 %v50
  %v83 = vunpack.c.l.bf16 %v51
  %v84 = vunpack.c.l.bf16 %v52
  %v85 = vunpack.c.l.bf16 %v53
  %v86 = vunpack.c.l.bf16 %v54
  %v87 = vunpack.c.l.bf16 %v55
  %v88 = vunpack.c.l.bf16 %v56
  %v89 = vunpack.c.l.bf16 %v57
  %v90 = vunpack.c.l.bf16 %v58
  %v91 = vunpack.c.l.bf16 %v59
  %v92 = vunpack.c.l.bf16 %v60
  %v93 = vunpack.c.l.bf16 %v61
  %v94 = vunpack.c.l.bf16 %v62
  %v95 = vunpack.c.l.bf16 %v63
  %v96 = vunpack.c.l.bf16 %v64
  %v97 = vunpack.c.l.bf16 %v65
  %v98 = vunpack.c.l.bf16 %v66
  %v99 = vunpack.c.l.bf16 %v67
  %v100 = vunpack.c.l.bf16 %v68
  %v101 = vunpack.c.l.bf16 %v69
  %v102 = vunpack.c.l.bf16 %v70
  %v103 = vunpack.c.l.bf16 %v71
  %v104 = vunpack.c.l.bf16 %v72
  %v105 = vunpack.c.l.bf16 %v73
  %v106 = vunpack.c.l.bf16 %v74
  %v107 = vunpack.c.l.bf16 %v75
  %v108 = vunpack.c.l.bf16 %v76
  %v109 = vunpack.c.l.bf16 %v77
  %v110 = vunpack.c.l.bf16 %v78
  %v111 = vunpack.c.l.bf16 %v79
  %v112 = vunpack.c.l.bf16 %v80
  %v113 = vunpack.c.l.bf16 %v81
  %v114 = vmax.f32 %v82, 0.0
  %v115 = vmax.f32 %v83, 0.0
  %v116 = vmax.f32 %v84, 0.0
  %v117 = vmax.f32 %v85, 0.0
  %v118 = vmax.f32 %v86, 0.0
  %v119 = vmax.f32 %v87, 0.0
  %v120 = vmax.f32 %v88, 0.0
  %v121 = vmax.f32 %v89, 0.0
  %v122 = vmax.f32 %v90, 0.0
  %v123 = vmax.f32 %v91, 0.0
  %v124 = vmax.f32 %v92, 0.0
  %v125 = vmax.f32 %v93, 0.0
  %v126 = vmax.f32 %v94, 0.0
  %v127 = vmax.f32 %v95, 0.0
  %v128 = vmax.f32 %v96, 0.0
  %v129 = vmax.f32 %v97, 0.0
  %v130 = vmax.f32 %v98, 0.0
  %v131 = vmax.f32 %v99, 0.0
  %v132 = vmax.f32 %v100, 0.0
  %v133 = vmax.f32 %v101, 0.0
  %v134 = vmax.f32 %v102, 0.0
  %v135 = vmax.f32 %v103, 0.0
  %v136 = vmax.f32 %v104, 0.0
  %v137 = vmax.f32 %v105, 0.0
  %v138 = vmax.f32 %v106, 0.0
  %v139 = vmax.f32 %v107, 0.0
  %v140 = vmax.f32 %v108, 0.0
  %v141 = vmax.f32 %v109, 0.0
  %v142 = vmax.f32 %v110, 0.0
  %v143 = vmax.f32 %v111, 0.0
  %v144 = vmax.f32 %v112, 0.0
  %v145 = vmax.f32 %v113, 0.0
  %v146 = vpack.c.bf16 %v115, %v114
  %v147 = vpack.c.bf16 %v117, %v116
  %v148 = vpack.c.bf16 %v119, %v118
  %v149 = vpack.c.bf16 %v121, %v120
  %v150 = vpack.c.bf16 %v123, %v122
  %v151 = vpack.c.bf16 %v125, %v124
  %v152 = vpack.c.bf16 %v127, %v126
  %v153 = vpack.c.bf16 %v129, %v128
  %v154 = vpack.c.bf16 %v131, %v130
  %v155 = vpack.c.bf16 %v133, %v132
  %v156 = vpack.c.bf16 %v135, %v134
  %v157 = vpack.c.bf16 %v137, %v136
  %v158 = vpack.c.bf16 %v139, %v138
  %v159 = vpack.c.bf16 %v141, %v140
  %v160 = vpack.c.bf16 %v143, %v142
  %v161 = vpack.c.bf16 %v145, %v144
  %v162 = vld [vmem:[#allocation2] sm:$0xff]
  %v163 = vld [vmem:[#allocation2 + $0x8] sm:$0xff]
  %v164 = vld [vmem:[#allocation2 + $0x10] sm:$0xff]
  %v165 = vld [vmem:[#allocation2 + $0x18] sm:$0xff]
  %v166 = vld [vmem:[#allocation2 + $0x20] sm:$0xff]
  %v167 = vld [vmem:[#allocation2 + $0x28] sm:$0xff]
  %v168 = vld [vmem:[#allocation2 + $0x30] sm:$0xff]
  %v169 = vld [vmem:[#allocation2 + $0x38] sm:$0xff]
  %v170 = vld [vmem:[#allocation2 + $0x40] sm:$0xff]
  %v171 = vld [vmem:[#allocation2 + $0x48] sm:$0xff]
  %v172 = vld [vmem:[#allocation2 + $0x50] sm:$0xff]
  %v173 = vld [vmem:[#allocation2 + $0x58] sm:$0xff]
  %v174 = vld [vmem:[#allocation2 + $0x60] sm:$0xff]
  %v175 = vld [vmem:[#allocation2 + $0x68] sm:$0xff]
  %v176 = vld [vmem:[#allocation2 + $0x70] sm:$0xff]
  %v177 = vld [vmem:[#allocation2 + $0x78] sm:$0xff]
  %v178 = vld [vmem:[#allocation2 + $0x80] sm:$0xff]
  %v179 = vld [vmem:[#allocation2 + $0x88] sm:$0xff]
  %v180 = vld [vmem:[#allocation2 + $0x90] sm:$0xff]
  %v181 = vld [vmem:[#allocation2 + $0x98] sm:$0xff]
  %v182 = vld [vmem:[#allocation2 + $0xa0] sm:$0xff]
  %v183 = vld [vmem:[#allocation2 + $0xa8] sm:$0xff]
  %v184 = vld [vmem:[#allocation2 + $0xb0] sm:$0xff]
  %v185 = vld [vmem:[#allocation2 + $0xb8] sm:$0xff]
  %v186 = vld [vmem:[#allocation2 + $0xc0] sm:$0xff]
  %v187 = vld [vmem:[#allocation2 + $0xc8] sm:$0xff]
  %v188 = vld [vmem:[#allocation2 + $0xd0] sm:$0xff]
  %v189 = vld [vmem:[#allocation2 + $0xd8] sm:$0xff]
  %v190 = vld [vmem:[#allocation2 + $0xe0] sm:$0xff]
  %v191 = vld [vmem:[#allocation2 + $0xe8] sm:$0xff]
  %v192 = vld [vmem:[#allocation2 + $0xf0] sm:$0xff]
  %v193 = vld [vmem:[#allocation2 + $0xf8] sm:$0xff]
  %v194 = vld [vmem:[%s1] sm:$0xf]
  %v195 = vld [vmem:[%s1 + $0x4] sm:$0xf]
  %v196 = vld [vmem:[%s1 + $0x8] sm:$0xf]
  %v197 = vld [vmem:[%s1 + $0xc] sm:$0xf]
  %v198 = vld [vmem:[%s1 + $0x10] sm:$0xf]
  %v199 = vld [vmem:[%s1 + $0x14] sm:$0xf]
  %v200 = vld [vmem:[%s1 + $0x18] sm:$0xf]
  %v201 = vld [vmem:[%s1 + $0x1c] sm:$0xf]
  %v202 = vld [vmem:[%s1 + $0x20] sm:$0xf]
  %v203 = vld [vmem:[%s1 + $0x24] sm:$0xf]
  %v204 = vld [vmem:[%s1 + $0x28] sm:$0xf]
  %v205 = vld [vmem:[%s1 + $0x2c] sm:$0xf]
  %v206 = vld [vmem:[%s1 + $0x30] sm:$0xf]
  %v207 = vld [vmem:[%s1 + $0x34] sm:$0xf]
  %v208 = vld [vmem:[%s1 + $0x38] sm:$0xf]
  %v209 = vld [vmem:[%s1 + $0x3c] sm:$0xf]
  %v226 = vunpack.c.l.b16 %v194
  %v227 = vunpack.c.l.b16 %v195
  %v228 = vunpack.c.l.b16 %v196
  %v229 = vunpack.c.l.b16 %v197
  %v230 = vunpack.c.l.b16 %v198
  %v231 = vunpack.c.l.b16 %v199
  %v232 = vunpack.c.l.b16 %v200
  %v233 = vunpack.c.l.b16 %v201
  %v234 = vunpack.c.l.b16 %v202
  %v235 = vunpack.c.l.b16 %v203
  %v236 = vunpack.c.l.b16 %v204
  %v237 = vunpack.c.l.b16 %v205
  %v238 = vunpack.c.l.b16 %v206
  %v239 = vunpack.c.l.b16 %v207
  %v240 = vunpack.c.l.b16 %v208
  %v241 = vunpack.c.l.b16 %v209
  %v242 = vpack.c.b16 %v227, %v226
  %v243 = vpack.c.b16 %v229, %v228
  %v244 = vpack.c.b16 %v231, %v230
  %v245 = vpack.c.b16 %v233, %v232
  %v246 = vpack.c.b16 %v235, %v234
  %v247 = vpack.c.b16 %v237, %v236
  %v248 = vpack.c.b16 %v239, %v238
  %v249 = vpack.c.b16 %v241, %v240
  %258 = vmatpush.bf16.msra.mxu0 %v249
  %259 = vmatpush.bf16.msra.mxu0 %v248
  %260 = vmatpush.bf16.msra.mxu0 %v247
  %261 = vmatpush.bf16.msra.mxu0 %v246
  %262 = vmatpush.bf16.msra.mxu0 %v245
  %263 = vmatpush.bf16.msra.mxu0 %v244
  %264 = vmatpush.bf16.msra.mxu0 %v243
  %265 = vmatpush.bf16.msra.mxu0 %v242
  %266 = vmatmul.bf16.gmra.mxu0 %v146
  %v267 = vpop.f32.mrf.mxu0
  %v268 = vadd.f32 0.0, %v267
  %v269 = vpop.f32.mrf.mxu0
  %v270 = vadd.f32 0.0, %v269
  %271 = vmatmul.bf16.gmra.mxu0 %v147
  %v272 = vpop.f32.mrf.mxu0
  %v273 = vadd.f32 0.0, %v272
  %v274 = vpop.f32.mrf.mxu0
  %v275 = vadd.f32 0.0, %v274
  %276 = vmatmul.bf16.gmra.mxu0 %v148
  %v277 = vpop.f32.mrf.mxu0
  %v278 = vadd.f32 0.0, %v277
  %v279 = vpop.f32.mrf.mxu0
  %v280 = vadd.f32 0.0, %v279
  %281 = vmatmul.bf16.gmra.mxu0 %v149
  %v282 = vpop.f32.mrf.mxu0
  %v283 = vadd.f32 0.0, %v282
  %v284 = vpop.f32.mrf.mxu0
  %v285 = vadd.f32 0.0, %v284
  %286 = vmatmul.bf16.gmra.mxu0 %v150
  %v287 = vpop.f32.mrf.mxu0
  %v288 = vadd.f32 0.0, %v287
  %v289 = vpop.f32.mrf.mxu0
  %v290 = vadd.f32 0.0, %v289
  %291 = vmatmul.bf16.gmra.mxu0 %v151
  %v292 = vpop.f32.mrf.mxu0
  %v293 = vadd.f32 0.0, %v292
  %v294 = vpop.f32.mrf.mxu0
  %v295 = vadd.f32 0.0, %v294
  %296 = vmatmul.bf16.gmra.mxu0 %v152
  %v297 = vpop.f32.mrf.mxu0
  %v298 = vadd.f32 0.0, %v297
  %v299 = vpop.f32.mrf.mxu0
  %v300 = vadd.f32 0.0, %v299
  %301 = vmatmul.bf16.gmra.mxu0 %v153
  %v302 = vpop.f32.mrf.mxu0
  %v303 = vadd.f32 0.0, %v302
  %v304 = vpop.f32.mrf.mxu0
  %v305 = vadd.f32 0.0, %v304
  %306 = vmatmul.bf16.gmra.mxu0 %v154
  %v307 = vpop.f32.mrf.mxu0
  %v308 = vadd.f32 0.0, %v307
  %v309 = vpop.f32.mrf.mxu0
  %v310 = vadd.f32 0.0, %v309
  %311 = vmatmul.bf16.gmra.mxu0 %v155
  %v312 = vpop.f32.mrf.mxu0
  %v313 = vadd.f32 0.0, %v312
  %v314 = vpop.f32.mrf.mxu0
  %v315 = vadd.f32 0.0, %v314
  %316 = vmatmul.bf16.gmra.mxu0 %v156
  %v317 = vpop.f32.mrf.mxu0
  %v318 = vadd.f32 0.0, %v317
  %v319 = vpop.f32.mrf.mxu0
  %v320 = vadd.f32 0.0, %v319
  %321 = vmatmul.bf16.gmra.mxu0 %v157
  %v322 = vpop.f32.mrf.mxu0
  %v323 = vadd.f32 0.0, %v322
  %v324 = vpop.f32.mrf.mxu0
  %v325 = vadd.f32 0.0, %v324
  %326 = vmatmul.bf16.gmra.mxu0 %v158
  %v327 = vpop.f32.mrf.mxu0
  %v328 = vadd.f32 0.0, %v327
  %v329 = vpop.f32.mrf.mxu0
  %v330 = vadd.f32 0.0, %v329
  %331 = vmatmul.bf16.gmra.mxu0 %v159
  %v332 = vpop.f32.mrf.mxu0
  %v333 = vadd.f32 0.0, %v332
  %v334 = vpop.f32.mrf.mxu0
  %v335 = vadd.f32 0.0, %v334
  %336 = vmatmul.bf16.gmra.mxu0 %v160
  %v337 = vpop.f32.mrf.mxu0
  %v338 = vadd.f32 0.0, %v337
  %v339 = vpop.f32.mrf.mxu0
  %v340 = vadd.f32 0.0, %v339
  %341 = vmatmul.bf16.gmra.mxu0 %v161
  %v342 = vpop.f32.mrf.mxu0
  %v343 = vadd.f32 0.0, %v342
  %v344 = vpop.f32.mrf.mxu0
  %v345 = vadd.f32 0.0, %v344
  %346 = vdwg.mxu0
  %v347 = vadd.f32 %v162, %v268
  %v348 = vadd.f32 %v163, %v270
  %v349 = vadd.f32 %v164, %v273
  %v350 = vadd.f32 %v165, %v275
  %v351 = vadd.f32 %v166, %v278
  %v352 = vadd.f32 %v167, %v280
  %v353 = vadd.f32 %v168, %v283
  %v354 = vadd.f32 %v169, %v285
  %v355 = vadd.f32 %v170, %v288
  %v356 = vadd.f32 %v171, %v290
  %v357 = vadd.f32 %v172, %v293
  %v358 = vadd.f32 %v173, %v295
  %v359 = vadd.f32 %v174, %v298
  %v360 = vadd.f32 %v175, %v300
  %v361 = vadd.f32 %v176, %v303
  %v362 = vadd.f32 %v177, %v305
  %v363 = vadd.f32 %v178, %v308
  %v364 = vadd.f32 %v179, %v310
  %v365 = vadd.f32 %v180, %v313
  %v366 = vadd.f32 %v181, %v315
  %v367 = vadd.f32 %v182, %v318
  %v368 = vadd.f32 %v183, %v320
  %v369 = vadd.f32 %v184, %v323
  %v370 = vadd.f32 %v185, %v325
  %v371 = vadd.f32 %v186, %v328
  %v372 = vadd.f32 %v187, %v330
  %v373 = vadd.f32 %v188, %v333
  %v374 = vadd.f32 %v189, %v335
  %v375 = vadd.f32 %v190, %v338
  %v376 = vadd.f32 %v191, %v340
  %v377 = vadd.f32 %v192, %v343
  %v378 = vadd.f32 %v193, %v345
  %379 = vst [vmem:[#allocation2] sm:$0xff] %v347
  %380 = vst [vmem:[#allocation2 + $0x8] sm:$0xff] %v348
  %381 = vst [vmem:[#allocation2 + $0x10] sm:$0xff] %v349
  %382 = vst [vmem:[#allocation2 + $0x18] sm:$0xff] %v350
  %383 = vst [vmem:[#allocation2 + $0x20] sm:$0xff] %v351
  %384 = vst [vmem:[#allocation2 + $0x28] sm:$0xff] %v352
  %385 = vst [vmem:[#allocation2 + $0x30] sm:$0xff] %v353
  %386 = vst [vmem:[#allocation2 + $0x38] sm:$0xff] %v354
  %387 = vst [vmem:[#allocation2 + $0x40] sm:$0xff] %v355
  %388 = vst [vmem:[#allocation2 + $0x48] sm:$0xff] %v356
  %389 = vst [vmem:[#allocation2 + $0x50] sm:$0xff] %v357
  %390 = vst [vmem:[#allocation2 + $0x58] sm:$0xff] %v358
  %391 = vst [vmem:[#allocation2 + $0x60] sm:$0xff] %v359
  %392 = vst [vmem:[#allocation2 + $0x68] sm:$0xff] %v360
  %393 = vst [vmem:[#allocation2 + $0x70] sm:$0xff] %v361
  %394 = vst [vmem:[#allocation2 + $0x78] sm:$0xff] %v362
  %395 = vst [vmem:[#allocation2 + $0x80] sm:$0xff] %v363
  %396 = vst [vmem:[#allocation2 + $0x88] sm:$0xff] %v364
  %397 = vst [vmem:[#allocation2 + $0x90] sm:$0xff] %v365
  %398 = vst [vmem:[#allocation2 + $0x98] sm:$0xff] %v366
  %399 = vst [vmem:[#allocation2 + $0xa0] sm:$0xff] %v367
  %400 = vst [vmem:[#allocation2 + $0xa8] sm:$0xff] %v368
  %401 = vst [vmem:[#allocation2 + $0xb0] sm:$0xff] %v369
  %402 = vst [vmem:[#allocation2 + $0xb8] sm:$0xff] %v370
  %403 = vst [vmem:[#allocation2 + $0xc0] sm:$0xff] %v371
  %404 = vst [vmem:[#allocation2 + $0xc8] sm:$0xff] %v372
  %405 = vst [vmem:[#allocation2 + $0xd0] sm:$0xff] %v373
  %406 = vst [vmem:[#allocation2 + $0xd8] sm:$0xff] %v374
  %407 = vst [vmem:[#allocation2 + $0xe0] sm:$0xff] %v375
  %408 = vst [vmem:[#allocation2 + $0xe8] sm:$0xff] %v376
  %409 = vst [vmem:[#allocation2 + $0xf0] sm:$0xff] %v377
  %410 = vst [vmem:[#allocation2 + $0xf8] sm:$0xff] %v378
  // Predicated region
  $region18: #{pix2pix_forward.60} parent=0 // pred_check
    %p411 = pneg %p14
  $region19: #{pix2pix_forward.60} parent=0 // pred_check_branch
    %413 = sbr.rel (%p411) target = $region21
  $region20: #{pix2pix_forward.60} parent=0 // pred_region
    %v414 = vld [vmem:[#allocation2] sm:$0xff]
    %v415 = vld [vmem:[#allocation2 + $0x8] sm:$0xff]
    %v416 = vld [vmem:[#allocation2 + $0x10] sm:$0xff]
    %v417 = vld [vmem:[#allocation2 + $0x18] sm:$0xff]
    %v418 = vld [vmem:[#allocation2 + $0x20] sm:$0xff]
    %v419 = vld [vmem:[#allocation2 + $0x28] sm:$0xff]
    %v420 = vld [vmem:[#allocation2 + $0x30] sm:$0xff]
    %v421 = vld [vmem:[#allocation2 + $0x38] sm:$0xff]
    %v422 = vld [vmem:[#allocation2 + $0x40] sm:$0xff]
    %v423 = vld [vmem:[#allocation2 + $0x48] sm:$0xff]
    %v424 = vld [vmem:[#allocation2 + $0x50] sm:$0xff]
    %v425 = vld [vmem:[#allocation2 + $0x58] sm:$0xff]
    %v426 = vld [vmem:[#allocation2 + $0x60] sm:$0xff]
    %v427 = vld [vmem:[#allocation2 + $0x68] sm:$0xff]
    %v428 = vld [vmem:[#allocation2 + $0x70] sm:$0xff]
    %v429 = vld [vmem:[#allocation2 + $0x78] sm:$0xff]
    %v430 = vld [vmem:[#allocation2 + $0x80] sm:$0xff]
    %v431 = vld [vmem:[#allocation2 + $0x88] sm:$0xff]
    %v432 = vld [vmem:[#allocation2 + $0x90] sm:$0xff]
    %v433 = vld [vmem:[#allocation2 + $0x98] sm:$0xff]
    %v434 = vld [vmem:[#allocation2 + $0xa0] sm:$0xff]
    %v435 = vld [vmem:[#allocation2 + $0xa8] sm:$0xff]
    %v436 = vld [vmem:[#allocation2 + $0xb0] sm:$0xff]
    %v437 = vld [vmem:[#allocation2 + $0xb8] sm:$0xff]
    %v438 = vld [vmem:[#allocation2 + $0xc0] sm:$0xff]
    %v439 = vld [vmem:[#allocation2 + $0xc8] sm:$0xff]
    %v440 = vld [vmem:[#allocation2 + $0xd0] sm:$0xff]
    %v441 = vld [vmem:[#allocation2 + $0xd8] sm:$0xff]
    %v442 = vld [vmem:[#allocation2 + $0xe0] sm:$0xff]
    %v443 = vld [vmem:[#allocation2 + $0xe8] sm:$0xff]
    %v444 = vld [vmem:[#allocation2 + $0xf0] sm:$0xff]
    %v445 = vld [vmem:[#allocation2 + $0xf8] sm:$0xff]
    %v446 = vld [vmem:[%s2] sm:$0x1]
    %v448 = vperm.slane %v446, 0
    %v450 = vadd.f32 %v414, %v448
    %v451 = vadd.f32 %v415, %v448
    %v452 = vadd.f32 %v416, %v448
    %v453 = vadd.f32 %v417, %v448
    %v454 = vadd.f32 %v418, %v448
    %v455 = vadd.f32 %v419, %v448
    %v456 = vadd.f32 %v420, %v448
    %v457 = vadd.f32 %v421, %v448
    %v458 = vadd.f32 %v422, %v448
    %v459 = vadd.f32 %v423, %v448
    %v460 = vadd.f32 %v424, %v448
    %v461 = vadd.f32 %v425, %v448
    %v462 = vadd.f32 %v426, %v448
    %v463 = vadd.f32 %v427, %v448
    %v464 = vadd.f32 %v428, %v448
    %v465 = vadd.f32 %v429, %v448
    %v466 = vadd.f32 %v430, %v448
    %v467 = vadd.f32 %v431, %v448
    %v468 = vadd.f32 %v432, %v448
    %v469 = vadd.f32 %v433, %v448
    %v470 = vadd.f32 %v434, %v448
    %v471 = vadd.f32 %v435, %v448
    %v472 = vadd.f32 %v436, %v448
    %v473 = vadd.f32 %v437, %v448
    %v474 = vadd.f32 %v438, %v448
    %v475 = vadd.f32 %v439, %v448
    %v476 = vadd.f32 %v440, %v448
    %v477 = vadd.f32 %v441, %v448
    %v478 = vadd.f32 %v442, %v448
    %v479 = vadd.f32 %v443, %v448
    %v480 = vadd.f32 %v444, %v448
    %v481 = vadd.f32 %v445, %v448
    %v482 = vtanh.pop %v450
    %v483 = vtanh.pop %v451
    %v484 = vtanh.pop %v452
    %v485 = vtanh.pop %v453
    %v486 = vtanh.pop %v454
    %v487 = vtanh.pop %v455
    %v488 = vtanh.pop %v456
    %v489 = vtanh.pop %v457
    %v490 = vtanh.pop %v458
    %v491 = vtanh.pop %v459
    %v492 = vtanh.pop %v460
    %v493 = vtanh.pop %v461
    %v494 = vtanh.pop %v462
    %v495 = vtanh.pop %v463
    %v496 = vtanh.pop %v464
    %v497 = vtanh.pop %v465
    %v498 = vtanh.pop %v466
    %v499 = vtanh.pop %v467
    %v500 = vtanh.pop %v468
    %v501 = vtanh.pop %v469
    %v502 = vtanh.pop %v470
    %v503 = vtanh.pop %v471
    %v504 = vtanh.pop %v472
    %v505 = vtanh.pop %v473
    %v506 = vtanh.pop %v474
    %v507 = vtanh.pop %v475
    %v508 = vtanh.pop %v476
    %v509 = vtanh.pop %v477
    %v510 = vtanh.pop %v478
    %v511 = vtanh.pop %v479
    %v512 = vtanh.pop %v480
    %v513 = vtanh.pop %v481
    %514 = vst [vmem:[%s3] sm:$0xff] %v482
    %515 = vst [vmem:[%s3 + $0x8] sm:$0xff] %v483
    %516 = vst [vmem:[%s3 + $0x10] sm:$0xff] %v484
    %517 = vst [vmem:[%s3 + $0x18] sm:$0xff] %v485
    %518 = vst [vmem:[%s3 + $0x20] sm:$0xff] %v486
    %519 = vst [vmem:[%s3 + $0x28] sm:$0xff] %v487
    %520 = vst [vmem:[%s3 + $0x30] sm:$0xff] %v488
    %521 = vst [vmem:[%s3 + $0x38] sm:$0xff] %v489
    %522 = vst [vmem:[%s3 + $0x40] sm:$0xff] %v490
    %523 = vst [vmem:[%s3 + $0x48] sm:$0xff] %v491
    %524 = vst [vmem:[%s3 + $0x50] sm:$0xff] %v492
    %525 = vst [vmem:[%s3 + $0x58] sm:$0xff] %v493
    %526 = vst [vmem:[%s3 + $0x60] sm:$0xff] %v494
    %527 = vst [vmem:[%s3 + $0x68] sm:$0xff] %v495
    %528 = vst [vmem:[%s3 + $0x70] sm:$0xff] %v496
    %529 = vst [vmem:[%s3 + $0x78] sm:$0xff] %v497
    %530 = vst [vmem:[%s3 + $0x80] sm:$0xff] %v498
    %531 = vst [vmem:[%s3 + $0x88] sm:$0xff] %v499
    %532 = vst [vmem:[%s3 + $0x90] sm:$0xff] %v500
    %533 = vst [vmem:[%s3 + $0x98] sm:$0xff] %v501
    %534 = vst [vmem:[%s3 + $0xa0] sm:$0xff] %v502
    %535 = vst [vmem:[%s3 + $0xa8] sm:$0xff] %v503
    %536 = vst [vmem:[%s3 + $0xb0] sm:$0xff] %v504
    %537 = vst [vmem:[%s3 + $0xb8] sm:$0xff] %v505
    %538 = vst [vmem:[%s3 + $0xc0] sm:$0xff] %v506
    %539 = vst [vmem:[%s3 + $0xc8] sm:$0xff] %v507
    %540 = vst [vmem:[%s3 + $0xd0] sm:$0xff] %v508
    %541 = vst [vmem:[%s3 + $0xd8] sm:$0xff] %v509
    %542 = vst [vmem:[%s3 + $0xe0] sm:$0xff] %v510
    %543 = vst [vmem:[%s3 + $0xe8] sm:$0xff] %v511
    %544 = vst [vmem:[%s3 + $0xf0] sm:$0xff] %v512
    %545 = vst [vmem:[%s3 + $0xf8] sm:$0xff] %v513
  $region21: #{pix2pix_forward.60} parent=0 // pred_fallthru
    _
  // Predicated region
  $region22: #{pix2pix_forward.60} parent=0 // pred_check
    _
  $region23: #{pix2pix_forward.60} parent=0 // pred_check_branch
    %547 = sbr.rel (0) target = $region25
  $region24: #{pix2pix_forward.60} parent=0 // pred_region
    _
  $region25: #{pix2pix_forward.60} parent=0 // pred_fallthru
    _
  // Predicated region
  $region26: #{pix2pix_forward.60} parent=0 // pred_check
    _
  $region27: #{pix2pix_forward.60} parent=0 // pred_check_branch
    %549 = sbr.rel (0) target = $region29
  $region28: #{pix2pix_forward.60} parent=0 // pred_region
    _
  $region29: #{pix2pix_forward.60} parent=0 // pred_fallthru
    _

</llo_original>
